<compile_context>
chip_gen: v6e
topology: v6e:2x2x1
jax: 0.10.0
libtpu: 0.0.40
codegen_flags: <defaults>
</compile_context>

<pallas_src>
import functools

import numpy as np
import jax
import jax.numpy as jnp
from jax.experimental import pallas as pl
from jax.experimental.pallas import tpu as pltpu


# ---------------------------------------------------------------------------
# Fused kernel: 2-layer biLSTM + last-timestep gather + Linear head
# ---------------------------------------------------------------------------
def make_fused_bilstm_kernel(num_layers, H, L, NP):
    """Kernel signature (inputs..., out_ref, scratch...):
        kernel(x_ref, len_ref, [win_l, whh_l, b_l]*num_layers, wout_ref, bout_ref,
               out_ref, scr_ref?)

    x_ref   : (L*NP, D)      bf16 time-major flattened input (row block s = time s)
    len_ref : (NP, 1)        int32 sequence lengths (padded rows arbitrary)
    win_l   : (D_l, 8H)      bf16 combined input projection (gate-interleaved columns)
    whh_l   : (2H, 8H)       bf16 block-diagonal recurrent weights
    b_l     : (1, 8H)        f32  fused bias (b_ih + b_hh, gate-interleaved)
    wout    : (2H, O)        bf16 output Linear weight (pre-transposed)
    bout    : (1, O)         f32  output Linear bias
    out_ref : (NP, O)        f32  logits (padded rows garbage, sliced off outside)
    scr_ref : (L*NP, 2H)     bf16 VMEM scratch holding one layer's time-ordered output

    Column layout per gate g in {i, f, g, o} (PyTorch order):
        cols [g*2H : g*2H+H]     -> forward direction
        cols [g*2H+H : (g+1)*2H] -> backward direction
    """
    H2 = 2 * H
    G = 4 * H2

    def kernel(*refs):
        x_ref, len_ref = refs[0], refs[1]
        layer_refs = refs[2:2 + 3 * num_layers]
        wout_ref, bout_ref, out_ref = refs[2 + 3 * num_layers:2 + 3 * num_layers + 3]
        scr_refs = refs[2 + 3 * num_layers + 3:]
        scr_ref = scr_refs[0] if scr_refs else None

        lengths = len_ref[...]                                   # (NP, 1) int32

        # Constant column mask: True on forward-direction columns of the 8H gate row.
        col = jax.lax.broadcasted_iota(jnp.int32, (NP, G), 1)
        fwd_mask = (col % H2) < H                                # (NP, 8H) bool

        last_f = None
        last_b = None

        for li in range(num_layers):
            win_ref, whh_ref, b_ref = layer_refs[3 * li:3 * li + 3]
            is_last = (li == num_layers - 1)

            # ---- hoisted input projection: one big matmul over the whole sequence ----
            # (layer 0 reads the flattened input, deeper layers read the VMEM scratch;
            #  note: valid for num_layers <= 2 reuse pattern — layer li>0 fully loads the
            #  scratch before any of its own writes.)
            xf = x_ref[...] if li == 0 else scr_ref[...]         # (L*NP, D_l) bf16
            gx = (jnp.dot(xf, win_ref[...], preferred_element_type=jnp.float32)
                  + b_ref[...])                                  # (L*NP, 8H) f32

            # ---- hoisted fwd/bwd time blend: no select on the serial critical path ----
            # fwd columns of step s use time s; bwd columns use time L-1-s.
            gxb = [
                jnp.where(fwd_mask,
                          gx[s * NP:(s + 1) * NP, :],
                          gx[(L - 1 - s) * NP:(L - s) * NP, :])
                for s in range(L)
            ]

            whh = whh_ref[...]                                   # (2H, 8H) bf16, loaded once

            h = jnp.zeros((NP, H2), jnp.float32)                 # [h_fwd | h_bwd]
            c = jnp.zeros((NP, H2), jnp.float32)                 # [c_fwd | c_bwd]
            if is_last:
                last_f = jnp.zeros((NP, H), jnp.float32)

            # ---- serial recurrence (statically unrolled, both directions fused) ----
            for s in range(L):
                gates = gxb[s] + jnp.dot(h.astype(jnp.bfloat16), whh,
                                         preferred_element_type=jnp.float32)

                # lane-aligned 128-wide gate slices: [i_f|i_b], [f_f|f_b], ...
                i_g = jax.nn.sigmoid(gates[:, 0 * H2:1 * H2])
                f_g = jax.nn.sigmoid(gates[:, 1 * H2:2 * H2])
                g_g = jnp.tanh(gates[:, 2 * H2:3 * H2])
                o_g = jax.nn.sigmoid(gates[:, 3 * H2:4 * H2])

                c = f_g * c + i_g * g_g
                h = o_g * jnp.tanh(c)

                if is_last:
                    # forward "last valid timestep" gather, done as a running select
                    last_f = jnp.where(lengths == (s + 1), h[:, :H], last_f)
                else:
                    # in-place, time-ordered layer output: fwd half at row block s,
                    # bwd half at row block L-1-s (next layer reads scratch directly).
                    hb = h.astype(jnp.bfloat16)
                    scr_ref[s * NP:(s + 1) * NP, :H] = hb[:, :H]
                    scr_ref[(L - 1 - s) * NP:(L - s) * NP, H:] = hb[:, H:]

            if is_last:
                # backward output at sequence time 0 == final backward state
                last_b = h[:, H:]

        # Fused Linear head (dropout is identity in eval mode).
        last = jnp.concatenate([last_f, last_b], axis=-1).astype(jnp.bfloat16)  # (NP, 2H)
        out_ref[...] = (jnp.dot(last, wout_ref[...],
                                preferred_element_type=jnp.float32)
                        + bout_ref[...])

    return kernel


# ---------------------------------------------------------------------------
# Wrapper: single pallas_call for the whole forward pass
# ---------------------------------------------------------------------------
def basic_lstm_forward(packed, x, lengths):
    """Mirrors BasicLSTM.forward (bidirectional=True, eval mode).

    x       : (N, L, D) float32, zero-padded sequences
    lengths : (N,) int32
    returns : (N, output_dim) float32
    """
    N, L, D = x.shape
    H = packed["rnn_size"]
    O = packed["out_b"].shape[-1]
    num_layers = len(packed["layers"])

    # Pad the batch to one full sublane tile so every per-step block is (8, lanes)-aligned.
    NP = max(8, ((N + 7) // 8) * 8)
    pad = NP - N
    x_p = jnp.pad(x, ((0, pad), (0, 0), (0, 0)))
    len_p = jnp.pad(lengths.astype(jnp.int32), ((0, pad),))      # padded rows -> length 0

    # Single host-side transpose + flatten; kernel sees bf16 directly (no f32 round trip).
    x_flat = jnp.transpose(x_p, (1, 0, 2)).reshape(L * NP, D).astype(jnp.bfloat16)
    len2d = len_p.reshape(NP, 1)

    args = [x_flat, len2d]
    for (win, whh, b) in packed["layers"]:
        args += [win, whh, b]
    args += [packed["out_wt"], packed["out_b"]]

    kernel = make_fused_bilstm_kernel(num_layers, H, L, NP)
    vmem = pl.BlockSpec(memory_space=pltpu.MemorySpace.VMEM)
    scratch = ([pltpu.VMEM((L * NP, 2 * H), jnp.bfloat16)] if num_layers > 1 else [])

    out = pl.pallas_call(
        kernel,
        out_shape=jax.ShapeDtypeStruct((NP, O), jnp.float32),
        in_specs=[vmem] * len(args),
        out_specs=vmem,
        scratch_shapes=scratch,
    )(*args)
    return out[:N]


# ---------------------------------------------------------------------------
# Parameter preparation (PyTorch layout -> fused/interleaved kernel layout)
# ---------------------------------------------------------------------------
def pack_params(raw):
    H = raw["rnn_size"]
    H2 = 2 * H
    layers = []
    for layer in raw["lstm_layers"]:
        w_ih_f, w_hh_f, b_ih_f, b_hh_f = layer["fwd"]
        w_ih_b, w_hh_b, b_ih_b, b_hh_b = layer["bwd"]
        d_in = w_ih_f.shape[1]

        win = jnp.zeros((d_in, 4 * H2), jnp.float32)
        whh = jnp.zeros((H2, 4 * H2), jnp.float32)      # block-diagonal (fwd rows -> fwd cols)
        bias = jnp.zeros((4 * H2,), jnp.float32)
        for g in range(4):                              # PyTorch gate order i, f, g, o
            rows = slice(g * H, (g + 1) * H)
            cf = slice(g * H2, g * H2 + H)              # forward columns of gate g
            cb = slice(g * H2 + H, (g + 1) * H2)        # backward columns of gate g
            win = win.at[:, cf].set(w_ih_f[rows, :].T)
            win = win.at[:, cb].set(w_ih_b[rows, :].T)
            whh = whh.at[:H, cf].set(w_hh_f[rows, :].T)
            whh = whh.at[H:, cb].set(w_hh_b[rows, :].T)
            bias = bias.at[cf].set(b_ih_f[rows] + b_hh_f[rows])
            bias = bias.at[cb].set(b_ih_b[rows] + b_hh_b[rows])

        layers.append((win.astype(jnp.bfloat16),
                       whh.astype(jnp.bfloat16),
                       bias.reshape(1, 4 * H2)))

    return {
        "layers": layers,
        "out_wt": jnp.transpose(raw["out_w"]).astype(jnp.bfloat16),   # (2H, O) bf16
        "out_b": raw["out_b"].reshape(1, -1),                         # (1, O) f32
        "rnn_size": H,
    }


# ---------------------------------------------------------------------------
# Deterministic parameter init (PyTorch-style uniform(-1/sqrt(H), 1/sqrt(H)))
# ---------------------------------------------------------------------------
def init_params(key, input_dim, rnn_size, output_dim, num_layers):
    k_lstm = 1.0 / np.sqrt(rnn_size)
    keys = iter(jax.random.split(key, 8 * num_layers + 2))

    def unif(shape, bound):
        return jax.random.uniform(
            next(keys), shape, dtype=jnp.float32, minval=-bound, maxval=bound
        )

    layers = []
    d_in = input_dim
    for _ in range(num_layers):
        layer = {}
        for direction in ("fwd", "bwd"):
            w_ih = unif((4 * rnn_size, d_in), k_lstm)
            w_hh = unif((4 * rnn_size, rnn_size), k_lstm)
            b_ih = unif((4 * rnn_size,), k_lstm)
            b_hh = unif((4 * rnn_size,), k_lstm)
            layer[direction] = (w_ih, w_hh, b_ih, b_hh)
        layers.append(layer)
        d_in = 2 * rnn_size   # bidirectional -> next layer sees 2H features

    feature_size = 2 * rnn_size
    k_lin = 1.0 / np.sqrt(feature_size)
    out_w = unif((output_dim, feature_size), k_lin)
    out_b = unif((output_dim,), k_lin)

    return {
        "lstm_layers": layers,
        "out_w": out_w,
        "out_b": out_b,
        "rnn_size": rnn_size,
    }


# ---------------------------------------------------------------------------
# Main
# ---------------------------------------------------------------------------
if __name__ == "__main__":
    N, L, D = 2, 8, 16          # batch, max seq length, feature dim
    RNN_SIZE = 64
    OUTPUT_DIM = 10
    NUM_LAYERS = 2

    key = jax.random.PRNGKey(0)
    k_x, k_p = jax.random.split(key)

    # Zero-padded sequences (mirrors FrameLevelDataset.zero_pad_and_stack)
    lengths = jnp.array([8, 5], dtype=jnp.int32)
    x = jax.random.normal(k_x, (N, L, D), dtype=jnp.float32)
    time_idx = jnp.arange(L)[None, :, None]                  # (1, L, 1)
    x = jnp.where(time_idx < lengths[:, None, None], x, 0.0)

    raw_params = init_params(k_p, D, RNN_SIZE, OUTPUT_DIM, NUM_LAYERS)
    packed = pack_params(raw_params)

    fwd = jax.jit(functools.partial(basic_lstm_forward, packed))
    logits = fwd(x, lengths)
    jax.block_until_ready(logits)

    assert logits.shape == (N, OUTPUT_DIM), logits.shape
    assert bool(jnp.all(jnp.isfinite(logits)))
    print("KERNEL_OK")
</pallas_src>

<mosaic_0001>
module attributes {stable_mosaic.version = 11 : i64} {
  func.func @kernel(%arg0: memref<64x16xbf16, #tpu.memory_space<vmem>>, %arg1: memref<8x1xi32, #tpu.memory_space<vmem>>, %arg2: memref<16x512xbf16, #tpu.memory_space<vmem>>, %arg3: memref<128x512xbf16, #tpu.memory_space<vmem>>, %arg4: memref<1x512xf32, #tpu.memory_space<vmem>>, %arg5: memref<128x512xbf16, #tpu.memory_space<vmem>>, %arg6: memref<128x512xbf16, #tpu.memory_space<vmem>>, %arg7: memref<1x512xf32, #tpu.memory_space<vmem>>, %arg8: memref<128x10xbf16, #tpu.memory_space<vmem>>, %arg9: memref<1x10xf32, #tpu.memory_space<vmem>>, %arg10: memref<8x10xf32, #tpu.memory_space<vmem>>, %arg11: memref<64x128xbf16, #tpu.memory_space<vmem>>) attributes {dimension_semantics = [], scalar_prefetch = 0 : i64, scratch_operands = 1 : i64, tpu.core_type = #tpu.core_type<tc>} {
    %c0 = arith.constant 0 : index
    %c0_0 = arith.constant 0 : index
    %0 = vector.load %arg1[%c0, %c0_0] : memref<8x1xi32, #tpu.memory_space<vmem>>, vector<8x1xi32>
    %1 = tpu.iota {dimensions = array<i32: 1>} : vector<8x512xi32>
    %c128_i32 = arith.constant 128 : i32
    %c0_i32 = arith.constant 0 : i32
    %2 = arith.cmpi eq, %c128_i32, %c0_i32 : i32
    %c1_i32 = arith.constant 1 : i32
    %3 = arith.select %2, %c1_i32, %c128_i32 : i32
    %4 = vector.broadcast %3 : i32 to vector<8x512xi32>
    %5 = arith.remsi %1, %4 : vector<8x512xi32>
    %c0_i32_1 = arith.constant 0 : i32
    %6 = vector.broadcast %c0_i32_1 : i32 to vector<8x512xi32>
    %7 = arith.cmpi ne, %5, %6 : vector<8x512xi32>
    %c0_i32_2 = arith.constant 0 : i32
    %8 = vector.broadcast %c0_i32_2 : i32 to vector<8x512xi32>
    %9 = arith.cmpi slt, %5, %8 : vector<8x512xi32>
    %c0_i32_3 = arith.constant 0 : i32
    %10 = arith.cmpi slt, %3, %c0_i32_3 : i32
    %11 = vector.broadcast %10 : i1 to vector<8x512xi1>
    %12 = vector.broadcast %11 : vector<8x512xi1> to vector<8x512xi1>
    %13 = arith.xori %9, %12 : vector<8x512xi1>
    %14 = arith.andi %13, %7 : vector<8x512xi1>
    %15 = vector.broadcast %3 : i32 to vector<8x512xi32>
    %16 = arith.addi %5, %15 : vector<8x512xi32>
    %17 = arith.select %14, %16, %5 : vector<8x512xi1>, vector<8x512xi32>
    %c64_i32 = arith.constant 64 : i32
    %18 = vector.broadcast %c64_i32 : i32 to vector<8x512xi32>
    %19 = arith.cmpi slt, %17, %18 : vector<8x512xi32>
    %c0_4 = arith.constant 0 : index
    %c0_5 = arith.constant 0 : index
    %20 = vector.load %arg0[%c0_4, %c0_5] : memref<64x16xbf16, #tpu.memory_space<vmem>>, vector<64x16xbf16>
    %c0_6 = arith.constant 0 : index
    %c0_7 = arith.constant 0 : index
    %21 = vector.load %arg2[%c0_6, %c0_7] : memref<16x512xbf16, #tpu.memory_space<vmem>>, vector<16x512xbf16>
    %cst = arith.constant dense<0.000000e+00> : vector<64x512xf32>
    %22 = tpu.matmul %20, %21, %cst {dimension_numbers = #tpu.dot_dimension_numbers<[1], [0], [0], [1], [0, 0, 1, 1], [], []>} : vector<64x16xbf16>, vector<16x512xbf16>, vector<64x512xf32> -> vector<64x512xf32>
    %c0_8 = arith.constant 0 : index
    %c0_9 = arith.constant 0 : index
    %23 = vector.load %arg4[%c0_8, %c0_9] : memref<1x512xf32, #tpu.memory_space<vmem>>, vector<1x512xf32>
    %24 = vector.broadcast %23 : vector<1x512xf32> to vector<64x512xf32>
    %25 = arith.addf %22, %24 : vector<64x512xf32>
    %26 = vector.extract_strided_slice %25 {offsets = [0, 0], sizes = [8, 512], strides = [1, 1]} : vector<64x512xf32> to vector<8x512xf32>
    %27 = vector.extract_strided_slice %25 {offsets = [56, 0], sizes = [8, 512], strides = [1, 1]} : vector<64x512xf32> to vector<8x512xf32>
    %28 = arith.select %19, %26, %27 : vector<8x512xi1>, vector<8x512xf32>
    %29 = vector.extract_strided_slice %25 {offsets = [8, 0], sizes = [8, 512], strides = [1, 1]} : vector<64x512xf32> to vector<8x512xf32>
    %30 = vector.extract_strided_slice %25 {offsets = [48, 0], sizes = [8, 512], strides = [1, 1]} : vector<64x512xf32> to vector<8x512xf32>
    %31 = arith.select %19, %29, %30 : vector<8x512xi1>, vector<8x512xf32>
    %32 = vector.extract_strided_slice %25 {offsets = [16, 0], sizes = [8, 512], strides = [1, 1]} : vector<64x512xf32> to vector<8x512xf32>
    %33 = vector.extract_strided_slice %25 {offsets = [40, 0], sizes = [8, 512], strides = [1, 1]} : vector<64x512xf32> to vector<8x512xf32>
    %34 = arith.select %19, %32, %33 : vector<8x512xi1>, vector<8x512xf32>
    %35 = vector.extract_strided_slice %25 {offsets = [24, 0], sizes = [8, 512], strides = [1, 1]} : vector<64x512xf32> to vector<8x512xf32>
    %36 = vector.extract_strided_slice %25 {offsets = [32, 0], sizes = [8, 512], strides = [1, 1]} : vector<64x512xf32> to vector<8x512xf32>
    %37 = arith.select %19, %35, %36 : vector<8x512xi1>, vector<8x512xf32>
    %38 = vector.extract_strided_slice %25 {offsets = [32, 0], sizes = [8, 512], strides = [1, 1]} : vector<64x512xf32> to vector<8x512xf32>
    %39 = vector.extract_strided_slice %25 {offsets = [24, 0], sizes = [8, 512], strides = [1, 1]} : vector<64x512xf32> to vector<8x512xf32>
    %40 = arith.select %19, %38, %39 : vector<8x512xi1>, vector<8x512xf32>
    %41 = vector.extract_strided_slice %25 {offsets = [40, 0], sizes = [8, 512], strides = [1, 1]} : vector<64x512xf32> to vector<8x512xf32>
    %42 = vector.extract_strided_slice %25 {offsets = [16, 0], sizes = [8, 512], strides = [1, 1]} : vector<64x512xf32> to vector<8x512xf32>
    %43 = arith.select %19, %41, %42 : vector<8x512xi1>, vector<8x512xf32>
    %44 = vector.extract_strided_slice %25 {offsets = [48, 0], sizes = [8, 512], strides = [1, 1]} : vector<64x512xf32> to vector<8x512xf32>
    %45 = vector.extract_strided_slice %25 {offsets = [8, 0], sizes = [8, 512], strides = [1, 1]} : vector<64x512xf32> to vector<8x512xf32>
    %46 = arith.select %19, %44, %45 : vector<8x512xi1>, vector<8x512xf32>
    %47 = vector.extract_strided_slice %25 {offsets = [56, 0], sizes = [8, 512], strides = [1, 1]} : vector<64x512xf32> to vector<8x512xf32>
    %48 = vector.extract_strided_slice %25 {offsets = [0, 0], sizes = [8, 512], strides = [1, 1]} : vector<64x512xf32> to vector<8x512xf32>
    %49 = arith.select %19, %47, %48 : vector<8x512xi1>, vector<8x512xf32>
    %c0_10 = arith.constant 0 : index
    %c0_11 = arith.constant 0 : index
    %50 = vector.load %arg3[%c0_10, %c0_11] : memref<128x512xbf16, #tpu.memory_space<vmem>>, vector<128x512xbf16>
    %cst_12 = arith.constant 0.000000e+00 : f32
    %51 = vector.broadcast %cst_12 : f32 to vector<8x128xf32>
    %cst_13 = arith.constant 0.000000e+00 : f32
    %52 = vector.broadcast %cst_13 : f32 to vector<8x128xf32>
    %53 = arith.truncf %51 : vector<8x128xf32> to vector<8x128xbf16>
    %cst_14 = arith.constant dense<0.000000e+00> : vector<8x512xf32>
    %54 = tpu.matmul %53, %50, %cst_14 {dimension_numbers = #tpu.dot_dimension_numbers<[1], [0], [0], [1], [0, 0, 1, 1], [], []>} : vector<8x128xbf16>, vector<128x512xbf16>, vector<8x512xf32> -> vector<8x512xf32>
    %55 = arith.addf %28, %54 : vector<8x512xf32>
    %56 = vector.extract_strided_slice %55 {offsets = [0, 0], sizes = [8, 128], strides = [1, 1]} : vector<8x512xf32> to vector<8x128xf32>
    %57 = arith.negf %56 : vector<8x128xf32>
    %58 = math.exp %57 : vector<8x128xf32>
    %cst_15 = arith.constant 1.000000e+00 : f32
    %59 = vector.broadcast %cst_15 : f32 to vector<8x128xf32>
    %60 = arith.addf %59, %58 : vector<8x128xf32>
    %61 = arith.divf %59, %60 : vector<8x128xf32>
    %62 = vector.extract_strided_slice %55 {offsets = [0, 128], sizes = [8, 128], strides = [1, 1]} : vector<8x512xf32> to vector<8x128xf32>
    %63 = arith.negf %62 : vector<8x128xf32>
    %64 = math.exp %63 : vector<8x128xf32>
    %cst_16 = arith.constant 1.000000e+00 : f32
    %65 = vector.broadcast %cst_16 : f32 to vector<8x128xf32>
    %66 = arith.addf %65, %64 : vector<8x128xf32>
    %67 = arith.divf %65, %66 : vector<8x128xf32>
    %68 = vector.extract_strided_slice %55 {offsets = [0, 256], sizes = [8, 128], strides = [1, 1]} : vector<8x512xf32> to vector<8x128xf32>
    %69 = math.tanh %68 : vector<8x128xf32>
    %70 = vector.extract_strided_slice %55 {offsets = [0, 384], sizes = [8, 128], strides = [1, 1]} : vector<8x512xf32> to vector<8x128xf32>
    %71 = arith.negf %70 : vector<8x128xf32>
    %72 = math.exp %71 : vector<8x128xf32>
    %cst_17 = arith.constant 1.000000e+00 : f32
    %73 = vector.broadcast %cst_17 : f32 to vector<8x128xf32>
    %74 = arith.addf %73, %72 : vector<8x128xf32>
    %75 = arith.divf %73, %74 : vector<8x128xf32>
    %76 = arith.mulf %67, %52 : vector<8x128xf32>
    %77 = arith.mulf %61, %69 : vector<8x128xf32>
    %78 = arith.addf %76, %77 : vector<8x128xf32>
    %79 = math.tanh %78 : vector<8x128xf32>
    %80 = arith.mulf %75, %79 : vector<8x128xf32>
    %81 = arith.truncf %80 : vector<8x128xf32> to vector<8x128xbf16>
    %82 = vector.extract_strided_slice %81 {offsets = [0, 0], sizes = [8, 64], strides = [1, 1]} : vector<8x128xbf16> to vector<8x64xbf16>
    %c0_18 = arith.constant 0 : index
    %c0_19 = arith.constant 0 : index
    %83 = vector.load %arg11[%c0_18, %c0_19] : memref<64x128xbf16, #tpu.memory_space<vmem>>, vector<8x64xbf16>
    tpu.vector_store %arg11[%c0_18, %c0_19], %82 {strides = array<i32>} : memref<64x128xbf16, #tpu.memory_space<vmem>>, vector<8x64xbf16>,
    %84 = vector.extract_strided_slice %81 {offsets = [0, 64], sizes = [8, 64], strides = [1, 1]} : vector<8x128xbf16> to vector<8x64xbf16>
    %c56 = arith.constant 56 : index
    %c64 = arith.constant 64 : index
    %85 = vector.load %arg11[%c56, %c64] : memref<64x128xbf16, #tpu.memory_space<vmem>>, vector<8x64xbf16>
    tpu.vector_store %arg11[%c56, %c64], %84 {strides = array<i32>} : memref<64x128xbf16, #tpu.memory_space<vmem>>, vector<8x64xbf16>,
    %86 = arith.truncf %80 : vector<8x128xf32> to vector<8x128xbf16>
    %cst_20 = arith.constant dense<0.000000e+00> : vector<8x512xf32>
    %87 = tpu.matmul %86, %50, %cst_20 {dimension_numbers = #tpu.dot_dimension_numbers<[1], [0], [0], [1], [0, 0, 1, 1], [], []>} : vector<8x128xbf16>, vector<128x512xbf16>, vector<8x512xf32> -> vector<8x512xf32>
    %88 = arith.addf %31, %87 : vector<8x512xf32>
    %89 = vector.extract_strided_slice %88 {offsets = [0, 0], sizes = [8, 128], strides = [1, 1]} : vector<8x512xf32> to vector<8x128xf32>
    %90 = arith.negf %89 : vector<8x128xf32>
    %91 = math.exp %90 : vector<8x128xf32>
    %cst_21 = arith.constant 1.000000e+00 : f32
    %92 = vector.broadcast %cst_21 : f32 to vector<8x128xf32>
    %93 = arith.addf %92, %91 : vector<8x128xf32>
    %94 = arith.divf %92, %93 : vector<8x128xf32>
    %95 = vector.extract_strided_slice %88 {offsets = [0, 128], sizes = [8, 128], strides = [1, 1]} : vector<8x512xf32> to vector<8x128xf32>
    %96 = arith.negf %95 : vector<8x128xf32>
    %97 = math.exp %96 : vector<8x128xf32>
    %cst_22 = arith.constant 1.000000e+00 : f32
    %98 = vector.broadcast %cst_22 : f32 to vector<8x128xf32>
    %99 = arith.addf %98, %97 : vector<8x128xf32>
    %100 = arith.divf %98, %99 : vector<8x128xf32>
    %101 = vector.extract_strided_slice %88 {offsets = [0, 256], sizes = [8, 128], strides = [1, 1]} : vector<8x512xf32> to vector<8x128xf32>
    %102 = math.tanh %101 : vector<8x128xf32>
    %103 = vector.extract_strided_slice %88 {offsets = [0, 384], sizes = [8, 128], strides = [1, 1]} : vector<8x512xf32> to vector<8x128xf32>
    %104 = arith.negf %103 : vector<8x128xf32>
    %105 = math.exp %104 : vector<8x128xf32>
    %cst_23 = arith.constant 1.000000e+00 : f32
    %106 = vector.broadcast %cst_23 : f32 to vector<8x128xf32>
    %107 = arith.addf %106, %105 : vector<8x128xf32>
    %108 = arith.divf %106, %107 : vector<8x128xf32>
    %109 = arith.mulf %100, %78 : vector<8x128xf32>
    %110 = arith.mulf %94, %102 : vector<8x128xf32>
    %111 = arith.addf %109, %110 : vector<8x128xf32>
    %112 = math.tanh %111 : vector<8x128xf32>
    %113 = arith.mulf %108, %112 : vector<8x128xf32>
    %114 = arith.truncf %113 : vector<8x128xf32> to vector<8x128xbf16>
    %115 = vector.extract_strided_slice %114 {offsets = [0, 0], sizes = [8, 64], strides = [1, 1]} : vector<8x128xbf16> to vector<8x64xbf16>
    %c8 = arith.constant 8 : index
    %c0_24 = arith.constant 0 : index
    %116 = vector.load %arg11[%c8, %c0_24] : memref<64x128xbf16, #tpu.memory_space<vmem>>, vector<8x64xbf16>
    tpu.vector_store %arg11[%c8, %c0_24], %115 {strides = array<i32>} : memref<64x128xbf16, #tpu.memory_space<vmem>>, vector<8x64xbf16>,
    %117 = vector.extract_strided_slice %114 {offsets = [0, 64], sizes = [8, 64], strides = [1, 1]} : vector<8x128xbf16> to vector<8x64xbf16>
    %c48 = arith.constant 48 : index
    %c64_25 = arith.constant 64 : index
    %118 = vector.load %arg11[%c48, %c64_25] : memref<64x128xbf16, #tpu.memory_space<vmem>>, vector<8x64xbf16>
    tpu.vector_store %arg11[%c48, %c64_25], %117 {strides = array<i32>} : memref<64x128xbf16, #tpu.memory_space<vmem>>, vector<8x64xbf16>,
    %119 = arith.truncf %113 : vector<8x128xf32> to vector<8x128xbf16>
    %cst_26 = arith.constant dense<0.000000e+00> : vector<8x512xf32>
    %120 = tpu.matmul %119, %50, %cst_26 {dimension_numbers = #tpu.dot_dimension_numbers<[1], [0], [0], [1], [0, 0, 1, 1], [], []>} : vector<8x128xbf16>, vector<128x512xbf16>, vector<8x512xf32> -> vector<8x512xf32>
    %121 = arith.addf %34, %120 : vector<8x512xf32>
    %122 = vector.extract_strided_slice %121 {offsets = [0, 0], sizes = [8, 128], strides = [1, 1]} : vector<8x512xf32> to vector<8x128xf32>
    %123 = arith.negf %122 : vector<8x128xf32>
    %124 = math.exp %123 : vector<8x128xf32>
    %cst_27 = arith.constant 1.000000e+00 : f32
    %125 = vector.broadcast %cst_27 : f32 to vector<8x128xf32>
    %126 = arith.addf %125, %124 : vector<8x128xf32>
    %127 = arith.divf %125, %126 : vector<8x128xf32>
    %128 = vector.extract_strided_slice %121 {offsets = [0, 128], sizes = [8, 128], strides = [1, 1]} : vector<8x512xf32> to vector<8x128xf32>
    %129 = arith.negf %128 : vector<8x128xf32>
    %130 = math.exp %129 : vector<8x128xf32>
    %cst_28 = arith.constant 1.000000e+00 : f32
    %131 = vector.broadcast %cst_28 : f32 to vector<8x128xf32>
    %132 = arith.addf %131, %130 : vector<8x128xf32>
    %133 = arith.divf %131, %132 : vector<8x128xf32>
    %134 = vector.extract_strided_slice %121 {offsets = [0, 256], sizes = [8, 128], strides = [1, 1]} : vector<8x512xf32> to vector<8x128xf32>
    %135 = math.tanh %134 : vector<8x128xf32>
    %136 = vector.extract_strided_slice %121 {offsets = [0, 384], sizes = [8, 128], strides = [1, 1]} : vector<8x512xf32> to vector<8x128xf32>
    %137 = arith.negf %136 : vector<8x128xf32>
    %138 = math.exp %137 : vector<8x128xf32>
    %cst_29 = arith.constant 1.000000e+00 : f32
    %139 = vector.broadcast %cst_29 : f32 to vector<8x128xf32>
    %140 = arith.addf %139, %138 : vector<8x128xf32>
    %141 = arith.divf %139, %140 : vector<8x128xf32>
    %142 = arith.mulf %133, %111 : vector<8x128xf32>
    %143 = arith.mulf %127, %135 : vector<8x128xf32>
    %144 = arith.addf %142, %143 : vector<8x128xf32>
    %145 = math.tanh %144 : vector<8x128xf32>
    %146 = arith.mulf %141, %145 : vector<8x128xf32>
    %147 = arith.truncf %146 : vector<8x128xf32> to vector<8x128xbf16>
    %148 = vector.extract_strided_slice %147 {offsets = [0, 0], sizes = [8, 64], strides = [1, 1]} : vector<8x128xbf16> to vector<8x64xbf16>
    %c16 = arith.constant 16 : index
    %c0_30 = arith.constant 0 : index
    %149 = vector.load %arg11[%c16, %c0_30] : memref<64x128xbf16, #tpu.memory_space<vmem>>, vector<8x64xbf16>
    tpu.vector_store %arg11[%c16, %c0_30], %148 {strides = array<i32>} : memref<64x128xbf16, #tpu.memory_space<vmem>>, vector<8x64xbf16>,
    %150 = vector.extract_strided_slice %147 {offsets = [0, 64], sizes = [8, 64], strides = [1, 1]} : vector<8x128xbf16> to vector<8x64xbf16>
    %c40 = arith.constant 40 : index
    %c64_31 = arith.constant 64 : index
    %151 = vector.load %arg11[%c40, %c64_31] : memref<64x128xbf16, #tpu.memory_space<vmem>>, vector<8x64xbf16>
    tpu.vector_store %arg11[%c40, %c64_31], %150 {strides = array<i32>} : memref<64x128xbf16, #tpu.memory_space<vmem>>, vector<8x64xbf16>,
    %152 = arith.truncf %146 : vector<8x128xf32> to vector<8x128xbf16>
    %cst_32 = arith.constant dense<0.000000e+00> : vector<8x512xf32>
    %153 = tpu.matmul %152, %50, %cst_32 {dimension_numbers = #tpu.dot_dimension_numbers<[1], [0], [0], [1], [0, 0, 1, 1], [], []>} : vector<8x128xbf16>, vector<128x512xbf16>, vector<8x512xf32> -> vector<8x512xf32>
    %154 = arith.addf %37, %153 : vector<8x512xf32>
    %155 = vector.extract_strided_slice %154 {offsets = [0, 0], sizes = [8, 128], strides = [1, 1]} : vector<8x512xf32> to vector<8x128xf32>
    %156 = arith.negf %155 : vector<8x128xf32>
    %157 = math.exp %156 : vector<8x128xf32>
    %cst_33 = arith.constant 1.000000e+00 : f32
    %158 = vector.broadcast %cst_33 : f32 to vector<8x128xf32>
    %159 = arith.addf %158, %157 : vector<8x128xf32>
    %160 = arith.divf %158, %159 : vector<8x128xf32>
    %161 = vector.extract_strided_slice %154 {offsets = [0, 128], sizes = [8, 128], strides = [1, 1]} : vector<8x512xf32> to vector<8x128xf32>
    %162 = arith.negf %161 : vector<8x128xf32>
    %163 = math.exp %162 : vector<8x128xf32>
    %cst_34 = arith.constant 1.000000e+00 : f32
    %164 = vector.broadcast %cst_34 : f32 to vector<8x128xf32>
    %165 = arith.addf %164, %163 : vector<8x128xf32>
    %166 = arith.divf %164, %165 : vector<8x128xf32>
    %167 = vector.extract_strided_slice %154 {offsets = [0, 256], sizes = [8, 128], strides = [1, 1]} : vector<8x512xf32> to vector<8x128xf32>
    %168 = math.tanh %167 : vector<8x128xf32>
    %169 = vector.extract_strided_slice %154 {offsets = [0, 384], sizes = [8, 128], strides = [1, 1]} : vector<8x512xf32> to vector<8x128xf32>
    %170 = arith.negf %169 : vector<8x128xf32>
    %171 = math.exp %170 : vector<8x128xf32>
    %cst_35 = arith.constant 1.000000e+00 : f32
    %172 = vector.broadcast %cst_35 : f32 to vector<8x128xf32>
    %173 = arith.addf %172, %171 : vector<8x128xf32>
    %174 = arith.divf %172, %173 : vector<8x128xf32>
    %175 = arith.mulf %166, %144 : vector<8x128xf32>
    %176 = arith.mulf %160, %168 : vector<8x128xf32>
    %177 = arith.addf %175, %176 : vector<8x128xf32>
    %178 = math.tanh %177 : vector<8x128xf32>
    %179 = arith.mulf %174, %178 : vector<8x128xf32>
    %180 = arith.truncf %179 : vector<8x128xf32> to vector<8x128xbf16>
    %181 = vector.extract_strided_slice %180 {offsets = [0, 0], sizes = [8, 64], strides = [1, 1]} : vector<8x128xbf16> to vector<8x64xbf16>
    %c24 = arith.constant 24 : index
    %c0_36 = arith.constant 0 : index
    %182 = vector.load %arg11[%c24, %c0_36] : memref<64x128xbf16, #tpu.memory_space<vmem>>, vector<8x64xbf16>
    tpu.vector_store %arg11[%c24, %c0_36], %181 {strides = array<i32>} : memref<64x128xbf16, #tpu.memory_space<vmem>>, vector<8x64xbf16>,
    %183 = vector.extract_strided_slice %180 {offsets = [0, 64], sizes = [8, 64], strides = [1, 1]} : vector<8x128xbf16> to vector<8x64xbf16>
    %c32 = arith.constant 32 : index
    %c64_37 = arith.constant 64 : index
    %184 = vector.load %arg11[%c32, %c64_37] : memref<64x128xbf16, #tpu.memory_space<vmem>>, vector<8x64xbf16>
    tpu.vector_store %arg11[%c32, %c64_37], %183 {strides = array<i32>} : memref<64x128xbf16, #tpu.memory_space<vmem>>, vector<8x64xbf16>,
    %185 = arith.truncf %179 : vector<8x128xf32> to vector<8x128xbf16>
    %cst_38 = arith.constant dense<0.000000e+00> : vector<8x512xf32>
    %186 = tpu.matmul %185, %50, %cst_38 {dimension_numbers = #tpu.dot_dimension_numbers<[1], [0], [0], [1], [0, 0, 1, 1], [], []>} : vector<8x128xbf16>, vector<128x512xbf16>, vector<8x512xf32> -> vector<8x512xf32>
    %187 = arith.addf %40, %186 : vector<8x512xf32>
    %188 = vector.extract_strided_slice %187 {offsets = [0, 0], sizes = [8, 128], strides = [1, 1]} : vector<8x512xf32> to vector<8x128xf32>
    %189 = arith.negf %188 : vector<8x128xf32>
    %190 = math.exp %189 : vector<8x128xf32>
    %cst_39 = arith.constant 1.000000e+00 : f32
    %191 = vector.broadcast %cst_39 : f32 to vector<8x128xf32>
    %192 = arith.addf %191, %190 : vector<8x128xf32>
    %193 = arith.divf %191, %192 : vector<8x128xf32>
    %194 = vector.extract_strided_slice %187 {offsets = [0, 128], sizes = [8, 128], strides = [1, 1]} : vector<8x512xf32> to vector<8x128xf32>
    %195 = arith.negf %194 : vector<8x128xf32>
    %196 = math.exp %195 : vector<8x128xf32>
    %cst_40 = arith.constant 1.000000e+00 : f32
    %197 = vector.broadcast %cst_40 : f32 to vector<8x128xf32>
    %198 = arith.addf %197, %196 : vector<8x128xf32>
    %199 = arith.divf %197, %198 : vector<8x128xf32>
    %200 = vector.extract_strided_slice %187 {offsets = [0, 256], sizes = [8, 128], strides = [1, 1]} : vector<8x512xf32> to vector<8x128xf32>
    %201 = math.tanh %200 : vector<8x128xf32>
    %202 = vector.extract_strided_slice %187 {offsets = [0, 384], sizes = [8, 128], strides = [1, 1]} : vector<8x512xf32> to vector<8x128xf32>
    %203 = arith.negf %202 : vector<8x128xf32>
    %204 = math.exp %203 : vector<8x128xf32>
    %cst_41 = arith.constant 1.000000e+00 : f32
    %205 = vector.broadcast %cst_41 : f32 to vector<8x128xf32>
    %206 = arith.addf %205, %204 : vector<8x128xf32>
    %207 = arith.divf %205, %206 : vector<8x128xf32>
    %208 = arith.mulf %199, %177 : vector<8x128xf32>
    %209 = arith.mulf %193, %201 : vector<8x128xf32>
    %210 = arith.addf %208, %209 : vector<8x128xf32>
    %211 = math.tanh %210 : vector<8x128xf32>
    %212 = arith.mulf %207, %211 : vector<8x128xf32>
    %213 = arith.truncf %212 : vector<8x128xf32> to vector<8x128xbf16>
    %214 = vector.extract_strided_slice %213 {offsets = [0, 0], sizes = [8, 64], strides = [1, 1]} : vector<8x128xbf16> to vector<8x64xbf16>
    %c32_42 = arith.constant 32 : index
    %c0_43 = arith.constant 0 : index
    %215 = vector.load %arg11[%c32_42, %c0_43] : memref<64x128xbf16, #tpu.memory_space<vmem>>, vector<8x64xbf16>
    tpu.vector_store %arg11[%c32_42, %c0_43], %214 {strides = array<i32>} : memref<64x128xbf16, #tpu.memory_space<vmem>>, vector<8x64xbf16>,
    %216 = vector.extract_strided_slice %213 {offsets = [0, 64], sizes = [8, 64], strides = [1, 1]} : vector<8x128xbf16> to vector<8x64xbf16>
    %c24_44 = arith.constant 24 : index
    %c64_45 = arith.constant 64 : index
    %217 = vector.load %arg11[%c24_44, %c64_45] : memref<64x128xbf16, #tpu.memory_space<vmem>>, vector<8x64xbf16>
    tpu.vector_store %arg11[%c24_44, %c64_45], %216 {strides = array<i32>} : memref<64x128xbf16, #tpu.memory_space<vmem>>, vector<8x64xbf16>,
    %218 = arith.truncf %212 : vector<8x128xf32> to vector<8x128xbf16>
    %cst_46 = arith.constant dense<0.000000e+00> : vector<8x512xf32>
    %219 = tpu.matmul %218, %50, %cst_46 {dimension_numbers = #tpu.dot_dimension_numbers<[1], [0], [0], [1], [0, 0, 1, 1], [], []>} : vector<8x128xbf16>, vector<128x512xbf16>, vector<8x512xf32> -> vector<8x512xf32>
    %220 = arith.addf %43, %219 : vector<8x512xf32>
    %221 = vector.extract_strided_slice %220 {offsets = [0, 0], sizes = [8, 128], strides = [1, 1]} : vector<8x512xf32> to vector<8x128xf32>
    %222 = arith.negf %221 : vector<8x128xf32>
    %223 = math.exp %222 : vector<8x128xf32>
    %cst_47 = arith.constant 1.000000e+00 : f32
    %224 = vector.broadcast %cst_47 : f32 to vector<8x128xf32>
    %225 = arith.addf %224, %223 : vector<8x128xf32>
    %226 = arith.divf %224, %225 : vector<8x128xf32>
    %227 = vector.extract_strided_slice %220 {offsets = [0, 128], sizes = [8, 128], strides = [1, 1]} : vector<8x512xf32> to vector<8x128xf32>
    %228 = arith.negf %227 : vector<8x128xf32>
    %229 = math.exp %228 : vector<8x128xf32>
    %cst_48 = arith.constant 1.000000e+00 : f32
    %230 = vector.broadcast %cst_48 : f32 to vector<8x128xf32>
    %231 = arith.addf %230, %229 : vector<8x128xf32>
    %232 = arith.divf %230, %231 : vector<8x128xf32>
    %233 = vector.extract_strided_slice %220 {offsets = [0, 256], sizes = [8, 128], strides = [1, 1]} : vector<8x512xf32> to vector<8x128xf32>
    %234 = math.tanh %233 : vector<8x128xf32>
    %235 = vector.extract_strided_slice %220 {offsets = [0, 384], sizes = [8, 128], strides = [1, 1]} : vector<8x512xf32> to vector<8x128xf32>
    %236 = arith.negf %235 : vector<8x128xf32>
    %237 = math.exp %236 : vector<8x128xf32>
    %cst_49 = arith.constant 1.000000e+00 : f32
    %238 = vector.broadcast %cst_49 : f32 to vector<8x128xf32>
    %239 = arith.addf %238, %237 : vector<8x128xf32>
    %240 = arith.divf %238, %239 : vector<8x128xf32>
    %241 = arith.mulf %232, %210 : vector<8x128xf32>
    %242 = arith.mulf %226, %234 : vector<8x128xf32>
    %243 = arith.addf %241, %242 : vector<8x128xf32>
    %244 = math.tanh %243 : vector<8x128xf32>
    %245 = arith.mulf %240, %244 : vector<8x128xf32>
    %246 = arith.truncf %245 : vector<8x128xf32> to vector<8x128xbf16>
    %247 = vector.extract_strided_slice %246 {offsets = [0, 0], sizes = [8, 64], strides = [1, 1]} : vector<8x128xbf16> to vector<8x64xbf16>
    %c40_50 = arith.constant 40 : index
    %c0_51 = arith.constant 0 : index
    %248 = vector.load %arg11[%c40_50, %c0_51] : memref<64x128xbf16, #tpu.memory_space<vmem>>, vector<8x64xbf16>
    tpu.vector_store %arg11[%c40_50, %c0_51], %247 {strides = array<i32>} : memref<64x128xbf16, #tpu.memory_space<vmem>>, vector<8x64xbf16>,
    %249 = vector.extract_strided_slice %246 {offsets = [0, 64], sizes = [8, 64], strides = [1, 1]} : vector<8x128xbf16> to vector<8x64xbf16>
    %c16_52 = arith.constant 16 : index
    %c64_53 = arith.constant 64 : index
    %250 = vector.load %arg11[%c16_52, %c64_53] : memref<64x128xbf16, #tpu.memory_space<vmem>>, vector<8x64xbf16>
    tpu.vector_store %arg11[%c16_52, %c64_53], %249 {strides = array<i32>} : memref<64x128xbf16, #tpu.memory_space<vmem>>, vector<8x64xbf16>,
    %251 = arith.truncf %245 : vector<8x128xf32> to vector<8x128xbf16>
    %cst_54 = arith.constant dense<0.000000e+00> : vector<8x512xf32>
    %252 = tpu.matmul %251, %50, %cst_54 {dimension_numbers = #tpu.dot_dimension_numbers<[1], [0], [0], [1], [0, 0, 1, 1], [], []>} : vector<8x128xbf16>, vector<128x512xbf16>, vector<8x512xf32> -> vector<8x512xf32>
    %253 = arith.addf %46, %252 : vector<8x512xf32>
    %254 = vector.extract_strided_slice %253 {offsets = [0, 0], sizes = [8, 128], strides = [1, 1]} : vector<8x512xf32> to vector<8x128xf32>
    %255 = arith.negf %254 : vector<8x128xf32>
    %256 = math.exp %255 : vector<8x128xf32>
    %cst_55 = arith.constant 1.000000e+00 : f32
    %257 = vector.broadcast %cst_55 : f32 to vector<8x128xf32>
    %258 = arith.addf %257, %256 : vector<8x128xf32>
    %259 = arith.divf %257, %258 : vector<8x128xf32>
    %260 = vector.extract_strided_slice %253 {offsets = [0, 128], sizes = [8, 128], strides = [1, 1]} : vector<8x512xf32> to vector<8x128xf32>
    %261 = arith.negf %260 : vector<8x128xf32>
    %262 = math.exp %261 : vector<8x128xf32>
    %cst_56 = arith.constant 1.000000e+00 : f32
    %263 = vector.broadcast %cst_56 : f32 to vector<8x128xf32>
    %264 = arith.addf %263, %262 : vector<8x128xf32>
    %265 = arith.divf %263, %264 : vector<8x128xf32>
    %266 = vector.extract_strided_slice %253 {offsets = [0, 256], sizes = [8, 128], strides = [1, 1]} : vector<8x512xf32> to vector<8x128xf32>
    %267 = math.tanh %266 : vector<8x128xf32>
    %268 = vector.extract_strided_slice %253 {offsets = [0, 384], sizes = [8, 128], strides = [1, 1]} : vector<8x512xf32> to vector<8x128xf32>
    %269 = arith.negf %268 : vector<8x128xf32>
    %270 = math.exp %269 : vector<8x128xf32>
    %cst_57 = arith.constant 1.000000e+00 : f32
    %271 = vector.broadcast %cst_57 : f32 to vector<8x128xf32>
    %272 = arith.addf %271, %270 : vector<8x128xf32>
    %273 = arith.divf %271, %272 : vector<8x128xf32>
    %274 = arith.mulf %265, %243 : vector<8x128xf32>
    %275 = arith.mulf %259, %267 : vector<8x128xf32>
    %276 = arith.addf %274, %275 : vector<8x128xf32>
    %277 = math.tanh %276 : vector<8x128xf32>
    %278 = arith.mulf %273, %277 : vector<8x128xf32>
    %279 = arith.truncf %278 : vector<8x128xf32> to vector<8x128xbf16>
    %280 = vector.extract_strided_slice %279 {offsets = [0, 0], sizes = [8, 64], strides = [1, 1]} : vector<8x128xbf16> to vector<8x64xbf16>
    %c48_58 = arith.constant 48 : index
    %c0_59 = arith.constant 0 : index
    %281 = vector.load %arg11[%c48_58, %c0_59] : memref<64x128xbf16, #tpu.memory_space<vmem>>, vector<8x64xbf16>
    tpu.vector_store %arg11[%c48_58, %c0_59], %280 {strides = array<i32>} : memref<64x128xbf16, #tpu.memory_space<vmem>>, vector<8x64xbf16>,
    %282 = vector.extract_strided_slice %279 {offsets = [0, 64], sizes = [8, 64], strides = [1, 1]} : vector<8x128xbf16> to vector<8x64xbf16>
    %c8_60 = arith.constant 8 : index
    %c64_61 = arith.constant 64 : index
    %283 = vector.load %arg11[%c8_60, %c64_61] : memref<64x128xbf16, #tpu.memory_space<vmem>>, vector<8x64xbf16>
    tpu.vector_store %arg11[%c8_60, %c64_61], %282 {strides = array<i32>} : memref<64x128xbf16, #tpu.memory_space<vmem>>, vector<8x64xbf16>,
    %284 = arith.truncf %278 : vector<8x128xf32> to vector<8x128xbf16>
    %cst_62 = arith.constant dense<0.000000e+00> : vector<8x512xf32>
    %285 = tpu.matmul %284, %50, %cst_62 {dimension_numbers = #tpu.dot_dimension_numbers<[1], [0], [0], [1], [0, 0, 1, 1], [], []>} : vector<8x128xbf16>, vector<128x512xbf16>, vector<8x512xf32> -> vector<8x512xf32>
    %286 = arith.addf %49, %285 : vector<8x512xf32>
    %287 = vector.extract_strided_slice %286 {offsets = [0, 0], sizes = [8, 128], strides = [1, 1]} : vector<8x512xf32> to vector<8x128xf32>
    %288 = arith.negf %287 : vector<8x128xf32>
    %289 = math.exp %288 : vector<8x128xf32>
    %cst_63 = arith.constant 1.000000e+00 : f32
    %290 = vector.broadcast %cst_63 : f32 to vector<8x128xf32>
    %291 = arith.addf %290, %289 : vector<8x128xf32>
    %292 = arith.divf %290, %291 : vector<8x128xf32>
    %293 = vector.extract_strided_slice %286 {offsets = [0, 128], sizes = [8, 128], strides = [1, 1]} : vector<8x512xf32> to vector<8x128xf32>
    %294 = arith.negf %293 : vector<8x128xf32>
    %295 = math.exp %294 : vector<8x128xf32>
    %cst_64 = arith.constant 1.000000e+00 : f32
    %296 = vector.broadcast %cst_64 : f32 to vector<8x128xf32>
    %297 = arith.addf %296, %295 : vector<8x128xf32>
    %298 = arith.divf %296, %297 : vector<8x128xf32>
    %299 = vector.extract_strided_slice %286 {offsets = [0, 256], sizes = [8, 128], strides = [1, 1]} : vector<8x512xf32> to vector<8x128xf32>
    %300 = math.tanh %299 : vector<8x128xf32>
    %301 = vector.extract_strided_slice %286 {offsets = [0, 384], sizes = [8, 128], strides = [1, 1]} : vector<8x512xf32> to vector<8x128xf32>
    %302 = arith.negf %301 : vector<8x128xf32>
    %303 = math.exp %302 : vector<8x128xf32>
    %cst_65 = arith.constant 1.000000e+00 : f32
    %304 = vector.broadcast %cst_65 : f32 to vector<8x128xf32>
    %305 = arith.addf %304, %303 : vector<8x128xf32>
    %306 = arith.divf %304, %305 : vector<8x128xf32>
    %307 = arith.mulf %298, %276 : vector<8x128xf32>
    %308 = arith.mulf %292, %300 : vector<8x128xf32>
    %309 = arith.addf %307, %308 : vector<8x128xf32>
    %310 = math.tanh %309 : vector<8x128xf32>
    %311 = arith.mulf %306, %310 : vector<8x128xf32>
    %312 = arith.truncf %311 : vector<8x128xf32> to vector<8x128xbf16>
    %313 = vector.extract_strided_slice %312 {offsets = [0, 0], sizes = [8, 64], strides = [1, 1]} : vector<8x128xbf16> to vector<8x64xbf16>
    %c56_66 = arith.constant 56 : index
    %c0_67 = arith.constant 0 : index
    %314 = vector.load %arg11[%c56_66, %c0_67] : memref<64x128xbf16, #tpu.memory_space<vmem>>, vector<8x64xbf16>
    tpu.vector_store %arg11[%c56_66, %c0_67], %313 {strides = array<i32>} : memref<64x128xbf16, #tpu.memory_space<vmem>>, vector<8x64xbf16>,
    %315 = vector.extract_strided_slice %312 {offsets = [0, 64], sizes = [8, 64], strides = [1, 1]} : vector<8x128xbf16> to vector<8x64xbf16>
    %c0_68 = arith.constant 0 : index
    %c64_69 = arith.constant 64 : index
    %316 = vector.load %arg11[%c0_68, %c64_69] : memref<64x128xbf16, #tpu.memory_space<vmem>>, vector<8x64xbf16>
    tpu.vector_store %arg11[%c0_68, %c64_69], %315 {strides = array<i32>} : memref<64x128xbf16, #tpu.memory_space<vmem>>, vector<8x64xbf16>,
    %c0_70 = arith.constant 0 : index
    %c0_71 = arith.constant 0 : index
    %317 = vector.load %arg11[%c0_70, %c0_71] : memref<64x128xbf16, #tpu.memory_space<vmem>>, vector<64x128xbf16>
    %c0_72 = arith.constant 0 : index
    %c0_73 = arith.constant 0 : index
    %318 = vector.load %arg5[%c0_72, %c0_73] : memref<128x512xbf16, #tpu.memory_space<vmem>>, vector<128x512xbf16>
    %cst_74 = arith.constant dense<0.000000e+00> : vector<64x512xf32>
    %319 = tpu.matmul %317, %318, %cst_74 {dimension_numbers = #tpu.dot_dimension_numbers<[1], [0], [0], [1], [0, 0, 1, 1], [], []>} : vector<64x128xbf16>, vector<128x512xbf16>, vector<64x512xf32> -> vector<64x512xf32>
    %c0_75 = arith.constant 0 : index
    %c0_76 = arith.constant 0 : index
    %320 = vector.load %arg7[%c0_75, %c0_76] : memref<1x512xf32, #tpu.memory_space<vmem>>, vector<1x512xf32>
    %321 = vector.broadcast %320 : vector<1x512xf32> to vector<64x512xf32>
    %322 = arith.addf %319, %321 : vector<64x512xf32>
    %323 = vector.extract_strided_slice %322 {offsets = [0, 0], sizes = [8, 512], strides = [1, 1]} : vector<64x512xf32> to vector<8x512xf32>
    %324 = vector.extract_strided_slice %322 {offsets = [56, 0], sizes = [8, 512], strides = [1, 1]} : vector<64x512xf32> to vector<8x512xf32>
    %325 = arith.select %19, %323, %324 : vector<8x512xi1>, vector<8x512xf32>
    %326 = vector.extract_strided_slice %322 {offsets = [8, 0], sizes = [8, 512], strides = [1, 1]} : vector<64x512xf32> to vector<8x512xf32>
    %327 = vector.extract_strided_slice %322 {offsets = [48, 0], sizes = [8, 512], strides = [1, 1]} : vector<64x512xf32> to vector<8x512xf32>
    %328 = arith.select %19, %326, %327 : vector<8x512xi1>, vector<8x512xf32>
    %329 = vector.extract_strided_slice %322 {offsets = [16, 0], sizes = [8, 512], strides = [1, 1]} : vector<64x512xf32> to vector<8x512xf32>
    %330 = vector.extract_strided_slice %322 {offsets = [40, 0], sizes = [8, 512], strides = [1, 1]} : vector<64x512xf32> to vector<8x512xf32>
    %331 = arith.select %19, %329, %330 : vector<8x512xi1>, vector<8x512xf32>
    %332 = vector.extract_strided_slice %322 {offsets = [24, 0], sizes = [8, 512], strides = [1, 1]} : vector<64x512xf32> to vector<8x512xf32>
    %333 = vector.extract_strided_slice %322 {offsets = [32, 0], sizes = [8, 512], strides = [1, 1]} : vector<64x512xf32> to vector<8x512xf32>
    %334 = arith.select %19, %332, %333 : vector<8x512xi1>, vector<8x512xf32>
    %335 = vector.extract_strided_slice %322 {offsets = [32, 0], sizes = [8, 512], strides = [1, 1]} : vector<64x512xf32> to vector<8x512xf32>
    %336 = vector.extract_strided_slice %322 {offsets = [24, 0], sizes = [8, 512], strides = [1, 1]} : vector<64x512xf32> to vector<8x512xf32>
    %337 = arith.select %19, %335, %336 : vector<8x512xi1>, vector<8x512xf32>
    %338 = vector.extract_strided_slice %322 {offsets = [40, 0], sizes = [8, 512], strides = [1, 1]} : vector<64x512xf32> to vector<8x512xf32>
    %339 = vector.extract_strided_slice %322 {offsets = [16, 0], sizes = [8, 512], strides = [1, 1]} : vector<64x512xf32> to vector<8x512xf32>
    %340 = arith.select %19, %338, %339 : vector<8x512xi1>, vector<8x512xf32>
    %341 = vector.extract_strided_slice %322 {offsets = [48, 0], sizes = [8, 512], strides = [1, 1]} : vector<64x512xf32> to vector<8x512xf32>
    %342 = vector.extract_strided_slice %322 {offsets = [8, 0], sizes = [8, 512], strides = [1, 1]} : vector<64x512xf32> to vector<8x512xf32>
    %343 = arith.select %19, %341, %342 : vector<8x512xi1>, vector<8x512xf32>
    %344 = vector.extract_strided_slice %322 {offsets = [56, 0], sizes = [8, 512], strides = [1, 1]} : vector<64x512xf32> to vector<8x512xf32>
    %345 = vector.extract_strided_slice %322 {offsets = [0, 0], sizes = [8, 512], strides = [1, 1]} : vector<64x512xf32> to vector<8x512xf32>
    %346 = arith.select %19, %344, %345 : vector<8x512xi1>, vector<8x512xf32>
    %c0_77 = arith.constant 0 : index
    %c0_78 = arith.constant 0 : index
    %347 = vector.load %arg6[%c0_77, %c0_78] : memref<128x512xbf16, #tpu.memory_space<vmem>>, vector<128x512xbf16>
    %cst_79 = arith.constant 0.000000e+00 : f32
    %348 = vector.broadcast %cst_79 : f32 to vector<8x128xf32>
    %cst_80 = arith.constant 0.000000e+00 : f32
    %349 = vector.broadcast %cst_80 : f32 to vector<8x128xf32>
    %cst_81 = arith.constant 0.000000e+00 : f32
    %350 = vector.broadcast %cst_81 : f32 to vector<8x64xf32>
    %351 = arith.truncf %348 : vector<8x128xf32> to vector<8x128xbf16>
    %cst_82 = arith.constant dense<0.000000e+00> : vector<8x512xf32>
    %352 = tpu.matmul %351, %347, %cst_82 {dimension_numbers = #tpu.dot_dimension_numbers<[1], [0], [0], [1], [0, 0, 1, 1], [], []>} : vector<8x128xbf16>, vector<128x512xbf16>, vector<8x512xf32> -> vector<8x512xf32>
    %353 = arith.addf %325, %352 : vector<8x512xf32>
    %354 = vector.extract_strided_slice %353 {offsets = [0, 0], sizes = [8, 128], strides = [1, 1]} : vector<8x512xf32> to vector<8x128xf32>
    %355 = arith.negf %354 : vector<8x128xf32>
    %356 = math.exp %355 : vector<8x128xf32>
    %cst_83 = arith.constant 1.000000e+00 : f32
    %357 = vector.broadcast %cst_83 : f32 to vector<8x128xf32>
    %358 = arith.addf %357, %356 : vector<8x128xf32>
    %359 = arith.divf %357, %358 : vector<8x128xf32>
    %360 = vector.extract_strided_slice %353 {offsets = [0, 128], sizes = [8, 128], strides = [1, 1]} : vector<8x512xf32> to vector<8x128xf32>
    %361 = arith.negf %360 : vector<8x128xf32>
    %362 = math.exp %361 : vector<8x128xf32>
    %cst_84 = arith.constant 1.000000e+00 : f32
    %363 = vector.broadcast %cst_84 : f32 to vector<8x128xf32>
    %364 = arith.addf %363, %362 : vector<8x128xf32>
    %365 = arith.divf %363, %364 : vector<8x128xf32>
    %366 = vector.extract_strided_slice %353 {offsets = [0, 256], sizes = [8, 128], strides = [1, 1]} : vector<8x512xf32> to vector<8x128xf32>
    %367 = math.tanh %366 : vector<8x128xf32>
    %368 = vector.extract_strided_slice %353 {offsets = [0, 384], sizes = [8, 128], strides = [1, 1]} : vector<8x512xf32> to vector<8x128xf32>
    %369 = arith.negf %368 : vector<8x128xf32>
    %370 = math.exp %369 : vector<8x128xf32>
    %cst_85 = arith.constant 1.000000e+00 : f32
    %371 = vector.broadcast %cst_85 : f32 to vector<8x128xf32>
    %372 = arith.addf %371, %370 : vector<8x128xf32>
    %373 = arith.divf %371, %372 : vector<8x128xf32>
    %374 = arith.mulf %365, %349 : vector<8x128xf32>
    %375 = arith.mulf %359, %367 : vector<8x128xf32>
    %376 = arith.addf %374, %375 : vector<8x128xf32>
    %377 = math.tanh %376 : vector<8x128xf32>
    %378 = arith.mulf %373, %377 : vector<8x128xf32>
    %c1_i32_86 = arith.constant 1 : i32
    %379 = vector.broadcast %c1_i32_86 : i32 to vector<8x1xi32>
    %380 = arith.cmpi eq, %0, %379 : vector<8x1xi32>
    %381 = vector.extract_strided_slice %378 {offsets = [0, 0], sizes = [8, 64], strides = [1, 1]} : vector<8x128xf32> to vector<8x64xf32>
    %382 = vector.shape_cast %380 : vector<8x1xi1> to vector<8x1xi1>
    %383 = vector.broadcast %382 : vector<8x1xi1> to vector<8x64xi1>
    %384 = arith.select %383, %381, %350 : vector<8x64xi1>, vector<8x64xf32>
    %385 = arith.truncf %378 : vector<8x128xf32> to vector<8x128xbf16>
    %cst_87 = arith.constant dense<0.000000e+00> : vector<8x512xf32>
    %386 = tpu.matmul %385, %347, %cst_87 {dimension_numbers = #tpu.dot_dimension_numbers<[1], [0], [0], [1], [0, 0, 1, 1], [], []>} : vector<8x128xbf16>, vector<128x512xbf16>, vector<8x512xf32> -> vector<8x512xf32>
    %387 = arith.addf %328, %386 : vector<8x512xf32>
    %388 = vector.extract_strided_slice %387 {offsets = [0, 0], sizes = [8, 128], strides = [1, 1]} : vector<8x512xf32> to vector<8x128xf32>
    %389 = arith.negf %388 : vector<8x128xf32>
    %390 = math.exp %389 : vector<8x128xf32>
    %cst_88 = arith.constant 1.000000e+00 : f32
    %391 = vector.broadcast %cst_88 : f32 to vector<8x128xf32>
    %392 = arith.addf %391, %390 : vector<8x128xf32>
    %393 = arith.divf %391, %392 : vector<8x128xf32>
    %394 = vector.extract_strided_slice %387 {offsets = [0, 128], sizes = [8, 128], strides = [1, 1]} : vector<8x512xf32> to vector<8x128xf32>
    %395 = arith.negf %394 : vector<8x128xf32>
    %396 = math.exp %395 : vector<8x128xf32>
    %cst_89 = arith.constant 1.000000e+00 : f32
    %397 = vector.broadcast %cst_89 : f32 to vector<8x128xf32>
    %398 = arith.addf %397, %396 : vector<8x128xf32>
    %399 = arith.divf %397, %398 : vector<8x128xf32>
    %400 = vector.extract_strided_slice %387 {offsets = [0, 256], sizes = [8, 128], strides = [1, 1]} : vector<8x512xf32> to vector<8x128xf32>
    %401 = math.tanh %400 : vector<8x128xf32>
    %402 = vector.extract_strided_slice %387 {offsets = [0, 384], sizes = [8, 128], strides = [1, 1]} : vector<8x512xf32> to vector<8x128xf32>
    %403 = arith.negf %402 : vector<8x128xf32>
    %404 = math.exp %403 : vector<8x128xf32>
    %cst_90 = arith.constant 1.000000e+00 : f32
    %405 = vector.broadcast %cst_90 : f32 to vector<8x128xf32>
    %406 = arith.addf %405, %404 : vector<8x128xf32>
    %407 = arith.divf %405, %406 : vector<8x128xf32>
    %408 = arith.mulf %399, %376 : vector<8x128xf32>
    %409 = arith.mulf %393, %401 : vector<8x128xf32>
    %410 = arith.addf %408, %409 : vector<8x128xf32>
    %411 = math.tanh %410 : vector<8x128xf32>
    %412 = arith.mulf %407, %411 : vector<8x128xf32>
    %c2_i32 = arith.constant 2 : i32
    %413 = vector.broadcast %c2_i32 : i32 to vector<8x1xi32>
    %414 = arith.cmpi eq, %0, %413 : vector<8x1xi32>
    %415 = vector.extract_strided_slice %412 {offsets = [0, 0], sizes = [8, 64], strides = [1, 1]} : vector<8x128xf32> to vector<8x64xf32>
    %416 = vector.shape_cast %414 : vector<8x1xi1> to vector<8x1xi1>
    %417 = vector.broadcast %416 : vector<8x1xi1> to vector<8x64xi1>
    %418 = arith.select %417, %415, %384 : vector<8x64xi1>, vector<8x64xf32>
    %419 = arith.truncf %412 : vector<8x128xf32> to vector<8x128xbf16>
    %cst_91 = arith.constant dense<0.000000e+00> : vector<8x512xf32>
    %420 = tpu.matmul %419, %347, %cst_91 {dimension_numbers = #tpu.dot_dimension_numbers<[1], [0], [0], [1], [0, 0, 1, 1], [], []>} : vector<8x128xbf16>, vector<128x512xbf16>, vector<8x512xf32> -> vector<8x512xf32>
    %421 = arith.addf %331, %420 : vector<8x512xf32>
    %422 = vector.extract_strided_slice %421 {offsets = [0, 0], sizes = [8, 128], strides = [1, 1]} : vector<8x512xf32> to vector<8x128xf32>
    %423 = arith.negf %422 : vector<8x128xf32>
    %424 = math.exp %423 : vector<8x128xf32>
    %cst_92 = arith.constant 1.000000e+00 : f32
    %425 = vector.broadcast %cst_92 : f32 to vector<8x128xf32>
    %426 = arith.addf %425, %424 : vector<8x128xf32>
    %427 = arith.divf %425, %426 : vector<8x128xf32>
    %428 = vector.extract_strided_slice %421 {offsets = [0, 128], sizes = [8, 128], strides = [1, 1]} : vector<8x512xf32> to vector<8x128xf32>
    %429 = arith.negf %428 : vector<8x128xf32>
    %430 = math.exp %429 : vector<8x128xf32>
    %cst_93 = arith.constant 1.000000e+00 : f32
    %431 = vector.broadcast %cst_93 : f32 to vector<8x128xf32>
    %432 = arith.addf %431, %430 : vector<8x128xf32>
    %433 = arith.divf %431, %432 : vector<8x128xf32>
    %434 = vector.extract_strided_slice %421 {offsets = [0, 256], sizes = [8, 128], strides = [1, 1]} : vector<8x512xf32> to vector<8x128xf32>
    %435 = math.tanh %434 : vector<8x128xf32>
    %436 = vector.extract_strided_slice %421 {offsets = [0, 384], sizes = [8, 128], strides = [1, 1]} : vector<8x512xf32> to vector<8x128xf32>
    %437 = arith.negf %436 : vector<8x128xf32>
    %438 = math.exp %437 : vector<8x128xf32>
    %cst_94 = arith.constant 1.000000e+00 : f32
    %439 = vector.broadcast %cst_94 : f32 to vector<8x128xf32>
    %440 = arith.addf %439, %438 : vector<8x128xf32>
    %441 = arith.divf %439, %440 : vector<8x128xf32>
    %442 = arith.mulf %433, %410 : vector<8x128xf32>
    %443 = arith.mulf %427, %435 : vector<8x128xf32>
    %444 = arith.addf %442, %443 : vector<8x128xf32>
    %445 = math.tanh %444 : vector<8x128xf32>
    %446 = arith.mulf %441, %445 : vector<8x128xf32>
    %c3_i32 = arith.constant 3 : i32
    %447 = vector.broadcast %c3_i32 : i32 to vector<8x1xi32>
    %448 = arith.cmpi eq, %0, %447 : vector<8x1xi32>
    %449 = vector.extract_strided_slice %446 {offsets = [0, 0], sizes = [8, 64], strides = [1, 1]} : vector<8x128xf32> to vector<8x64xf32>
    %450 = vector.shape_cast %448 : vector<8x1xi1> to vector<8x1xi1>
    %451 = vector.broadcast %450 : vector<8x1xi1> to vector<8x64xi1>
    %452 = arith.select %451, %449, %418 : vector<8x64xi1>, vector<8x64xf32>
    %453 = arith.truncf %446 : vector<8x128xf32> to vector<8x128xbf16>
    %cst_95 = arith.constant dense<0.000000e+00> : vector<8x512xf32>
    %454 = tpu.matmul %453, %347, %cst_95 {dimension_numbers = #tpu.dot_dimension_numbers<[1], [0], [0], [1], [0, 0, 1, 1], [], []>} : vector<8x128xbf16>, vector<128x512xbf16>, vector<8x512xf32> -> vector<8x512xf32>
    %455 = arith.addf %334, %454 : vector<8x512xf32>
    %456 = vector.extract_strided_slice %455 {offsets = [0, 0], sizes = [8, 128], strides = [1, 1]} : vector<8x512xf32> to vector<8x128xf32>
    %457 = arith.negf %456 : vector<8x128xf32>
    %458 = math.exp %457 : vector<8x128xf32>
    %cst_96 = arith.constant 1.000000e+00 : f32
    %459 = vector.broadcast %cst_96 : f32 to vector<8x128xf32>
    %460 = arith.addf %459, %458 : vector<8x128xf32>
    %461 = arith.divf %459, %460 : vector<8x128xf32>
    %462 = vector.extract_strided_slice %455 {offsets = [0, 128], sizes = [8, 128], strides = [1, 1]} : vector<8x512xf32> to vector<8x128xf32>
    %463 = arith.negf %462 : vector<8x128xf32>
    %464 = math.exp %463 : vector<8x128xf32>
    %cst_97 = arith.constant 1.000000e+00 : f32
    %465 = vector.broadcast %cst_97 : f32 to vector<8x128xf32>
    %466 = arith.addf %465, %464 : vector<8x128xf32>
    %467 = arith.divf %465, %466 : vector<8x128xf32>
    %468 = vector.extract_strided_slice %455 {offsets = [0, 256], sizes = [8, 128], strides = [1, 1]} : vector<8x512xf32> to vector<8x128xf32>
    %469 = math.tanh %468 : vector<8x128xf32>
    %470 = vector.extract_strided_slice %455 {offsets = [0, 384], sizes = [8, 128], strides = [1, 1]} : vector<8x512xf32> to vector<8x128xf32>
    %471 = arith.negf %470 : vector<8x128xf32>
    %472 = math.exp %471 : vector<8x128xf32>
    %cst_98 = arith.constant 1.000000e+00 : f32
    %473 = vector.broadcast %cst_98 : f32 to vector<8x128xf32>
    %474 = arith.addf %473, %472 : vector<8x128xf32>
    %475 = arith.divf %473, %474 : vector<8x128xf32>
    %476 = arith.mulf %467, %444 : vector<8x128xf32>
    %477 = arith.mulf %461, %469 : vector<8x128xf32>
    %478 = arith.addf %476, %477 : vector<8x128xf32>
    %479 = math.tanh %478 : vector<8x128xf32>
    %480 = arith.mulf %475, %479 : vector<8x128xf32>
    %c4_i32 = arith.constant 4 : i32
    %481 = vector.broadcast %c4_i32 : i32 to vector<8x1xi32>
    %482 = arith.cmpi eq, %0, %481 : vector<8x1xi32>
    %483 = vector.extract_strided_slice %480 {offsets = [0, 0], sizes = [8, 64], strides = [1, 1]} : vector<8x128xf32> to vector<8x64xf32>
    %484 = vector.shape_cast %482 : vector<8x1xi1> to vector<8x1xi1>
    %485 = vector.broadcast %484 : vector<8x1xi1> to vector<8x64xi1>
    %486 = arith.select %485, %483, %452 : vector<8x64xi1>, vector<8x64xf32>
    %487 = arith.truncf %480 : vector<8x128xf32> to vector<8x128xbf16>
    %cst_99 = arith.constant dense<0.000000e+00> : vector<8x512xf32>
    %488 = tpu.matmul %487, %347, %cst_99 {dimension_numbers = #tpu.dot_dimension_numbers<[1], [0], [0], [1], [0, 0, 1, 1], [], []>} : vector<8x128xbf16>, vector<128x512xbf16>, vector<8x512xf32> -> vector<8x512xf32>
    %489 = arith.addf %337, %488 : vector<8x512xf32>
    %490 = vector.extract_strided_slice %489 {offsets = [0, 0], sizes = [8, 128], strides = [1, 1]} : vector<8x512xf32> to vector<8x128xf32>
    %491 = arith.negf %490 : vector<8x128xf32>
    %492 = math.exp %491 : vector<8x128xf32>
    %cst_100 = arith.constant 1.000000e+00 : f32
    %493 = vector.broadcast %cst_100 : f32 to vector<8x128xf32>
    %494 = arith.addf %493, %492 : vector<8x128xf32>
    %495 = arith.divf %493, %494 : vector<8x128xf32>
    %496 = vector.extract_strided_slice %489 {offsets = [0, 128], sizes = [8, 128], strides = [1, 1]} : vector<8x512xf32> to vector<8x128xf32>
    %497 = arith.negf %496 : vector<8x128xf32>
    %498 = math.exp %497 : vector<8x128xf32>
    %cst_101 = arith.constant 1.000000e+00 : f32
    %499 = vector.broadcast %cst_101 : f32 to vector<8x128xf32>
    %500 = arith.addf %499, %498 : vector<8x128xf32>
    %501 = arith.divf %499, %500 : vector<8x128xf32>
    %502 = vector.extract_strided_slice %489 {offsets = [0, 256], sizes = [8, 128], strides = [1, 1]} : vector<8x512xf32> to vector<8x128xf32>
    %503 = math.tanh %502 : vector<8x128xf32>
    %504 = vector.extract_strided_slice %489 {offsets = [0, 384], sizes = [8, 128], strides = [1, 1]} : vector<8x512xf32> to vector<8x128xf32>
    %505 = arith.negf %504 : vector<8x128xf32>
    %506 = math.exp %505 : vector<8x128xf32>
    %cst_102 = arith.constant 1.000000e+00 : f32
    %507 = vector.broadcast %cst_102 : f32 to vector<8x128xf32>
    %508 = arith.addf %507, %506 : vector<8x128xf32>
    %509 = arith.divf %507, %508 : vector<8x128xf32>
    %510 = arith.mulf %501, %478 : vector<8x128xf32>
    %511 = arith.mulf %495, %503 : vector<8x128xf32>
    %512 = arith.addf %510, %511 : vector<8x128xf32>
    %513 = math.tanh %512 : vector<8x128xf32>
    %514 = arith.mulf %509, %513 : vector<8x128xf32>
    %c5_i32 = arith.constant 5 : i32
    %515 = vector.broadcast %c5_i32 : i32 to vector<8x1xi32>
    %516 = arith.cmpi eq, %0, %515 : vector<8x1xi32>
    %517 = vector.extract_strided_slice %514 {offsets = [0, 0], sizes = [8, 64], strides = [1, 1]} : vector<8x128xf32> to vector<8x64xf32>
    %518 = vector.shape_cast %516 : vector<8x1xi1> to vector<8x1xi1>
    %519 = vector.broadcast %518 : vector<8x1xi1> to vector<8x64xi1>
    %520 = arith.select %519, %517, %486 : vector<8x64xi1>, vector<8x64xf32>
    %521 = arith.truncf %514 : vector<8x128xf32> to vector<8x128xbf16>
    %cst_103 = arith.constant dense<0.000000e+00> : vector<8x512xf32>
    %522 = tpu.matmul %521, %347, %cst_103 {dimension_numbers = #tpu.dot_dimension_numbers<[1], [0], [0], [1], [0, 0, 1, 1], [], []>} : vector<8x128xbf16>, vector<128x512xbf16>, vector<8x512xf32> -> vector<8x512xf32>
    %523 = arith.addf %340, %522 : vector<8x512xf32>
    %524 = vector.extract_strided_slice %523 {offsets = [0, 0], sizes = [8, 128], strides = [1, 1]} : vector<8x512xf32> to vector<8x128xf32>
    %525 = arith.negf %524 : vector<8x128xf32>
    %526 = math.exp %525 : vector<8x128xf32>
    %cst_104 = arith.constant 1.000000e+00 : f32
    %527 = vector.broadcast %cst_104 : f32 to vector<8x128xf32>
    %528 = arith.addf %527, %526 : vector<8x128xf32>
    %529 = arith.divf %527, %528 : vector<8x128xf32>
    %530 = vector.extract_strided_slice %523 {offsets = [0, 128], sizes = [8, 128], strides = [1, 1]} : vector<8x512xf32> to vector<8x128xf32>
    %531 = arith.negf %530 : vector<8x128xf32>
    %532 = math.exp %531 : vector<8x128xf32>
    %cst_105 = arith.constant 1.000000e+00 : f32
    %533 = vector.broadcast %cst_105 : f32 to vector<8x128xf32>
    %534 = arith.addf %533, %532 : vector<8x128xf32>
    %535 = arith.divf %533, %534 : vector<8x128xf32>
    %536 = vector.extract_strided_slice %523 {offsets = [0, 256], sizes = [8, 128], strides = [1, 1]} : vector<8x512xf32> to vector<8x128xf32>
    %537 = math.tanh %536 : vector<8x128xf32>
    %538 = vector.extract_strided_slice %523 {offsets = [0, 384], sizes = [8, 128], strides = [1, 1]} : vector<8x512xf32> to vector<8x128xf32>
    %539 = arith.negf %538 : vector<8x128xf32>
    %540 = math.exp %539 : vector<8x128xf32>
    %cst_106 = arith.constant 1.000000e+00 : f32
    %541 = vector.broadcast %cst_106 : f32 to vector<8x128xf32>
    %542 = arith.addf %541, %540 : vector<8x128xf32>
    %543 = arith.divf %541, %542 : vector<8x128xf32>
    %544 = arith.mulf %535, %512 : vector<8x128xf32>
    %545 = arith.mulf %529, %537 : vector<8x128xf32>
    %546 = arith.addf %544, %545 : vector<8x128xf32>
    %547 = math.tanh %546 : vector<8x128xf32>
    %548 = arith.mulf %543, %547 : vector<8x128xf32>
    %c6_i32 = arith.constant 6 : i32
    %549 = vector.broadcast %c6_i32 : i32 to vector<8x1xi32>
    %550 = arith.cmpi eq, %0, %549 : vector<8x1xi32>
    %551 = vector.extract_strided_slice %548 {offsets = [0, 0], sizes = [8, 64], strides = [1, 1]} : vector<8x128xf32> to vector<8x64xf32>
    %552 = vector.shape_cast %550 : vector<8x1xi1> to vector<8x1xi1>
    %553 = vector.broadcast %552 : vector<8x1xi1> to vector<8x64xi1>
    %554 = arith.select %553, %551, %520 : vector<8x64xi1>, vector<8x64xf32>
    %555 = arith.truncf %548 : vector<8x128xf32> to vector<8x128xbf16>
    %cst_107 = arith.constant dense<0.000000e+00> : vector<8x512xf32>
    %556 = tpu.matmul %555, %347, %cst_107 {dimension_numbers = #tpu.dot_dimension_numbers<[1], [0], [0], [1], [0, 0, 1, 1], [], []>} : vector<8x128xbf16>, vector<128x512xbf16>, vector<8x512xf32> -> vector<8x512xf32>
    %557 = arith.addf %343, %556 : vector<8x512xf32>
    %558 = vector.extract_strided_slice %557 {offsets = [0, 0], sizes = [8, 128], strides = [1, 1]} : vector<8x512xf32> to vector<8x128xf32>
    %559 = arith.negf %558 : vector<8x128xf32>
    %560 = math.exp %559 : vector<8x128xf32>
    %cst_108 = arith.constant 1.000000e+00 : f32
    %561 = vector.broadcast %cst_108 : f32 to vector<8x128xf32>
    %562 = arith.addf %561, %560 : vector<8x128xf32>
    %563 = arith.divf %561, %562 : vector<8x128xf32>
    %564 = vector.extract_strided_slice %557 {offsets = [0, 128], sizes = [8, 128], strides = [1, 1]} : vector<8x512xf32> to vector<8x128xf32>
    %565 = arith.negf %564 : vector<8x128xf32>
    %566 = math.exp %565 : vector<8x128xf32>
    %cst_109 = arith.constant 1.000000e+00 : f32
    %567 = vector.broadcast %cst_109 : f32 to vector<8x128xf32>
    %568 = arith.addf %567, %566 : vector<8x128xf32>
    %569 = arith.divf %567, %568 : vector<8x128xf32>
    %570 = vector.extract_strided_slice %557 {offsets = [0, 256], sizes = [8, 128], strides = [1, 1]} : vector<8x512xf32> to vector<8x128xf32>
    %571 = math.tanh %570 : vector<8x128xf32>
    %572 = vector.extract_strided_slice %557 {offsets = [0, 384], sizes = [8, 128], strides = [1, 1]} : vector<8x512xf32> to vector<8x128xf32>
    %573 = arith.negf %572 : vector<8x128xf32>
    %574 = math.exp %573 : vector<8x128xf32>
    %cst_110 = arith.constant 1.000000e+00 : f32
    %575 = vector.broadcast %cst_110 : f32 to vector<8x128xf32>
    %576 = arith.addf %575, %574 : vector<8x128xf32>
    %577 = arith.divf %575, %576 : vector<8x128xf32>
    %578 = arith.mulf %569, %546 : vector<8x128xf32>
    %579 = arith.mulf %563, %571 : vector<8x128xf32>
    %580 = arith.addf %578, %579 : vector<8x128xf32>
    %581 = math.tanh %580 : vector<8x128xf32>
    %582 = arith.mulf %577, %581 : vector<8x128xf32>
    %c7_i32 = arith.constant 7 : i32
    %583 = vector.broadcast %c7_i32 : i32 to vector<8x1xi32>
    %584 = arith.cmpi eq, %0, %583 : vector<8x1xi32>
    %585 = vector.extract_strided_slice %582 {offsets = [0, 0], sizes = [8, 64], strides = [1, 1]} : vector<8x128xf32> to vector<8x64xf32>
    %586 = vector.shape_cast %584 : vector<8x1xi1> to vector<8x1xi1>
    %587 = vector.broadcast %586 : vector<8x1xi1> to vector<8x64xi1>
    %588 = arith.select %587, %585, %554 : vector<8x64xi1>, vector<8x64xf32>
    %589 = arith.truncf %582 : vector<8x128xf32> to vector<8x128xbf16>
    %cst_111 = arith.constant dense<0.000000e+00> : vector<8x512xf32>
    %590 = tpu.matmul %589, %347, %cst_111 {dimension_numbers = #tpu.dot_dimension_numbers<[1], [0], [0], [1], [0, 0, 1, 1], [], []>} : vector<8x128xbf16>, vector<128x512xbf16>, vector<8x512xf32> -> vector<8x512xf32>
    %591 = arith.addf %346, %590 : vector<8x512xf32>
    %592 = vector.extract_strided_slice %591 {offsets = [0, 0], sizes = [8, 128], strides = [1, 1]} : vector<8x512xf32> to vector<8x128xf32>
    %593 = arith.negf %592 : vector<8x128xf32>
    %594 = math.exp %593 : vector<8x128xf32>
    %cst_112 = arith.constant 1.000000e+00 : f32
    %595 = vector.broadcast %cst_112 : f32 to vector<8x128xf32>
    %596 = arith.addf %595, %594 : vector<8x128xf32>
    %597 = arith.divf %595, %596 : vector<8x128xf32>
    %598 = vector.extract_strided_slice %591 {offsets = [0, 128], sizes = [8, 128], strides = [1, 1]} : vector<8x512xf32> to vector<8x128xf32>
    %599 = arith.negf %598 : vector<8x128xf32>
    %600 = math.exp %599 : vector<8x128xf32>
    %cst_113 = arith.constant 1.000000e+00 : f32
    %601 = vector.broadcast %cst_113 : f32 to vector<8x128xf32>
    %602 = arith.addf %601, %600 : vector<8x128xf32>
    %603 = arith.divf %601, %602 : vector<8x128xf32>
    %604 = vector.extract_strided_slice %591 {offsets = [0, 256], sizes = [8, 128], strides = [1, 1]} : vector<8x512xf32> to vector<8x128xf32>
    %605 = math.tanh %604 : vector<8x128xf32>
    %606 = vector.extract_strided_slice %591 {offsets = [0, 384], sizes = [8, 128], strides = [1, 1]} : vector<8x512xf32> to vector<8x128xf32>
    %607 = arith.negf %606 : vector<8x128xf32>
    %608 = math.exp %607 : vector<8x128xf32>
    %cst_114 = arith.constant 1.000000e+00 : f32
    %609 = vector.broadcast %cst_114 : f32 to vector<8x128xf32>
    %610 = arith.addf %609, %608 : vector<8x128xf32>
    %611 = arith.divf %609, %610 : vector<8x128xf32>
    %612 = arith.mulf %603, %580 : vector<8x128xf32>
    %613 = arith.mulf %597, %605 : vector<8x128xf32>
    %614 = arith.addf %612, %613 : vector<8x128xf32>
    %615 = math.tanh %614 : vector<8x128xf32>
    %616 = arith.mulf %611, %615 : vector<8x128xf32>
    %c8_i32 = arith.constant 8 : i32
    %617 = vector.broadcast %c8_i32 : i32 to vector<8x1xi32>
    %618 = arith.cmpi eq, %0, %617 : vector<8x1xi32>
    %619 = vector.extract_strided_slice %616 {offsets = [0, 0], sizes = [8, 64], strides = [1, 1]} : vector<8x128xf32> to vector<8x64xf32>
    %620 = vector.shape_cast %618 : vector<8x1xi1> to vector<8x1xi1>
    %621 = vector.broadcast %620 : vector<8x1xi1> to vector<8x64xi1>
    %622 = arith.select %621, %619, %588 : vector<8x64xi1>, vector<8x64xf32>
    %623 = vector.extract_strided_slice %616 {offsets = [0, 64], sizes = [8, 64], strides = [1, 1]} : vector<8x128xf32> to vector<8x64xf32>
    %624 = tpu.concatenate %622, %623 in 1 : vector<8x64xf32>, vector<8x64xf32> -> vector<8x128xf32>
    %625 = arith.truncf %624 : vector<8x128xf32> to vector<8x128xbf16>
    %c0_115 = arith.constant 0 : index
    %c0_116 = arith.constant 0 : index
    %626 = vector.load %arg8[%c0_115, %c0_116] : memref<128x10xbf16, #tpu.memory_space<vmem>>, vector<128x10xbf16>
    %cst_117 = arith.constant dense<0.000000e+00> : vector<8x10xf32>
    %627 = tpu.matmul %625, %626, %cst_117 {dimension_numbers = #tpu.dot_dimension_numbers<[1], [0], [0], [1], [0, 0, 1, 1], [], []>} : vector<8x128xbf16>, vector<128x10xbf16>, vector<8x10xf32> -> vector<8x10xf32>
    %c0_118 = arith.constant 0 : index
    %c0_119 = arith.constant 0 : index
    %628 = vector.load %arg9[%c0_118, %c0_119] : memref<1x10xf32, #tpu.memory_space<vmem>>, vector<1x10xf32>
    %629 = vector.broadcast %628 : vector<1x10xf32> to vector<8x10xf32>
    %630 = arith.addf %627, %629 : vector<8x10xf32>
    %c0_120 = arith.constant 0 : index
    %c0_121 = arith.constant 0 : index
    %631 = vector.load %arg10[%c0_120, %c0_121] : memref<8x10xf32, #tpu.memory_space<vmem>>, vector<8x10xf32>
    tpu.vector_store %arg10[%c0_120, %c0_121], %630 {strides = array<i32>} : memref<8x10xf32, #tpu.memory_space<vmem>>, vector<8x10xf32>,
    return
  }
}

</mosaic_0001>

<llo_original>
// kernel: basic_lstm_forward.1
$region0: #{basic_lstm_forward.1}
  #allocation0 [shape = 'u32[]', space=smem, size = 0x4, offset = 0x4, fixed_abs, tag = 'smem constant byte address 0x4 - core index']
  #allocation1 [shape = 'u32[144,128]{1,0:T(1,128)}', space=vmem, size = 0x12000, scoped, tag = 'internal scratch']
  #allocation2 [shape = 'bf16[64,128]{1,0:T(8,128)(2,1)}', space=vmem, size = 0x4000, scoped, tag = 'scratch operand']
  %s0 = inlined_call_operand.vmem [shape: bf16[64,16], index: 0, kind: input, shape index: {}]
  %s1 = inlined_call_operand.vmem [shape: s32[8,1], index: 1, kind: input, shape index: {}]
  %s2 = inlined_call_operand.vmem [shape: bf16[16,512], index: 2, kind: input, shape index: {}]
  %s3 = inlined_call_operand.hbm [shape: bf16[128,512], index: 3, kind: input, shape index: {}]
  %s4 = inlined_call_operand.vmem [shape: f32[1,512], index: 4, kind: input, shape index: {}]
  %s5 = inlined_call_operand.hbm [shape: bf16[128,512], index: 5, kind: input, shape index: {}]
  %s6 = inlined_call_operand.hbm [shape: bf16[128,512], index: 6, kind: input, shape index: {}]
  %s7 = inlined_call_operand.vmem [shape: f32[1,512], index: 7, kind: input, shape index: {}]
  %s8 = inlined_call_operand.vmem [shape: bf16[128,10], index: 8, kind: input, shape index: {}]
  %s9 = inlined_call_operand.vmem [shape: f32[1,10], index: 9, kind: input, shape index: {}]
  %s10 = inlined_call_operand.vmem [shape: f32[8,10], index: 10, kind: output, shape index: {}]
  %s11 = sld [smem:[#allocation0]]
  $region62: #{basic_lstm_forward.1} parent=0
    _
  %s13 = ssub.s32 1, %s11
  %s14 = scalar_select 0, %s13, %s11
  $region1: #{basic_lstm_forward.1} parent=0
    #allocation3 [shape = 'u8[131072]{0}', space=vmem, size = 0x20000, scoped, tag = 'input window, operand 3, single buffered']
    #allocation4 [shape = 's32[1]{0}', space=sflag, size = 0x4, scoped, tag = 'scoped memory for basic_lstm_forward.1']
    #allocation5 [shape = 'u8[131072]{0}', space=vmem, size = 0x20000, scoped, tag = 'input window, operand 5, single buffered']
    #allocation6 [shape = 's32[1]{0}', space=sflag, size = 0x4, scoped, tag = 'scoped memory for basic_lstm_forward.1']
    #allocation7 [shape = 'u8[131072]{0}', space=vmem, size = 0x20000, scoped, tag = 'input window, operand 6, single buffered']
    %15 = vsyncpa [#allocation4], 0
    %16 = vsyncpa [#allocation6], 0
    // Predicated region
    $region2: #{basic_lstm_forward.1} parent=1 // pred_check
      _
    $region3: #{basic_lstm_forward.1} parent=1 // pred_check_branch
      %18 = sbr.rel (0) target = $region5
    $region4: #{basic_lstm_forward.1} parent=1 // pred_region
      _
    $region5: #{basic_lstm_forward.1} parent=1 // pred_fallthru
      _
    // Predicated region
    $region6: #{basic_lstm_forward.1} parent=1 // pred_check
      _
    $region7: #{basic_lstm_forward.1} parent=1 // pred_check_branch
      %20 = sbr.rel (0) target = $region9
    $region8: #{basic_lstm_forward.1} parent=1 // pred_region
      _
    $region9: #{basic_lstm_forward.1} parent=1 // pred_fallthru
      _
    // Predicated region
    $region10: #{basic_lstm_forward.1} parent=1 // pred_check
      _
    $region11: #{basic_lstm_forward.1} parent=1 // pred_check_branch
      %22 = sbr.rel (0) target = $region13
    $region12: #{basic_lstm_forward.1} parent=1 // pred_region
      _
    $region13: #{basic_lstm_forward.1} parent=1 // pred_fallthru
      _
    // Predicated region
    $region14: #{basic_lstm_forward.1} parent=1 // pred_check
      _
    $region15: #{basic_lstm_forward.1} parent=1 // pred_check_branch
      %24 = sbr.rel (0) target = $region17
    $region16: #{basic_lstm_forward.1} parent=1 // pred_region
      %s26 = ssub.s32 4096, 4096
      %27 = vsyncadd [#allocation4], %s26
      %s28 = sshll.u32 [#allocation3], 4
      %s29 = int_to_ptr.vmem [resolvable:$true] %s28
      %34 = dma.hbm_to_vmem [thread:$0]  %s3, 4096, %s29, [#allocation4], 256, 256, 16
    $region17: #{basic_lstm_forward.1} parent=1 // pred_fallthru
      _
    // Predicated region
    $region18: #{basic_lstm_forward.1} parent=1 // pred_check
      _
    $region19: #{basic_lstm_forward.1} parent=1 // pred_check_branch
      %36 = sbr.rel (0) target = $region21
    $region20: #{basic_lstm_forward.1} parent=1 // pred_region
      _
    $region21: #{basic_lstm_forward.1} parent=1 // pred_fallthru
      _
    // Predicated region
    $region22: #{basic_lstm_forward.1} parent=1 // pred_check
      _
    $region23: #{basic_lstm_forward.1} parent=1 // pred_check_branch
      %38 = sbr.rel (0) target = $region25
    $region24: #{basic_lstm_forward.1} parent=1 // pred_region
      %s40 = ssub.s32 4096, 4096
      %41 = vsyncadd [#allocation6], %s40
      %s42 = sshll.u32 [#allocation5], 4
      %s43 = int_to_ptr.vmem [resolvable:$true] %s42
      %48 = dma.hbm_to_vmem [thread:$0]  %s5, 4096, %s43, [#allocation6], 256, 256, 16
    $region25: #{basic_lstm_forward.1} parent=1 // pred_fallthru
      _
    // Predicated region
    $region26: #{basic_lstm_forward.1} parent=1 // pred_check
      _
    $region27: #{basic_lstm_forward.1} parent=1 // pred_check_branch
      %50 = sbr.rel (0) target = $region29
    $region28: #{basic_lstm_forward.1} parent=1 // pred_region
      %s52 = ssub.s32 4096, 4096
      %53 = vsyncadd [#allocation6], %s52
      %s54 = sshll.u32 [#allocation7], 4
      %s55 = int_to_ptr.vmem [resolvable:$true] %s54
      %60 = dma.hbm_to_vmem [thread:$0]  %s6, 4096, %s55, [#allocation6], 256, 256, 16
    $region29: #{basic_lstm_forward.1} parent=1 // pred_fallthru
      _
    // Predicated region
    $region30: #{basic_lstm_forward.1} parent=1 // pred_check
      _
    $region31: #{basic_lstm_forward.1} parent=1 // pred_check_branch
      %62 = sbr.rel (0) target = $region33
    $region32: #{basic_lstm_forward.1} parent=1 // pred_region
      _
    $region33: #{basic_lstm_forward.1} parent=1 // pred_fallthru
      _
    // Predicated region
    $region34: #{basic_lstm_forward.1} parent=1 // pred_check
      _
    $region35: #{basic_lstm_forward.1} parent=1 // pred_check_branch
      %64 = sbr.rel (0) target = $region37
    $region36: #{basic_lstm_forward.1} parent=1 // pred_region
      _
    $region37: #{basic_lstm_forward.1} parent=1 // pred_fallthru
      _
    // Predicated region
    $region38: #{basic_lstm_forward.1} parent=1 // pred_check
      _
    $region39: #{basic_lstm_forward.1} parent=1 // pred_check_branch
      %66 = sbr.rel (0) target = $region41
    $region40: #{basic_lstm_forward.1} parent=1 // pred_region
      _
    $region41: #{basic_lstm_forward.1} parent=1 // pred_fallthru
      _
    // Predicated region
    $region42: #{basic_lstm_forward.1} parent=1 // pred_check
      _
    $region43: #{basic_lstm_forward.1} parent=1 // pred_check_branch
      %68 = sbr.rel (0) target = $region45
    $region44: #{basic_lstm_forward.1} parent=1 // pred_region
      %69 = dma.done [#allocation4], 4096
    $region45: #{basic_lstm_forward.1} parent=1 // pred_fallthru
      _
    // Predicated region
    $region46: #{basic_lstm_forward.1} parent=1 // pred_check
      _
    $region47: #{basic_lstm_forward.1} parent=1 // pred_check_branch
      %71 = sbr.rel (0) target = $region49
    $region48: #{basic_lstm_forward.1} parent=1 // pred_region
      %72 = dma.done [#allocation6], 4096
    $region49: #{basic_lstm_forward.1} parent=1 // pred_fallthru
      _
    // Predicated region
    $region50: #{basic_lstm_forward.1} parent=1 // pred_check
      _
    $region51: #{basic_lstm_forward.1} parent=1 // pred_check_branch
      %74 = sbr.rel (0) target = $region53
    $region52: #{basic_lstm_forward.1} parent=1 // pred_region
      %75 = dma.done [#allocation6], 4096
    $region53: #{basic_lstm_forward.1} parent=1 // pred_fallthru
      _
    %v77 = vld [vmem:[%s1] sm:$0xff]
    %v78 = vlaneseq
    %v79 = vand.u32 %v78, 127
    %v80 = vadd.s32 %v79, 128
    %v81 = vadd.s32 %v79, 256
    %v82 = vadd.s32 %v79, 384
    %vm83 = vcmp.lt.s32.totalorder %v79, 0
    %v84 = vsub.s32 0, %v79
    %v85 = vsel %vm83, %v84, %v79
    %v86 = vshrl.u32 %v85, 7
    %v87 = vand.u32 %v85, 127
    %v88 = vsub.s32 0, %v87
    %v89 = vsel %vm83, %v88, %v87
    %vm90 = vcmp.lt.s32.totalorder %v80, 0
    %v91 = vsub.s32 0, %v80
    %v92 = vsel %vm90, %v91, %v80
    %v93 = vshrl.u32 %v92, 7
    %v94 = vand.u32 %v92, 127
    %v95 = vsub.s32 0, %v94
    %v96 = vsel %vm90, %v95, %v94
    %vm97 = vcmp.lt.s32.totalorder %v81, 0
    %v98 = vsub.s32 0, %v81
    %v99 = vsel %vm97, %v98, %v81
    %v100 = vshrl.u32 %v99, 7
    %v101 = vand.u32 %v99, 127
    %v102 = vsub.s32 0, %v101
    %v103 = vsel %vm97, %v102, %v101
    %vm104 = vcmp.lt.s32.totalorder %v82, 0
    %v105 = vsub.s32 0, %v82
    %v106 = vsel %vm104, %v105, %v82
    %v107 = vshrl.u32 %v106, 7
    %v108 = vand.u32 %v106, 127
    %v109 = vsub.s32 0, %v108
    %v110 = vsel %vm104, %v109, %v108
    %vm111 = vcmp.ne.s32.totalorder %v89, 0
    %vm112 = vcmp.ne.s32.totalorder %v96, 0
    %vm113 = vcmp.ne.s32.totalorder %v103, 0
    %vm114 = vcmp.ne.s32.totalorder %v110, 0
    %vm115 = vcmp.lt.s32.totalorder %v89, 0
    %vm116 = vcmp.lt.s32.totalorder %v96, 0
    %vm117 = vcmp.lt.s32.totalorder %v103, 0
    %vm118 = vcmp.lt.s32.totalorder %v110, 0
    %vm119 = vmand %vm115, %vm111
    %vm120 = vmand %vm116, %vm112
    %vm121 = vmand %vm117, %vm113
    %vm122 = vmand %vm118, %vm114
    %v123 = vadd.s32 %v89, 128
    %v124 = vadd.s32 %v96, 128
    %v125 = vadd.s32 %v103, 128
    %v126 = vadd.s32 %v110, 128
    %v127 = vsel %vm119, %v123, %v89
    %v128 = vsel %vm120, %v124, %v96
    %v129 = vsel %vm121, %v125, %v103
    %v130 = vsel %vm122, %v126, %v110
    %vm131 = vcmp.lt.s32.totalorder %v127, 64
    %vm132 = vcmp.lt.s32.totalorder %v128, 64
    %vm133 = vcmp.lt.s32.totalorder %v129, 64
    %vm134 = vcmp.lt.s32.totalorder %v130, 64
    %v135 = vld [vmem:[%s0] sm:$0xf]
    %v136 = vld [vmem:[%s0 + $0x4] sm:$0xf]
    %v137 = vld [vmem:[%s0 + $0x8] sm:$0xf]
    %v138 = vld [vmem:[%s0 + $0xc] sm:$0xf]
    %v139 = vld [vmem:[%s0 + $0x10] sm:$0xf]
    %v140 = vld [vmem:[%s0 + $0x14] sm:$0xf]
    %v141 = vld [vmem:[%s0 + $0x18] sm:$0xf]
    %v142 = vld [vmem:[%s0 + $0x1c] sm:$0xf]
    %v143 = vld [vmem:[%s2] sm:$0xff]
    %v144 = vld [vmem:[%s2 + $0x8] sm:$0xff]
    %v145 = vld [vmem:[%s2 + $0x10] sm:$0xff]
    %v146 = vld [vmem:[%s2 + $0x18] sm:$0xff]
    %v147 = vld [vmem:[%s4] sm:$0xf]
    %v149 = vlaneseq
    %v150 = vshrl.u32 %v149, 7
    %v151 = vsub.s32 0, %v150
    %v152 = vrot.slane %v147, %v151
    %v153 = vlaneseq
    %v154 = vshrl.u32 %v153, 7
    %v155 = vsub.s32 1, %v154
    %v156 = vrot.slane %v147, %v155
    %v157 = vlaneseq
    %v158 = vshrl.u32 %v157, 7
    %v159 = vsub.s32 2, %v158
    %v160 = vrot.slane %v147, %v159
    %v161 = vlaneseq
    %v162 = vshrl.u32 %v161, 7
    %v163 = vsub.s32 3, %v162
    %v164 = vrot.slane %v147, %v163
    %v177 = vunpack.c.l.b16 %v135
    %v178 = vunpack.c.l.b16 %v136
    %v179 = vunpack.c.l.b16 %v137
    %v180 = vunpack.c.l.b16 %v138
    %v181 = vunpack.c.l.b16 %v139
    %v182 = vunpack.c.l.b16 %v140
    %v183 = vunpack.c.l.b16 %v141
    %v184 = vunpack.c.l.b16 %v142
    %v185 = vpack.c.b16 %v178, %v177
    %v186 = vpack.c.b16 %v180, %v179
    %v187 = vpack.c.b16 %v182, %v181
    %v188 = vpack.c.b16 %v184, %v183
    %v193 = vunpack.c.l.b16 %v143
    %v194 = vunpack.c.h.b16 %v143
    %v195 = vunpack.c.l.b16 %v144
    %v196 = vunpack.c.h.b16 %v144
    %v197 = vunpack.c.l.b16 %v145
    %v198 = vunpack.c.h.b16 %v145
    %v199 = vunpack.c.l.b16 %v146
    %v200 = vunpack.c.h.b16 %v146
    %v201 = vpack.c.b16 %v197, %v193
    %v202 = vpack.c.b16 %v198, %v194
    %v203 = vpack.c.b16 %v199, %v195
    %v204 = vpack.c.b16 %v200, %v196
    %vm209 = vcmask 130048
    %v211 = vsel %vm209, %v185, 0
    %v214 = vsel %vm209, %v186, 0
    %v217 = vsel %vm209, %v187, 0
    %v220 = vsel %vm209, %v188, 0
    %222 = vmatprep.subr.bf16.mxu0 0
    %223 = vmatpush1.bf16.msra.mxu0 0
    %224 = vmatprep.subr.bf16.mxu0 0
    %225 = vmatpush1.bf16.msra.mxu0 0
    %226 = vmatprep.subr.bf16.mxu0 0
    %227 = vmatpush1.bf16.msra.mxu0 0
    %228 = vmatprep.subr.bf16.mxu0 0
    %229 = vmatpush1.bf16.msra.mxu0 0
    %230 = vmatprep.subr.bf16.mxu0 0
    %231 = vmatpush1.bf16.msra.mxu0 0
    %232 = vmatprep.subr.bf16.mxu0 0
    %233 = vmatpush1.bf16.msra.mxu0 0
    %234 = vmatprep.subr.bf16.mxu0 0
    %235 = vmatpush1.bf16.msra.mxu0 0
    %236 = vmatprep.subr.bf16.mxu0 %v202
    %237 = vmatpush1.bf16.msra.mxu0 %v201
    %238 = vmatprep.subr.bf16.mxu0 0
    %239 = vmatpush2.bf16.msra.mxu0 0
    %240 = vmatprep.subr.bf16.mxu0 0
    %241 = vmatpush2.bf16.msra.mxu0 0
    %242 = vmatprep.subr.bf16.mxu0 0
    %243 = vmatpush2.bf16.msra.mxu0 0
    %244 = vmatprep.subr.bf16.mxu0 0
    %245 = vmatpush2.bf16.msra.mxu0 0
    %246 = vmatprep.subr.bf16.mxu0 0
    %247 = vmatpush2.bf16.msra.mxu0 0
    %248 = vmatprep.subr.bf16.mxu0 0
    %249 = vmatpush2.bf16.msra.mxu0 0
    %250 = vmatprep.subr.bf16.mxu0 0
    %251 = vmatpush2.bf16.msra.mxu0 0
    %252 = vmatprep.subr.bf16.mxu0 0
    %253 = vmatpush2.bf16.msra.mxu0 0
    %254 = vmatprep.mubr.bf16.mxu0 0
    %255 = vmatmul.mubr.bf16.gmra.mxu0 %v211
    %v256 = vpop.f32.mrf.mxu0
    %v257 = vadd.f32 %v152, %v256
    %v258 = vpop.f32.mrf.mxu0
    %v259 = vadd.f32 %v156, %v258
    %v260 = vpop.f32.mrf.mxu0
    %v261 = vadd.f32 %v152, %v260
    %v262 = vpop.f32.mrf.mxu0
    %v263 = vadd.f32 %v156, %v262
    %264 = vmatprep.mubr.bf16.mxu0 0
    %265 = vmatmul.mubr.bf16.gmra.mxu0 %v214
    %v266 = vpop.f32.mrf.mxu0
    %v267 = vadd.f32 %v152, %v266
    %v268 = vpop.f32.mrf.mxu0
    %v269 = vadd.f32 %v156, %v268
    %v270 = vpop.f32.mrf.mxu0
    %v271 = vadd.f32 %v152, %v270
    %v272 = vpop.f32.mrf.mxu0
    %v273 = vadd.f32 %v156, %v272
    %274 = vmatprep.mubr.bf16.mxu0 0
    %275 = vmatmul.mubr.bf16.gmra.mxu0 %v217
    %v276 = vpop.f32.mrf.mxu0
    %v277 = vadd.f32 %v152, %v276
    %v278 = vpop.f32.mrf.mxu0
    %v279 = vadd.f32 %v156, %v278
    %v280 = vpop.f32.mrf.mxu0
    %v281 = vadd.f32 %v152, %v280
    %v282 = vpop.f32.mrf.mxu0
    %v283 = vadd.f32 %v156, %v282
    %284 = vmatprep.mubr.bf16.mxu0 0
    %285 = vmatmul.mubr.bf16.gmra.mxu0 %v220
    %v286 = vpop.f32.mrf.mxu0
    %v287 = vadd.f32 %v152, %v286
    %v288 = vpop.f32.mrf.mxu0
    %v289 = vadd.f32 %v156, %v288
    %v290 = vpop.f32.mrf.mxu0
    %v291 = vadd.f32 %v152, %v290
    %v292 = vpop.f32.mrf.mxu0
    %v293 = vadd.f32 %v156, %v292
    %294 = vdwg.mxu0
    %295 = vmatprep.subr.bf16.mxu0 0
    %296 = vmatpush1.bf16.msra.mxu0 0
    %297 = vmatprep.subr.bf16.mxu0 0
    %298 = vmatpush1.bf16.msra.mxu0 0
    %299 = vmatprep.subr.bf16.mxu0 0
    %300 = vmatpush1.bf16.msra.mxu0 0
    %301 = vmatprep.subr.bf16.mxu0 0
    %302 = vmatpush1.bf16.msra.mxu0 0
    %303 = vmatprep.subr.bf16.mxu0 0
    %304 = vmatpush1.bf16.msra.mxu0 0
    %305 = vmatprep.subr.bf16.mxu0 0
    %306 = vmatpush1.bf16.msra.mxu0 0
    %307 = vmatprep.subr.bf16.mxu0 0
    %308 = vmatpush1.bf16.msra.mxu0 0
    %309 = vmatprep.subr.bf16.mxu0 %v204
    %310 = vmatpush1.bf16.msra.mxu0 %v203
    %311 = vmatprep.subr.bf16.mxu0 0
    %312 = vmatpush2.bf16.msra.mxu0 0
    %313 = vmatprep.subr.bf16.mxu0 0
    %314 = vmatpush2.bf16.msra.mxu0 0
    %315 = vmatprep.subr.bf16.mxu0 0
    %316 = vmatpush2.bf16.msra.mxu0 0
    %317 = vmatprep.subr.bf16.mxu0 0
    %318 = vmatpush2.bf16.msra.mxu0 0
    %319 = vmatprep.subr.bf16.mxu0 0
    %320 = vmatpush2.bf16.msra.mxu0 0
    %321 = vmatprep.subr.bf16.mxu0 0
    %322 = vmatpush2.bf16.msra.mxu0 0
    %323 = vmatprep.subr.bf16.mxu0 0
    %324 = vmatpush2.bf16.msra.mxu0 0
    %325 = vmatprep.subr.bf16.mxu0 0
    %326 = vmatpush2.bf16.msra.mxu0 0
    %327 = vmatprep.mubr.bf16.mxu0 0
    %328 = vmatmul.mubr.bf16.gmra.mxu0 %v211
    %v329 = vpop.f32.mrf.mxu0
    %v330 = vadd.f32 %v160, %v329
    %v331 = vpop.f32.mrf.mxu0
    %v332 = vadd.f32 %v164, %v331
    %v333 = vpop.f32.mrf.mxu0
    %v334 = vadd.f32 %v160, %v333
    %v335 = vpop.f32.mrf.mxu0
    %v336 = vadd.f32 %v164, %v335
    %337 = vmatprep.mubr.bf16.mxu0 0
    %338 = vmatmul.mubr.bf16.gmra.mxu0 %v214
    %v339 = vpop.f32.mrf.mxu0
    %v340 = vadd.f32 %v160, %v339
    %v341 = vpop.f32.mrf.mxu0
    %v342 = vadd.f32 %v164, %v341
    %v343 = vpop.f32.mrf.mxu0
    %v344 = vadd.f32 %v160, %v343
    %v345 = vpop.f32.mrf.mxu0
    %v346 = vadd.f32 %v164, %v345
    %347 = vmatprep.mubr.bf16.mxu0 0
    %348 = vmatmul.mubr.bf16.gmra.mxu0 %v217
    %v349 = vpop.f32.mrf.mxu0
    %v350 = vadd.f32 %v160, %v349
    %v351 = vpop.f32.mrf.mxu0
    %v352 = vadd.f32 %v164, %v351
    %v353 = vpop.f32.mrf.mxu0
    %v354 = vadd.f32 %v160, %v353
    %v355 = vpop.f32.mrf.mxu0
    %v356 = vadd.f32 %v164, %v355
    %357 = vmatprep.mubr.bf16.mxu0 0
    %358 = vmatmul.mubr.bf16.gmra.mxu0 %v220
    %v359 = vpop.f32.mrf.mxu0
    %v360 = vadd.f32 %v160, %v359
    %v361 = vpop.f32.mrf.mxu0
    %v362 = vadd.f32 %v164, %v361
    %v363 = vpop.f32.mrf.mxu0
    %v364 = vadd.f32 %v160, %v363
    %v365 = vpop.f32.mrf.mxu0
    %v366 = vadd.f32 %v164, %v365
    %367 = vdwg.mxu0
    %v368 = vsel %vm131, %v257, %v291
    %v369 = vsel %vm132, %v259, %v293
    %v370 = vsel %vm133, %v330, %v364
    %v371 = vsel %vm134, %v332, %v366
    %v372 = vsel %vm131, %v261, %v287
    %v373 = vsel %vm132, %v263, %v289
    %v374 = vsel %vm133, %v334, %v360
    %v375 = vsel %vm134, %v336, %v362
    %v376 = vsel %vm131, %v267, %v281
    %v377 = vsel %vm132, %v269, %v283
    %v378 = vsel %vm133, %v340, %v354
    %v379 = vsel %vm134, %v342, %v356
    %v380 = vsel %vm131, %v271, %v277
    %v381 = vsel %vm132, %v273, %v279
    %v382 = vsel %vm133, %v344, %v350
    %v383 = vsel %vm134, %v346, %v352
    %v384 = vsel %vm131, %v277, %v271
    %v385 = vsel %vm132, %v279, %v273
    %v386 = vsel %vm133, %v350, %v344
    %v387 = vsel %vm134, %v352, %v346
    %v388 = vsel %vm131, %v281, %v267
    %v389 = vsel %vm132, %v283, %v269
    %v390 = vsel %vm133, %v354, %v340
    %v391 = vsel %vm134, %v356, %v342
    %v392 = vsel %vm131, %v287, %v261
    %v393 = vsel %vm132, %v289, %v263
    %v394 = vsel %vm133, %v360, %v334
    %v395 = vsel %vm134, %v362, %v336
    %v396 = vsel %vm131, %v291, %v257
    %v397 = vsel %vm132, %v293, %v259
    %v398 = vsel %vm133, %v364, %v330
    %v399 = vsel %vm134, %v366, %v332
    %v400 = vld [vmem:[#allocation3] sm:$0xff]
    %v401 = vld [vmem:[#allocation3 + $0x8] sm:$0xff]
    %v402 = vld [vmem:[#allocation3 + $0x10] sm:$0xff]
    %v403 = vld [vmem:[#allocation3 + $0x18] sm:$0xff]
    %v404 = vld [vmem:[#allocation3 + $0x20] sm:$0xff]
    %v405 = vld [vmem:[#allocation3 + $0x28] sm:$0xff]
    %v406 = vld [vmem:[#allocation3 + $0x30] sm:$0xff]
    %v407 = vld [vmem:[#allocation3 + $0x38] sm:$0xff]
    %v408 = vld [vmem:[#allocation3 + $0x40] sm:$0xff]
    %v409 = vld [vmem:[#allocation3 + $0x48] sm:$0xff]
    %v410 = vld [vmem:[#allocation3 + $0x50] sm:$0xff]
    %v411 = vld [vmem:[#allocation3 + $0x58] sm:$0xff]
    %v412 = vld [vmem:[#allocation3 + $0x60] sm:$0xff]
    %v413 = vld [vmem:[#allocation3 + $0x68] sm:$0xff]
    %v414 = vld [vmem:[#allocation3 + $0x70] sm:$0xff]
    %v415 = vld [vmem:[#allocation3 + $0x78] sm:$0xff]
    %v416 = vld [vmem:[#allocation3 + $0x80] sm:$0xff]
    %v417 = vld [vmem:[#allocation3 + $0x88] sm:$0xff]
    %v418 = vld [vmem:[#allocation3 + $0x90] sm:$0xff]
    %v419 = vld [vmem:[#allocation3 + $0x98] sm:$0xff]
    %v420 = vld [vmem:[#allocation3 + $0xa0] sm:$0xff]
    %v421 = vld [vmem:[#allocation3 + $0xa8] sm:$0xff]
    %v422 = vld [vmem:[#allocation3 + $0xb0] sm:$0xff]
    %v423 = vld [vmem:[#allocation3 + $0xb8] sm:$0xff]
    %v424 = vld [vmem:[#allocation3 + $0xc0] sm:$0xff]
    %v425 = vld [vmem:[#allocation3 + $0xc8] sm:$0xff]
    %v426 = vld [vmem:[#allocation3 + $0xd0] sm:$0xff]
    %v427 = vld [vmem:[#allocation3 + $0xd8] sm:$0xff]
    %v428 = vld [vmem:[#allocation3 + $0xe0] sm:$0xff]
    %v429 = vld [vmem:[#allocation3 + $0xe8] sm:$0xff]
    %v430 = vld [vmem:[#allocation3 + $0xf0] sm:$0xff]
    %v431 = vld [vmem:[#allocation3 + $0xf8] sm:$0xff]
    %v464 = vunpack.c.l.b16 %v400
    %v465 = vunpack.c.h.b16 %v400
    %v466 = vunpack.c.l.b16 %v401
    %v467 = vunpack.c.h.b16 %v401
    %v468 = vunpack.c.l.b16 %v402
    %v469 = vunpack.c.h.b16 %v402
    %v470 = vunpack.c.l.b16 %v403
    %v471 = vunpack.c.h.b16 %v403
    %v472 = vunpack.c.l.b16 %v404
    %v473 = vunpack.c.h.b16 %v404
    %v474 = vunpack.c.l.b16 %v405
    %v475 = vunpack.c.h.b16 %v405
    %v476 = vunpack.c.l.b16 %v406
    %v477 = vunpack.c.h.b16 %v406
    %v478 = vunpack.c.l.b16 %v407
    %v479 = vunpack.c.h.b16 %v407
    %v480 = vunpack.c.l.b16 %v408
    %v481 = vunpack.c.h.b16 %v408
    %v482 = vunpack.c.l.b16 %v409
    %v483 = vunpack.c.h.b16 %v409
    %v484 = vunpack.c.l.b16 %v410
    %v485 = vunpack.c.h.b16 %v410
    %v486 = vunpack.c.l.b16 %v411
    %v487 = vunpack.c.h.b16 %v411
    %v488 = vunpack.c.l.b16 %v412
    %v489 = vunpack.c.h.b16 %v412
    %v490 = vunpack.c.l.b16 %v413
    %v491 = vunpack.c.h.b16 %v413
    %v492 = vunpack.c.l.b16 %v414
    %v493 = vunpack.c.h.b16 %v414
    %v494 = vunpack.c.l.b16 %v415
    %v495 = vunpack.c.h.b16 %v415
    %v496 = vunpack.c.l.b16 %v416
    %v497 = vunpack.c.h.b16 %v416
    %v498 = vunpack.c.l.b16 %v417
    %v499 = vunpack.c.h.b16 %v417
    %v500 = vunpack.c.l.b16 %v418
    %v501 = vunpack.c.h.b16 %v418
    %v502 = vunpack.c.l.b16 %v419
    %v503 = vunpack.c.h.b16 %v419
    %v504 = vunpack.c.l.b16 %v420
    %v505 = vunpack.c.h.b16 %v420
    %v506 = vunpack.c.l.b16 %v421
    %v507 = vunpack.c.h.b16 %v421
    %v508 = vunpack.c.l.b16 %v422
    %v509 = vunpack.c.h.b16 %v422
    %v510 = vunpack.c.l.b16 %v423
    %v511 = vunpack.c.h.b16 %v423
    %v512 = vunpack.c.l.b16 %v424
    %v513 = vunpack.c.h.b16 %v424
    %v514 = vunpack.c.l.b16 %v425
    %v515 = vunpack.c.h.b16 %v425
    %v516 = vunpack.c.l.b16 %v426
    %v517 = vunpack.c.h.b16 %v426
    %v518 = vunpack.c.l.b16 %v427
    %v519 = vunpack.c.h.b16 %v427
    %v520 = vunpack.c.l.b16 %v428
    %v521 = vunpack.c.h.b16 %v428
    %v522 = vunpack.c.l.b16 %v429
    %v523 = vunpack.c.h.b16 %v429
    %v524 = vunpack.c.l.b16 %v430
    %v525 = vunpack.c.h.b16 %v430
    %v526 = vunpack.c.l.b16 %v431
    %v527 = vunpack.c.h.b16 %v431
    %v528 = vpack.c.b16 %v468, %v464
    %v529 = vpack.c.b16 %v469, %v465
    %v530 = vpack.c.b16 %v470, %v466
    %v531 = vpack.c.b16 %v471, %v467
    %v532 = vpack.c.b16 %v476, %v472
    %v533 = vpack.c.b16 %v477, %v473
    %v534 = vpack.c.b16 %v478, %v474
    %v535 = vpack.c.b16 %v479, %v475
    %v536 = vpack.c.b16 %v484, %v480
    %v537 = vpack.c.b16 %v485, %v481
    %v538 = vpack.c.b16 %v486, %v482
    %v539 = vpack.c.b16 %v487, %v483
    %v540 = vpack.c.b16 %v492, %v488
    %v541 = vpack.c.b16 %v493, %v489
    %v542 = vpack.c.b16 %v494, %v490
    %v543 = vpack.c.b16 %v495, %v491
    %v544 = vpack.c.b16 %v500, %v496
    %v545 = vpack.c.b16 %v501, %v497
    %v546 = vpack.c.b16 %v502, %v498
    %v547 = vpack.c.b16 %v503, %v499
    %v548 = vpack.c.b16 %v508, %v504
    %v549 = vpack.c.b16 %v509, %v505
    %v550 = vpack.c.b16 %v510, %v506
    %v551 = vpack.c.b16 %v511, %v507
    %v552 = vpack.c.b16 %v516, %v512
    %v553 = vpack.c.b16 %v517, %v513
    %v554 = vpack.c.b16 %v518, %v514
    %v555 = vpack.c.b16 %v519, %v515
    %v556 = vpack.c.b16 %v524, %v520
    %v557 = vpack.c.b16 %v525, %v521
    %v558 = vpack.c.b16 %v526, %v522
    %v559 = vpack.c.b16 %v527, %v523
    %592 = vmatprep.subr.bf16.mxu0 %v557
    %593 = vmatpush1.bf16.msra.mxu0 %v556
    %594 = vmatprep.subr.bf16.mxu0 %v553
    %595 = vmatpush1.bf16.msra.mxu0 %v552
    %596 = vmatprep.subr.bf16.mxu0 %v549
    %597 = vmatpush1.bf16.msra.mxu0 %v548
    %598 = vmatprep.subr.bf16.mxu0 %v545
    %599 = vmatpush1.bf16.msra.mxu0 %v544
    %600 = vmatprep.subr.bf16.mxu0 %v541
    %601 = vmatpush1.bf16.msra.mxu0 %v540
    %602 = vmatprep.subr.bf16.mxu0 %v537
    %603 = vmatpush1.bf16.msra.mxu0 %v536
    %604 = vmatprep.subr.bf16.mxu0 %v533
    %605 = vmatpush1.bf16.msra.mxu0 %v532
    %606 = vmatprep.subr.bf16.mxu0 %v529
    %607 = vmatpush1.bf16.msra.mxu0 %v528
    %608 = vmatprep.subr.bf16.mxu0 0
    %609 = vmatpush2.bf16.msra.mxu0 0
    %610 = vmatprep.subr.bf16.mxu0 0
    %611 = vmatpush2.bf16.msra.mxu0 0
    %612 = vmatprep.subr.bf16.mxu0 0
    %613 = vmatpush2.bf16.msra.mxu0 0
    %614 = vmatprep.subr.bf16.mxu0 0
    %615 = vmatpush2.bf16.msra.mxu0 0
    %616 = vmatprep.subr.bf16.mxu0 0
    %617 = vmatpush2.bf16.msra.mxu0 0
    %618 = vmatprep.subr.bf16.mxu0 0
    %619 = vmatpush2.bf16.msra.mxu0 0
    %620 = vmatprep.subr.bf16.mxu0 0
    %621 = vmatpush2.bf16.msra.mxu0 0
    %622 = vmatprep.subr.bf16.mxu0 0
    %623 = vmatpush2.bf16.msra.mxu0 0
    %624 = vmatprep.mubr.bf16.mxu0 0
    %625 = vmatmul.mubr.bf16.gmra.mxu0 0
    %v626 = vpop.f32.mrf.mxu0
    %v627 = vadd.f32 0.0, %v626
    %v628 = vpop.f32.mrf.mxu0
    %v629 = vadd.f32 0.0, %v628
    %v630 = vpop.f32.mrf.mxu0
    %v631 = vpop.f32.mrf.mxu0
    %632 = vdwg.mxu0
    %633 = vmatprep.subr.bf16.mxu0 %v559
    %634 = vmatpush1.bf16.msra.mxu0 %v558
    %635 = vmatprep.subr.bf16.mxu0 %v555
    %636 = vmatpush1.bf16.msra.mxu0 %v554
    %637 = vmatprep.subr.bf16.mxu0 %v551
    %638 = vmatpush1.bf16.msra.mxu0 %v550
    %639 = vmatprep.subr.bf16.mxu0 %v547
    %640 = vmatpush1.bf16.msra.mxu0 %v546
    %641 = vmatprep.subr.bf16.mxu0 %v543
    %642 = vmatpush1.bf16.msra.mxu0 %v542
    %643 = vmatprep.subr.bf16.mxu0 %v539
    %644 = vmatpush1.bf16.msra.mxu0 %v538
    %645 = vmatprep.subr.bf16.mxu0 %v535
    %646 = vmatpush1.bf16.msra.mxu0 %v534
    %647 = vmatprep.subr.bf16.mxu0 %v531
    %648 = vmatpush1.bf16.msra.mxu0 %v530
    %649 = vmatprep.subr.bf16.mxu0 0
    %650 = vmatpush2.bf16.msra.mxu0 0
    %651 = vmatprep.subr.bf16.mxu0 0
    %652 = vmatpush2.bf16.msra.mxu0 0
    %653 = vmatprep.subr.bf16.mxu0 0
    %654 = vmatpush2.bf16.msra.mxu0 0
    %655 = vmatprep.subr.bf16.mxu0 0
    %656 = vmatpush2.bf16.msra.mxu0 0
    %657 = vmatprep.subr.bf16.mxu0 0
    %658 = vmatpush2.bf16.msra.mxu0 0
    %659 = vmatprep.subr.bf16.mxu0 0
    %660 = vmatpush2.bf16.msra.mxu0 0
    %661 = vmatprep.subr.bf16.mxu0 0
    %662 = vmatpush2.bf16.msra.mxu0 0
    %663 = vmatprep.subr.bf16.mxu0 0
    %664 = vmatpush2.bf16.msra.mxu0 0
    %665 = vmatprep.mubr.bf16.mxu0 0
    %666 = vmatmul.mubr.bf16.gmra.mxu0 0
    %v667 = vpop.f32.mrf.mxu0
    %v668 = vadd.f32 0.0, %v667
    %v669 = vpop.f32.mrf.mxu0
    %v670 = vadd.f32 0.0, %v669
    %v671 = vpop.f32.mrf.mxu0
    %v672 = vpop.f32.mrf.mxu0
    %673 = vdwg.mxu0
    %v674 = vadd.f32 %v368, %v627
    %v675 = vadd.f32 %v369, %v629
    %v676 = vadd.f32 %v370, %v668
    %v677 = vadd.f32 %v371, %v670
    %v678 = vxor.u32 %v674, 2147483648
    %v679 = vmul.f32 %v678, 1.442695
    %v680 = vpow.pop %v679
    %v681 = vadd.f32 %v680, 1.0
    %v682 = vrcp.pop %v681
    %v683 = vmul.f32 1.0, %v682
    %v684 = vxor.u32 %v675, 2147483648
    %v685 = vmul.f32 %v684, 1.442695
    %v686 = vpow.pop %v685
    %v687 = vadd.f32 %v686, 1.0
    %v688 = vrcp.pop %v687
    %v689 = vmul.f32 1.0, %v688
    %v690 = vtanh.pop %v676
    %v691 = vxor.u32 %v677, 2147483648
    %v692 = vmul.f32 %v691, 1.442695
    %v693 = vpow.pop %v692
    %v694 = vadd.f32 %v693, 1.0
    %v695 = vrcp.pop %v694
    %v696 = vmul.f32 1.0, %v695
    %v697 = vmul.f32 %v689, 0.0
    %v698 = vmul.f32 %v683, %v690
    %v699 = vadd.f32 %v697, %v698
    %v700 = vtanh.pop %v699
    %v701 = vmul.f32 %v696, %v700
    %v702 = vpack.c.bf16 %v701, %v701
    %vm703 = vcmask 519168
    %704 = vst.msk [vmem:[#allocation2] sm:$0xf] %vm703, %v702
    %vm705 = vcmask 1043968
    %706 = vst.msk [vmem:[#allocation2 + $0x1c] sm:$0xf] %vm705, %v702
    %707 = vmatprep.subr.bf16.mxu0 %v557
    %708 = vmatpush1.bf16.msra.mxu0 %v556
    %709 = vmatprep.subr.bf16.mxu0 %v553
    %710 = vmatpush1.bf16.msra.mxu0 %v552
    %711 = vmatprep.subr.bf16.mxu0 %v549
    %712 = vmatpush1.bf16.msra.mxu0 %v548
    %713 = vmatprep.subr.bf16.mxu0 %v545
    %714 = vmatpush1.bf16.msra.mxu0 %v544
    %715 = vmatprep.subr.bf16.mxu0 %v541
    %716 = vmatpush1.bf16.msra.mxu0 %v540
    %717 = vmatprep.subr.bf16.mxu0 %v537
    %718 = vmatpush1.bf16.msra.mxu0 %v536
    %719 = vmatprep.subr.bf16.mxu0 %v533
    %720 = vmatpush1.bf16.msra.mxu0 %v532
    %721 = vmatprep.subr.bf16.mxu0 %v529
    %722 = vmatpush1.bf16.msra.mxu0 %v528
    %723 = vmatprep.subr.bf16.mxu0 0
    %724 = vmatpush2.bf16.msra.mxu0 0
    %725 = vmatprep.subr.bf16.mxu0 0
    %726 = vmatpush2.bf16.msra.mxu0 0
    %727 = vmatprep.subr.bf16.mxu0 0
    %728 = vmatpush2.bf16.msra.mxu0 0
    %729 = vmatprep.subr.bf16.mxu0 0
    %730 = vmatpush2.bf16.msra.mxu0 0
    %731 = vmatprep.subr.bf16.mxu0 0
    %732 = vmatpush2.bf16.msra.mxu0 0
    %733 = vmatprep.subr.bf16.mxu0 0
    %734 = vmatpush2.bf16.msra.mxu0 0
    %735 = vmatprep.subr.bf16.mxu0 0
    %736 = vmatpush2.bf16.msra.mxu0 0
    %737 = vmatprep.subr.bf16.mxu0 0
    %738 = vmatpush2.bf16.msra.mxu0 0
    %739 = vmatprep.mubr.bf16.mxu0 0
    %740 = vmatmul.mubr.bf16.gmra.mxu0 %v702
    %v741 = vpop.f32.mrf.mxu0
    %v742 = vadd.f32 0.0, %v741
    %v743 = vpop.f32.mrf.mxu0
    %v744 = vadd.f32 0.0, %v743
    %v745 = vpop.f32.mrf.mxu0
    %v746 = vpop.f32.mrf.mxu0
    %747 = vdwg.mxu0
    %748 = vmatprep.subr.bf16.mxu0 %v559
    %749 = vmatpush1.bf16.msra.mxu0 %v558
    %750 = vmatprep.subr.bf16.mxu0 %v555
    %751 = vmatpush1.bf16.msra.mxu0 %v554
    %752 = vmatprep.subr.bf16.mxu0 %v551
    %753 = vmatpush1.bf16.msra.mxu0 %v550
    %754 = vmatprep.subr.bf16.mxu0 %v547
    %755 = vmatpush1.bf16.msra.mxu0 %v546
    %756 = vmatprep.subr.bf16.mxu0 %v543
    %757 = vmatpush1.bf16.msra.mxu0 %v542
    %758 = vmatprep.subr.bf16.mxu0 %v539
    %759 = vmatpush1.bf16.msra.mxu0 %v538
    %760 = vmatprep.subr.bf16.mxu0 %v535
    %761 = vmatpush1.bf16.msra.mxu0 %v534
    %762 = vmatprep.subr.bf16.mxu0 %v531
    %763 = vmatpush1.bf16.msra.mxu0 %v530
    %764 = vmatprep.subr.bf16.mxu0 0
    %765 = vmatpush2.bf16.msra.mxu0 0
    %766 = vmatprep.subr.bf16.mxu0 0
    %767 = vmatpush2.bf16.msra.mxu0 0
    %768 = vmatprep.subr.bf16.mxu0 0
    %769 = vmatpush2.bf16.msra.mxu0 0
    %770 = vmatprep.subr.bf16.mxu0 0
    %771 = vmatpush2.bf16.msra.mxu0 0
    %772 = vmatprep.subr.bf16.mxu0 0
    %773 = vmatpush2.bf16.msra.mxu0 0
    %774 = vmatprep.subr.bf16.mxu0 0
    %775 = vmatpush2.bf16.msra.mxu0 0
    %776 = vmatprep.subr.bf16.mxu0 0
    %777 = vmatpush2.bf16.msra.mxu0 0
    %778 = vmatprep.subr.bf16.mxu0 0
    %779 = vmatpush2.bf16.msra.mxu0 0
    %780 = vmatprep.mubr.bf16.mxu0 0
    %781 = vmatmul.mubr.bf16.gmra.mxu0 %v702
    %v782 = vpop.f32.mrf.mxu0
    %v783 = vadd.f32 0.0, %v782
    %v784 = vpop.f32.mrf.mxu0
    %v785 = vadd.f32 0.0, %v784
    %v786 = vpop.f32.mrf.mxu0
    %v787 = vpop.f32.mrf.mxu0
    %788 = vdwg.mxu0
    %v789 = vadd.f32 %v372, %v742
    %v790 = vadd.f32 %v373, %v744
    %v791 = vadd.f32 %v374, %v783
    %v792 = vadd.f32 %v375, %v785
    %v793 = vxor.u32 %v789, 2147483648
    %v794 = vmul.f32 %v793, 1.442695
    %v795 = vpow.pop %v794
    %v796 = vadd.f32 %v795, 1.0
    %v797 = vrcp.pop %v796
    %v798 = vmul.f32 1.0, %v797
    %v799 = vxor.u32 %v790, 2147483648
    %v800 = vmul.f32 %v799, 1.442695
    %v801 = vpow.pop %v800
    %v802 = vadd.f32 %v801, 1.0
    %v803 = vrcp.pop %v802
    %v804 = vmul.f32 1.0, %v803
    %v805 = vtanh.pop %v791
    %v806 = vxor.u32 %v792, 2147483648
    %v807 = vmul.f32 %v806, 1.442695
    %v808 = vpow.pop %v807
    %v809 = vadd.f32 %v808, 1.0
    %v810 = vrcp.pop %v809
    %v811 = vmul.f32 1.0, %v810
    %v812 = vmul.f32 %v804, %v699
    %v813 = vmul.f32 %v798, %v805
    %v814 = vadd.f32 %v812, %v813
    %v815 = vtanh.pop %v814
    %v816 = vmul.f32 %v811, %v815
    %v817 = vpack.c.bf16 %v816, %v816
    %818 = vst.msk [vmem:[#allocation2 + $0x4] sm:$0xf] %vm703, %v817
    %819 = vst.msk [vmem:[#allocation2 + $0x18] sm:$0xf] %vm705, %v817
    %820 = vmatprep.subr.bf16.mxu0 %v557
    %821 = vmatpush1.bf16.msra.mxu0 %v556
    %822 = vmatprep.subr.bf16.mxu0 %v553
    %823 = vmatpush1.bf16.msra.mxu0 %v552
    %824 = vmatprep.subr.bf16.mxu0 %v549
    %825 = vmatpush1.bf16.msra.mxu0 %v548
    %826 = vmatprep.subr.bf16.mxu0 %v545
    %827 = vmatpush1.bf16.msra.mxu0 %v544
    %828 = vmatprep.subr.bf16.mxu0 %v541
    %829 = vmatpush1.bf16.msra.mxu0 %v540
    %830 = vmatprep.subr.bf16.mxu0 %v537
    %831 = vmatpush1.bf16.msra.mxu0 %v536
    %832 = vmatprep.subr.bf16.mxu0 %v533
    %833 = vmatpush1.bf16.msra.mxu0 %v532
    %834 = vmatprep.subr.bf16.mxu0 %v529
    %835 = vmatpush1.bf16.msra.mxu0 %v528
    %836 = vmatprep.subr.bf16.mxu0 0
    %837 = vmatpush2.bf16.msra.mxu0 0
    %838 = vmatprep.subr.bf16.mxu0 0
    %839 = vmatpush2.bf16.msra.mxu0 0
    %840 = vmatprep.subr.bf16.mxu0 0
    %841 = vmatpush2.bf16.msra.mxu0 0
    %842 = vmatprep.subr.bf16.mxu0 0
    %843 = vmatpush2.bf16.msra.mxu0 0
    %844 = vmatprep.subr.bf16.mxu0 0
    %845 = vmatpush2.bf16.msra.mxu0 0
    %846 = vmatprep.subr.bf16.mxu0 0
    %847 = vmatpush2.bf16.msra.mxu0 0
    %848 = vmatprep.subr.bf16.mxu0 0
    %849 = vmatpush2.bf16.msra.mxu0 0
    %850 = vmatprep.subr.bf16.mxu0 0
    %851 = vmatpush2.bf16.msra.mxu0 0
    %852 = vmatprep.mubr.bf16.mxu0 0
    %853 = vmatmul.mubr.bf16.gmra.mxu0 %v817
    %v854 = vpop.f32.mrf.mxu0
    %v855 = vadd.f32 0.0, %v854
    %v856 = vpop.f32.mrf.mxu0
    %v857 = vadd.f32 0.0, %v856
    %v858 = vpop.f32.mrf.mxu0
    %v859 = vpop.f32.mrf.mxu0
    %860 = vdwg.mxu0
    %861 = vmatprep.subr.bf16.mxu0 %v559
    %862 = vmatpush1.bf16.msra.mxu0 %v558
    %863 = vmatprep.subr.bf16.mxu0 %v555
    %864 = vmatpush1.bf16.msra.mxu0 %v554
    %865 = vmatprep.subr.bf16.mxu0 %v551
    %866 = vmatpush1.bf16.msra.mxu0 %v550
    %867 = vmatprep.subr.bf16.mxu0 %v547
    %868 = vmatpush1.bf16.msra.mxu0 %v546
    %869 = vmatprep.subr.bf16.mxu0 %v543
    %870 = vmatpush1.bf16.msra.mxu0 %v542
    %871 = vmatprep.subr.bf16.mxu0 %v539
    %872 = vmatpush1.bf16.msra.mxu0 %v538
    %873 = vmatprep.subr.bf16.mxu0 %v535
    %874 = vmatpush1.bf16.msra.mxu0 %v534
    %875 = vmatprep.subr.bf16.mxu0 %v531
    %876 = vmatpush1.bf16.msra.mxu0 %v530
    %877 = vmatprep.subr.bf16.mxu0 0
    %878 = vmatpush2.bf16.msra.mxu0 0
    %879 = vmatprep.subr.bf16.mxu0 0
    %880 = vmatpush2.bf16.msra.mxu0 0
    %881 = vmatprep.subr.bf16.mxu0 0
    %882 = vmatpush2.bf16.msra.mxu0 0
    %883 = vmatprep.subr.bf16.mxu0 0
    %884 = vmatpush2.bf16.msra.mxu0 0
    %885 = vmatprep.subr.bf16.mxu0 0
    %886 = vmatpush2.bf16.msra.mxu0 0
    %887 = vmatprep.subr.bf16.mxu0 0
    %888 = vmatpush2.bf16.msra.mxu0 0
    %889 = vmatprep.subr.bf16.mxu0 0
    %890 = vmatpush2.bf16.msra.mxu0 0
    %891 = vmatprep.subr.bf16.mxu0 0
    %892 = vmatpush2.bf16.msra.mxu0 0
    %893 = vmatprep.mubr.bf16.mxu0 0
    %894 = vmatmul.mubr.bf16.gmra.mxu0 %v817
    %v895 = vpop.f32.mrf.mxu0
    %v896 = vadd.f32 0.0, %v895
    %v897 = vpop.f32.mrf.mxu0
    %v898 = vadd.f32 0.0, %v897
    %v899 = vpop.f32.mrf.mxu0
    %v900 = vpop.f32.mrf.mxu0
    %901 = vdwg.mxu0
    %v902 = vadd.f32 %v376, %v855
    %v903 = vadd.f32 %v377, %v857
    %v904 = vadd.f32 %v378, %v896
    %v905 = vadd.f32 %v379, %v898
    %v906 = vxor.u32 %v902, 2147483648
    %v907 = vmul.f32 %v906, 1.442695
    %v908 = vpow.pop %v907
    %v909 = vadd.f32 %v908, 1.0
    %v910 = vrcp.pop %v909
    %v911 = vmul.f32 1.0, %v910
    %v912 = vxor.u32 %v903, 2147483648
    %v913 = vmul.f32 %v912, 1.442695
    %v914 = vpow.pop %v913
    %v915 = vadd.f32 %v914, 1.0
    %v916 = vrcp.pop %v915
    %v917 = vmul.f32 1.0, %v916
    %v918 = vtanh.pop %v904
    %v919 = vxor.u32 %v905, 2147483648
    %v920 = vmul.f32 %v919, 1.442695
    %v921 = vpow.pop %v920
    %v922 = vadd.f32 %v921, 1.0
    %v923 = vrcp.pop %v922
    %v924 = vmul.f32 1.0, %v923
    %v925 = vmul.f32 %v917, %v814
    %v926 = vmul.f32 %v911, %v918
    %v927 = vadd.f32 %v925, %v926
    %v928 = vtanh.pop %v927
    %v929 = vmul.f32 %v924, %v928
    %v930 = vpack.c.bf16 %v929, %v929
    %931 = vst.msk [vmem:[#allocation2 + $0x8] sm:$0xf] %vm703, %v930
    %932 = vst.msk [vmem:[#allocation2 + $0x14] sm:$0xf] %vm705, %v930
    %933 = vmatprep.subr.bf16.mxu0 %v557
    %934 = vmatpush1.bf16.msra.mxu0 %v556
    %935 = vmatprep.subr.bf16.mxu0 %v553
    %936 = vmatpush1.bf16.msra.mxu0 %v552
    %937 = vmatprep.subr.bf16.mxu0 %v549
    %938 = vmatpush1.bf16.msra.mxu0 %v548
    %939 = vmatprep.subr.bf16.mxu0 %v545
    %940 = vmatpush1.bf16.msra.mxu0 %v544
    %941 = vmatprep.subr.bf16.mxu0 %v541
    %942 = vmatpush1.bf16.msra.mxu0 %v540
    %943 = vmatprep.subr.bf16.mxu0 %v537
    %944 = vmatpush1.bf16.msra.mxu0 %v536
    %945 = vmatprep.subr.bf16.mxu0 %v533
    %946 = vmatpush1.bf16.msra.mxu0 %v532
    %947 = vmatprep.subr.bf16.mxu0 %v529
    %948 = vmatpush1.bf16.msra.mxu0 %v528
    %949 = vmatprep.subr.bf16.mxu0 0
    %950 = vmatpush2.bf16.msra.mxu0 0
    %951 = vmatprep.subr.bf16.mxu0 0
    %952 = vmatpush2.bf16.msra.mxu0 0
    %953 = vmatprep.subr.bf16.mxu0 0
    %954 = vmatpush2.bf16.msra.mxu0 0
    %955 = vmatprep.subr.bf16.mxu0 0
    %956 = vmatpush2.bf16.msra.mxu0 0
    %957 = vmatprep.subr.bf16.mxu0 0
    %958 = vmatpush2.bf16.msra.mxu0 0
    %959 = vmatprep.subr.bf16.mxu0 0
    %960 = vmatpush2.bf16.msra.mxu0 0
    %961 = vmatprep.subr.bf16.mxu0 0
    %962 = vmatpush2.bf16.msra.mxu0 0
    %963 = vmatprep.subr.bf16.mxu0 0
    %964 = vmatpush2.bf16.msra.mxu0 0
    %965 = vmatprep.mubr.bf16.mxu0 0
    %966 = vmatmul.mubr.bf16.gmra.mxu0 %v930
    %v967 = vpop.f32.mrf.mxu0
    %v968 = vadd.f32 0.0, %v967
    %v969 = vpop.f32.mrf.mxu0
    %v970 = vadd.f32 0.0, %v969
    %v971 = vpop.f32.mrf.mxu0
    %v972 = vpop.f32.mrf.mxu0
    %973 = vdwg.mxu0
    %974 = vmatprep.subr.bf16.mxu0 %v559
    %975 = vmatpush1.bf16.msra.mxu0 %v558
    %976 = vmatprep.subr.bf16.mxu0 %v555
    %977 = vmatpush1.bf16.msra.mxu0 %v554
    %978 = vmatprep.subr.bf16.mxu0 %v551
    %979 = vmatpush1.bf16.msra.mxu0 %v550
    %980 = vmatprep.subr.bf16.mxu0 %v547
    %981 = vmatpush1.bf16.msra.mxu0 %v546
    %982 = vmatprep.subr.bf16.mxu0 %v543
    %983 = vmatpush1.bf16.msra.mxu0 %v542
    %984 = vmatprep.subr.bf16.mxu0 %v539
    %985 = vmatpush1.bf16.msra.mxu0 %v538
    %986 = vmatprep.subr.bf16.mxu0 %v535
    %987 = vmatpush1.bf16.msra.mxu0 %v534
    %988 = vmatprep.subr.bf16.mxu0 %v531
    %989 = vmatpush1.bf16.msra.mxu0 %v530
    %990 = vmatprep.subr.bf16.mxu0 0
    %991 = vmatpush2.bf16.msra.mxu0 0
    %992 = vmatprep.subr.bf16.mxu0 0
    %993 = vmatpush2.bf16.msra.mxu0 0
    %994 = vmatprep.subr.bf16.mxu0 0
    %995 = vmatpush2.bf16.msra.mxu0 0
    %996 = vmatprep.subr.bf16.mxu0 0
    %997 = vmatpush2.bf16.msra.mxu0 0
    %998 = vmatprep.subr.bf16.mxu0 0
    %999 = vmatpush2.bf16.msra.mxu0 0
    %1000 = vmatprep.subr.bf16.mxu0 0
    %1001 = vmatpush2.bf16.msra.mxu0 0
    %1002 = vmatprep.subr.bf16.mxu0 0
    %1003 = vmatpush2.bf16.msra.mxu0 0
    %1004 = vmatprep.subr.bf16.mxu0 0
    %1005 = vmatpush2.bf16.msra.mxu0 0
    %1006 = vmatprep.mubr.bf16.mxu0 0
    %1007 = vmatmul.mubr.bf16.gmra.mxu0 %v930
    %v1008 = vpop.f32.mrf.mxu0
    %v1009 = vadd.f32 0.0, %v1008
    %v1010 = vpop.f32.mrf.mxu0
    %v1011 = vadd.f32 0.0, %v1010
    %v1012 = vpop.f32.mrf.mxu0
    %v1013 = vpop.f32.mrf.mxu0
    %1014 = vdwg.mxu0
    %v1015 = vadd.f32 %v380, %v968
    %v1016 = vadd.f32 %v381, %v970
    %v1017 = vadd.f32 %v382, %v1009
    %v1018 = vadd.f32 %v383, %v1011
    %v1019 = vxor.u32 %v1015, 2147483648
    %v1020 = vmul.f32 %v1019, 1.442695
    %v1021 = vpow.pop %v1020
    %v1022 = vadd.f32 %v1021, 1.0
    %v1023 = vrcp.pop %v1022
    %v1024 = vmul.f32 1.0, %v1023
    %v1025 = vxor.u32 %v1016, 2147483648
    %v1026 = vmul.f32 %v1025, 1.442695
    %v1027 = vpow.pop %v1026
    %v1028 = vadd.f32 %v1027, 1.0
    %v1029 = vrcp.pop %v1028
    %v1030 = vmul.f32 1.0, %v1029
    %v1031 = vtanh.pop %v1017
    %v1032 = vxor.u32 %v1018, 2147483648
    %v1033 = vmul.f32 %v1032, 1.442695
    %v1034 = vpow.pop %v1033
    %v1035 = vadd.f32 %v1034, 1.0
    %v1036 = vrcp.pop %v1035
    %v1037 = vmul.f32 1.0, %v1036
    %v1038 = vmul.f32 %v1030, %v927
    %v1039 = vmul.f32 %v1024, %v1031
    %v1040 = vadd.f32 %v1038, %v1039
    %v1041 = vtanh.pop %v1040
    %v1042 = vmul.f32 %v1037, %v1041
    %v1043 = vpack.c.bf16 %v1042, %v1042
    %1044 = vst.msk [vmem:[#allocation2 + $0xc] sm:$0xf] %vm703, %v1043
    %1045 = vst.msk [vmem:[#allocation2 + $0x10] sm:$0xf] %vm705, %v1043
    %1046 = vmatprep.subr.bf16.mxu0 %v557
    %1047 = vmatpush1.bf16.msra.mxu0 %v556
    %1048 = vmatprep.subr.bf16.mxu0 %v553
    %1049 = vmatpush1.bf16.msra.mxu0 %v552
    %1050 = vmatprep.subr.bf16.mxu0 %v549
    %1051 = vmatpush1.bf16.msra.mxu0 %v548
    %1052 = vmatprep.subr.bf16.mxu0 %v545
    %1053 = vmatpush1.bf16.msra.mxu0 %v544
    %1054 = vmatprep.subr.bf16.mxu0 %v541
    %1055 = vmatpush1.bf16.msra.mxu0 %v540
    %1056 = vmatprep.subr.bf16.mxu0 %v537
    %1057 = vmatpush1.bf16.msra.mxu0 %v536
    %1058 = vmatprep.subr.bf16.mxu0 %v533
    %1059 = vmatpush1.bf16.msra.mxu0 %v532
    %1060 = vmatprep.subr.bf16.mxu0 %v529
    %1061 = vmatpush1.bf16.msra.mxu0 %v528
    %1062 = vmatprep.subr.bf16.mxu0 0
    %1063 = vmatpush2.bf16.msra.mxu0 0
    %1064 = vmatprep.subr.bf16.mxu0 0
    %1065 = vmatpush2.bf16.msra.mxu0 0
    %1066 = vmatprep.subr.bf16.mxu0 0
    %1067 = vmatpush2.bf16.msra.mxu0 0
    %1068 = vmatprep.subr.bf16.mxu0 0
    %1069 = vmatpush2.bf16.msra.mxu0 0
    %1070 = vmatprep.subr.bf16.mxu0 0
    %1071 = vmatpush2.bf16.msra.mxu0 0
    %1072 = vmatprep.subr.bf16.mxu0 0
    %1073 = vmatpush2.bf16.msra.mxu0 0
    %1074 = vmatprep.subr.bf16.mxu0 0
    %1075 = vmatpush2.bf16.msra.mxu0 0
    %1076 = vmatprep.subr.bf16.mxu0 0
    %1077 = vmatpush2.bf16.msra.mxu0 0
    %1078 = vmatprep.mubr.bf16.mxu0 0
    %1079 = vmatmul.mubr.bf16.gmra.mxu0 %v1043
    %v1080 = vpop.f32.mrf.mxu0
    %v1081 = vadd.f32 0.0, %v1080
    %v1082 = vpop.f32.mrf.mxu0
    %v1083 = vadd.f32 0.0, %v1082
    %v1084 = vpop.f32.mrf.mxu0
    %v1085 = vpop.f32.mrf.mxu0
    %1086 = vdwg.mxu0
    %1087 = vmatprep.subr.bf16.mxu0 %v559
    %1088 = vmatpush1.bf16.msra.mxu0 %v558
    %1089 = vmatprep.subr.bf16.mxu0 %v555
    %1090 = vmatpush1.bf16.msra.mxu0 %v554
    %1091 = vmatprep.subr.bf16.mxu0 %v551
    %1092 = vmatpush1.bf16.msra.mxu0 %v550
    %1093 = vmatprep.subr.bf16.mxu0 %v547
    %1094 = vmatpush1.bf16.msra.mxu0 %v546
    %1095 = vmatprep.subr.bf16.mxu0 %v543
    %1096 = vmatpush1.bf16.msra.mxu0 %v542
    %1097 = vmatprep.subr.bf16.mxu0 %v539
    %1098 = vmatpush1.bf16.msra.mxu0 %v538
    %1099 = vmatprep.subr.bf16.mxu0 %v535
    %1100 = vmatpush1.bf16.msra.mxu0 %v534
    %1101 = vmatprep.subr.bf16.mxu0 %v531
    %1102 = vmatpush1.bf16.msra.mxu0 %v530
    %1103 = vmatprep.subr.bf16.mxu0 0
    %1104 = vmatpush2.bf16.msra.mxu0 0
    %1105 = vmatprep.subr.bf16.mxu0 0
    %1106 = vmatpush2.bf16.msra.mxu0 0
    %1107 = vmatprep.subr.bf16.mxu0 0
    %1108 = vmatpush2.bf16.msra.mxu0 0
    %1109 = vmatprep.subr.bf16.mxu0 0
    %1110 = vmatpush2.bf16.msra.mxu0 0
    %1111 = vmatprep.subr.bf16.mxu0 0
    %1112 = vmatpush2.bf16.msra.mxu0 0
    %1113 = vmatprep.subr.bf16.mxu0 0
    %1114 = vmatpush2.bf16.msra.mxu0 0
    %1115 = vmatprep.subr.bf16.mxu0 0
    %1116 = vmatpush2.bf16.msra.mxu0 0
    %1117 = vmatprep.subr.bf16.mxu0 0
    %1118 = vmatpush2.bf16.msra.mxu0 0
    %1119 = vmatprep.mubr.bf16.mxu0 0
    %1120 = vmatmul.mubr.bf16.gmra.mxu0 %v1043
    %v1121 = vpop.f32.mrf.mxu0
    %v1122 = vadd.f32 0.0, %v1121
    %v1123 = vpop.f32.mrf.mxu0
    %v1124 = vadd.f32 0.0, %v1123
    %v1125 = vpop.f32.mrf.mxu0
    %v1126 = vpop.f32.mrf.mxu0
    %1127 = vdwg.mxu0
    %v1128 = vadd.f32 %v384, %v1081
    %v1129 = vadd.f32 %v385, %v1083
    %v1130 = vadd.f32 %v386, %v1122
    %v1131 = vadd.f32 %v387, %v1124
    %v1132 = vxor.u32 %v1128, 2147483648
    %v1133 = vmul.f32 %v1132, 1.442695
    %v1134 = vpow.pop %v1133
    %v1135 = vadd.f32 %v1134, 1.0
    %v1136 = vrcp.pop %v1135
    %v1137 = vmul.f32 1.0, %v1136
    %v1138 = vxor.u32 %v1129, 2147483648
    %v1139 = vmul.f32 %v1138, 1.442695
    %v1140 = vpow.pop %v1139
    %v1141 = vadd.f32 %v1140, 1.0
    %v1142 = vrcp.pop %v1141
    %v1143 = vmul.f32 1.0, %v1142
    %v1144 = vtanh.pop %v1130
    %v1145 = vxor.u32 %v1131, 2147483648
    %v1146 = vmul.f32 %v1145, 1.442695
    %v1147 = vpow.pop %v1146
    %v1148 = vadd.f32 %v1147, 1.0
    %v1149 = vrcp.pop %v1148
    %v1150 = vmul.f32 1.0, %v1149
    %v1151 = vmul.f32 %v1143, %v1040
    %v1152 = vmul.f32 %v1137, %v1144
    %v1153 = vadd.f32 %v1151, %v1152
    %v1154 = vtanh.pop %v1153
    %v1155 = vmul.f32 %v1150, %v1154
    %v1156 = vpack.c.bf16 %v1155, %v1155
    %1157 = vst.msk [vmem:[#allocation2 + $0x10] sm:$0xf] %vm703, %v1156
    %1158 = vst.msk [vmem:[#allocation2 + $0xc] sm:$0xf] %vm705, %v1156
    %1159 = vmatprep.subr.bf16.mxu0 %v557
    %1160 = vmatpush1.bf16.msra.mxu0 %v556
    %1161 = vmatprep.subr.bf16.mxu0 %v553
    %1162 = vmatpush1.bf16.msra.mxu0 %v552
    %1163 = vmatprep.subr.bf16.mxu0 %v549
    %1164 = vmatpush1.bf16.msra.mxu0 %v548
    %1165 = vmatprep.subr.bf16.mxu0 %v545
    %1166 = vmatpush1.bf16.msra.mxu0 %v544
    %1167 = vmatprep.subr.bf16.mxu0 %v541
    %1168 = vmatpush1.bf16.msra.mxu0 %v540
    %1169 = vmatprep.subr.bf16.mxu0 %v537
    %1170 = vmatpush1.bf16.msra.mxu0 %v536
    %1171 = vmatprep.subr.bf16.mxu0 %v533
    %1172 = vmatpush1.bf16.msra.mxu0 %v532
    %1173 = vmatprep.subr.bf16.mxu0 %v529
    %1174 = vmatpush1.bf16.msra.mxu0 %v528
    %1175 = vmatprep.subr.bf16.mxu0 0
    %1176 = vmatpush2.bf16.msra.mxu0 0
    %1177 = vmatprep.subr.bf16.mxu0 0
    %1178 = vmatpush2.bf16.msra.mxu0 0
    %1179 = vmatprep.subr.bf16.mxu0 0
    %1180 = vmatpush2.bf16.msra.mxu0 0
    %1181 = vmatprep.subr.bf16.mxu0 0
    %1182 = vmatpush2.bf16.msra.mxu0 0
    %1183 = vmatprep.subr.bf16.mxu0 0
    %1184 = vmatpush2.bf16.msra.mxu0 0
    %1185 = vmatprep.subr.bf16.mxu0 0
    %1186 = vmatpush2.bf16.msra.mxu0 0
    %1187 = vmatprep.subr.bf16.mxu0 0
    %1188 = vmatpush2.bf16.msra.mxu0 0
    %1189 = vmatprep.subr.bf16.mxu0 0
    %1190 = vmatpush2.bf16.msra.mxu0 0
    %1191 = vmatprep.mubr.bf16.mxu0 0
    %1192 = vmatmul.mubr.bf16.gmra.mxu0 %v1156
    %v1193 = vpop.f32.mrf.mxu0
    %v1194 = vadd.f32 0.0, %v1193
    %v1195 = vpop.f32.mrf.mxu0
    %v1196 = vadd.f32 0.0, %v1195
    %v1197 = vpop.f32.mrf.mxu0
    %v1198 = vpop.f32.mrf.mxu0
    %1199 = vdwg.mxu0
    %1200 = vmatprep.subr.bf16.mxu0 %v559
    %1201 = vmatpush1.bf16.msra.mxu0 %v558
    %1202 = vmatprep.subr.bf16.mxu0 %v555
    %1203 = vmatpush1.bf16.msra.mxu0 %v554
    %1204 = vmatprep.subr.bf16.mxu0 %v551
    %1205 = vmatpush1.bf16.msra.mxu0 %v550
    %1206 = vmatprep.subr.bf16.mxu0 %v547
    %1207 = vmatpush1.bf16.msra.mxu0 %v546
    %1208 = vmatprep.subr.bf16.mxu0 %v543
    %1209 = vmatpush1.bf16.msra.mxu0 %v542
    %1210 = vmatprep.subr.bf16.mxu0 %v539
    %1211 = vmatpush1.bf16.msra.mxu0 %v538
    %1212 = vmatprep.subr.bf16.mxu0 %v535
    %1213 = vmatpush1.bf16.msra.mxu0 %v534
    %1214 = vmatprep.subr.bf16.mxu0 %v531
    %1215 = vmatpush1.bf16.msra.mxu0 %v530
    %1216 = vmatprep.subr.bf16.mxu0 0
    %1217 = vmatpush2.bf16.msra.mxu0 0
    %1218 = vmatprep.subr.bf16.mxu0 0
    %1219 = vmatpush2.bf16.msra.mxu0 0
    %1220 = vmatprep.subr.bf16.mxu0 0
    %1221 = vmatpush2.bf16.msra.mxu0 0
    %1222 = vmatprep.subr.bf16.mxu0 0
    %1223 = vmatpush2.bf16.msra.mxu0 0
    %1224 = vmatprep.subr.bf16.mxu0 0
    %1225 = vmatpush2.bf16.msra.mxu0 0
    %1226 = vmatprep.subr.bf16.mxu0 0
    %1227 = vmatpush2.bf16.msra.mxu0 0
    %1228 = vmatprep.subr.bf16.mxu0 0
    %1229 = vmatpush2.bf16.msra.mxu0 0
    %1230 = vmatprep.subr.bf16.mxu0 0
    %1231 = vmatpush2.bf16.msra.mxu0 0
    %1232 = vmatprep.mubr.bf16.mxu0 0
    %1233 = vmatmul.mubr.bf16.gmra.mxu0 %v1156
    %v1234 = vpop.f32.mrf.mxu0
    %v1235 = vadd.f32 0.0, %v1234
    %v1236 = vpop.f32.mrf.mxu0
    %v1237 = vadd.f32 0.0, %v1236
    %v1238 = vpop.f32.mrf.mxu0
    %v1239 = vpop.f32.mrf.mxu0
    %1240 = vdwg.mxu0
    %v1241 = vadd.f32 %v388, %v1194
    %v1242 = vadd.f32 %v389, %v1196
    %v1243 = vadd.f32 %v390, %v1235
    %v1244 = vadd.f32 %v391, %v1237
    %v1245 = vxor.u32 %v1241, 2147483648
    %v1246 = vmul.f32 %v1245, 1.442695
    %v1247 = vpow.pop %v1246
    %v1248 = vadd.f32 %v1247, 1.0
    %v1249 = vrcp.pop %v1248
    %v1250 = vmul.f32 1.0, %v1249
    %v1251 = vxor.u32 %v1242, 2147483648
    %v1252 = vmul.f32 %v1251, 1.442695
    %v1253 = vpow.pop %v1252
    %v1254 = vadd.f32 %v1253, 1.0
    %v1255 = vrcp.pop %v1254
    %v1256 = vmul.f32 1.0, %v1255
    %v1257 = vtanh.pop %v1243
    %v1258 = vxor.u32 %v1244, 2147483648
    %v1259 = vmul.f32 %v1258, 1.442695
    %v1260 = vpow.pop %v1259
    %v1261 = vadd.f32 %v1260, 1.0
    %v1262 = vrcp.pop %v1261
    %v1263 = vmul.f32 1.0, %v1262
    %v1264 = vmul.f32 %v1256, %v1153
    %v1265 = vmul.f32 %v1250, %v1257
    %v1266 = vadd.f32 %v1264, %v1265
    %v1267 = vtanh.pop %v1266
    %v1268 = vmul.f32 %v1263, %v1267
    %v1269 = vpack.c.bf16 %v1268, %v1268
    %1270 = vst.msk [vmem:[#allocation2 + $0x14] sm:$0xf] %vm703, %v1269
    %1271 = vst.msk [vmem:[#allocation2 + $0x8] sm:$0xf] %vm705, %v1269
    %1272 = vmatprep.subr.bf16.mxu0 %v557
    %1273 = vmatpush1.bf16.msra.mxu0 %v556
    %1274 = vmatprep.subr.bf16.mxu0 %v553
    %1275 = vmatpush1.bf16.msra.mxu0 %v552
    %1276 = vmatprep.subr.bf16.mxu0 %v549
    %1277 = vmatpush1.bf16.msra.mxu0 %v548
    %1278 = vmatprep.subr.bf16.mxu0 %v545
    %1279 = vmatpush1.bf16.msra.mxu0 %v544
    %1280 = vmatprep.subr.bf16.mxu0 %v541
    %1281 = vmatpush1.bf16.msra.mxu0 %v540
    %1282 = vmatprep.subr.bf16.mxu0 %v537
    %1283 = vmatpush1.bf16.msra.mxu0 %v536
    %1284 = vmatprep.subr.bf16.mxu0 %v533
    %1285 = vmatpush1.bf16.msra.mxu0 %v532
    %1286 = vmatprep.subr.bf16.mxu0 %v529
    %1287 = vmatpush1.bf16.msra.mxu0 %v528
    %1288 = vmatprep.subr.bf16.mxu0 0
    %1289 = vmatpush2.bf16.msra.mxu0 0
    %1290 = vmatprep.subr.bf16.mxu0 0
    %1291 = vmatpush2.bf16.msra.mxu0 0
    %1292 = vmatprep.subr.bf16.mxu0 0
    %1293 = vmatpush2.bf16.msra.mxu0 0
    %1294 = vmatprep.subr.bf16.mxu0 0
    %1295 = vmatpush2.bf16.msra.mxu0 0
    %1296 = vmatprep.subr.bf16.mxu0 0
    %1297 = vmatpush2.bf16.msra.mxu0 0
    %1298 = vmatprep.subr.bf16.mxu0 0
    %1299 = vmatpush2.bf16.msra.mxu0 0
    %1300 = vmatprep.subr.bf16.mxu0 0
    %1301 = vmatpush2.bf16.msra.mxu0 0
    %1302 = vmatprep.subr.bf16.mxu0 0
    %1303 = vmatpush2.bf16.msra.mxu0 0
    %1304 = vmatprep.mubr.bf16.mxu0 0
    %1305 = vmatmul.mubr.bf16.gmra.mxu0 %v1269
    %v1306 = vpop.f32.mrf.mxu0
    %v1307 = vadd.f32 0.0, %v1306
    %v1308 = vpop.f32.mrf.mxu0
    %v1309 = vadd.f32 0.0, %v1308
    %v1310 = vpop.f32.mrf.mxu0
    %v1311 = vpop.f32.mrf.mxu0
    %1312 = vdwg.mxu0
    %1313 = vmatprep.subr.bf16.mxu0 %v559
    %1314 = vmatpush1.bf16.msra.mxu0 %v558
    %1315 = vmatprep.subr.bf16.mxu0 %v555
    %1316 = vmatpush1.bf16.msra.mxu0 %v554
    %1317 = vmatprep.subr.bf16.mxu0 %v551
    %1318 = vmatpush1.bf16.msra.mxu0 %v550
    %1319 = vmatprep.subr.bf16.mxu0 %v547
    %1320 = vmatpush1.bf16.msra.mxu0 %v546
    %1321 = vmatprep.subr.bf16.mxu0 %v543
    %1322 = vmatpush1.bf16.msra.mxu0 %v542
    %1323 = vmatprep.subr.bf16.mxu0 %v539
    %1324 = vmatpush1.bf16.msra.mxu0 %v538
    %1325 = vmatprep.subr.bf16.mxu0 %v535
    %1326 = vmatpush1.bf16.msra.mxu0 %v534
    %1327 = vmatprep.subr.bf16.mxu0 %v531
    %1328 = vmatpush1.bf16.msra.mxu0 %v530
    %1329 = vmatprep.subr.bf16.mxu0 0
    %1330 = vmatpush2.bf16.msra.mxu0 0
    %1331 = vmatprep.subr.bf16.mxu0 0
    %1332 = vmatpush2.bf16.msra.mxu0 0
    %1333 = vmatprep.subr.bf16.mxu0 0
    %1334 = vmatpush2.bf16.msra.mxu0 0
    %1335 = vmatprep.subr.bf16.mxu0 0
    %1336 = vmatpush2.bf16.msra.mxu0 0
    %1337 = vmatprep.subr.bf16.mxu0 0
    %1338 = vmatpush2.bf16.msra.mxu0 0
    %1339 = vmatprep.subr.bf16.mxu0 0
    %1340 = vmatpush2.bf16.msra.mxu0 0
    %1341 = vmatprep.subr.bf16.mxu0 0
    %1342 = vmatpush2.bf16.msra.mxu0 0
    %1343 = vmatprep.subr.bf16.mxu0 0
    %1344 = vmatpush2.bf16.msra.mxu0 0
    %1345 = vmatprep.mubr.bf16.mxu0 0
    %1346 = vmatmul.mubr.bf16.gmra.mxu0 %v1269
    %v1347 = vpop.f32.mrf.mxu0
    %v1348 = vadd.f32 0.0, %v1347
    %v1349 = vpop.f32.mrf.mxu0
    %v1350 = vadd.f32 0.0, %v1349
    %v1351 = vpop.f32.mrf.mxu0
    %v1352 = vpop.f32.mrf.mxu0
    %1353 = vdwg.mxu0
    %v1354 = vadd.f32 %v392, %v1307
    %v1355 = vadd.f32 %v393, %v1309
    %v1356 = vadd.f32 %v394, %v1348
    %v1357 = vadd.f32 %v395, %v1350
    %v1358 = vxor.u32 %v1354, 2147483648
    %v1359 = vmul.f32 %v1358, 1.442695
    %v1360 = vpow.pop %v1359
    %v1361 = vadd.f32 %v1360, 1.0
    %v1362 = vrcp.pop %v1361
    %v1363 = vmul.f32 1.0, %v1362
    %v1364 = vxor.u32 %v1355, 2147483648
    %v1365 = vmul.f32 %v1364, 1.442695
    %v1366 = vpow.pop %v1365
    %v1367 = vadd.f32 %v1366, 1.0
    %v1368 = vrcp.pop %v1367
    %v1369 = vmul.f32 1.0, %v1368
    %v1370 = vtanh.pop %v1356
    %v1371 = vxor.u32 %v1357, 2147483648
    %v1372 = vmul.f32 %v1371, 1.442695
    %v1373 = vpow.pop %v1372
    %v1374 = vadd.f32 %v1373, 1.0
    %v1375 = vrcp.pop %v1374
    %v1376 = vmul.f32 1.0, %v1375
    %v1377 = vmul.f32 %v1369, %v1266
    %v1378 = vmul.f32 %v1363, %v1370
    %v1379 = vadd.f32 %v1377, %v1378
    %v1380 = vtanh.pop %v1379
    %v1381 = vmul.f32 %v1376, %v1380
    %v1382 = vpack.c.bf16 %v1381, %v1381
    %1383 = vst.msk [vmem:[#allocation2 + $0x18] sm:$0xf] %vm703, %v1382
    %1384 = vst.msk [vmem:[#allocation2 + $0x4] sm:$0xf] %vm705, %v1382
    %1385 = vmatprep.subr.bf16.mxu0 %v557
    %1386 = vmatpush1.bf16.msra.mxu0 %v556
    %1387 = vmatprep.subr.bf16.mxu0 %v553
    %1388 = vmatpush1.bf16.msra.mxu0 %v552
    %1389 = vmatprep.subr.bf16.mxu0 %v549
    %1390 = vmatpush1.bf16.msra.mxu0 %v548
    %1391 = vmatprep.subr.bf16.mxu0 %v545
    %1392 = vmatpush1.bf16.msra.mxu0 %v544
    %1393 = vmatprep.subr.bf16.mxu0 %v541
    %1394 = vmatpush1.bf16.msra.mxu0 %v540
    %1395 = vmatprep.subr.bf16.mxu0 %v537
    %1396 = vmatpush1.bf16.msra.mxu0 %v536
    %1397 = vmatprep.subr.bf16.mxu0 %v533
    %1398 = vmatpush1.bf16.msra.mxu0 %v532
    %1399 = vmatprep.subr.bf16.mxu0 %v529
    %1400 = vmatpush1.bf16.msra.mxu0 %v528
    %1401 = vmatprep.subr.bf16.mxu0 0
    %1402 = vmatpush2.bf16.msra.mxu0 0
    %1403 = vmatprep.subr.bf16.mxu0 0
    %1404 = vmatpush2.bf16.msra.mxu0 0
    %1405 = vmatprep.subr.bf16.mxu0 0
    %1406 = vmatpush2.bf16.msra.mxu0 0
    %1407 = vmatprep.subr.bf16.mxu0 0
    %1408 = vmatpush2.bf16.msra.mxu0 0
    %1409 = vmatprep.subr.bf16.mxu0 0
    %1410 = vmatpush2.bf16.msra.mxu0 0
    %1411 = vmatprep.subr.bf16.mxu0 0
    %1412 = vmatpush2.bf16.msra.mxu0 0
    %1413 = vmatprep.subr.bf16.mxu0 0
    %1414 = vmatpush2.bf16.msra.mxu0 0
    %1415 = vmatprep.subr.bf16.mxu0 0
    %1416 = vmatpush2.bf16.msra.mxu0 0
    %1417 = vmatprep.mubr.bf16.mxu0 0
    %1418 = vmatmul.mubr.bf16.gmra.mxu0 %v1382
    %v1419 = vpop.f32.mrf.mxu0
    %v1420 = vadd.f32 0.0, %v1419
    %v1421 = vpop.f32.mrf.mxu0
    %v1422 = vadd.f32 0.0, %v1421
    %v1423 = vpop.f32.mrf.mxu0
    %v1424 = vpop.f32.mrf.mxu0
    %1425 = vdwg.mxu0
    %1426 = vmatprep.subr.bf16.mxu0 %v559
    %1427 = vmatpush1.bf16.msra.mxu0 %v558
    %1428 = vmatprep.subr.bf16.mxu0 %v555
    %1429 = vmatpush1.bf16.msra.mxu0 %v554
    %1430 = vmatprep.subr.bf16.mxu0 %v551
    %1431 = vmatpush1.bf16.msra.mxu0 %v550
    %1432 = vmatprep.subr.bf16.mxu0 %v547
    %1433 = vmatpush1.bf16.msra.mxu0 %v546
    %1434 = vmatprep.subr.bf16.mxu0 %v543
    %1435 = vmatpush1.bf16.msra.mxu0 %v542
    %1436 = vmatprep.subr.bf16.mxu0 %v539
    %1437 = vmatpush1.bf16.msra.mxu0 %v538
    %1438 = vmatprep.subr.bf16.mxu0 %v535
    %1439 = vmatpush1.bf16.msra.mxu0 %v534
    %1440 = vmatprep.subr.bf16.mxu0 %v531
    %1441 = vmatpush1.bf16.msra.mxu0 %v530
    %1442 = vmatprep.subr.bf16.mxu0 0
    %1443 = vmatpush2.bf16.msra.mxu0 0
    %1444 = vmatprep.subr.bf16.mxu0 0
    %1445 = vmatpush2.bf16.msra.mxu0 0
    %1446 = vmatprep.subr.bf16.mxu0 0
    %1447 = vmatpush2.bf16.msra.mxu0 0
    %1448 = vmatprep.subr.bf16.mxu0 0
    %1449 = vmatpush2.bf16.msra.mxu0 0
    %1450 = vmatprep.subr.bf16.mxu0 0
    %1451 = vmatpush2.bf16.msra.mxu0 0
    %1452 = vmatprep.subr.bf16.mxu0 0
    %1453 = vmatpush2.bf16.msra.mxu0 0
    %1454 = vmatprep.subr.bf16.mxu0 0
    %1455 = vmatpush2.bf16.msra.mxu0 0
    %1456 = vmatprep.subr.bf16.mxu0 0
    %1457 = vmatpush2.bf16.msra.mxu0 0
    %1458 = vmatprep.mubr.bf16.mxu0 0
    %1459 = vmatmul.mubr.bf16.gmra.mxu0 %v1382
    %v1460 = vpop.f32.mrf.mxu0
    %v1461 = vadd.f32 0.0, %v1460
    %v1462 = vpop.f32.mrf.mxu0
    %v1463 = vadd.f32 0.0, %v1462
    %v1464 = vpop.f32.mrf.mxu0
    %v1465 = vpop.f32.mrf.mxu0
    %1466 = vdwg.mxu0
    %v1467 = vadd.f32 %v396, %v1420
    %v1468 = vadd.f32 %v397, %v1422
    %v1469 = vadd.f32 %v398, %v1461
    %v1470 = vadd.f32 %v399, %v1463
    %v1471 = vxor.u32 %v1467, 2147483648
    %v1472 = vmul.f32 %v1471, 1.442695
    %v1473 = vpow.pop %v1472
    %v1474 = vadd.f32 %v1473, 1.0
    %v1475 = vrcp.pop %v1474
    %v1476 = vmul.f32 1.0, %v1475
    %v1477 = vxor.u32 %v1468, 2147483648
    %v1478 = vmul.f32 %v1477, 1.442695
    %v1479 = vpow.pop %v1478
    %v1480 = vadd.f32 %v1479, 1.0
    %v1481 = vrcp.pop %v1480
    %v1482 = vmul.f32 1.0, %v1481
    %v1483 = vtanh.pop %v1469
    %v1484 = vxor.u32 %v1470, 2147483648
    %v1485 = vmul.f32 %v1484, 1.442695
    %v1486 = vpow.pop %v1485
    %v1487 = vadd.f32 %v1486, 1.0
    %v1488 = vrcp.pop %v1487
    %v1489 = vmul.f32 1.0, %v1488
    %v1490 = vmul.f32 %v1482, %v1379
    %v1491 = vmul.f32 %v1476, %v1483
    %v1492 = vadd.f32 %v1490, %v1491
    %v1493 = vtanh.pop %v1492
    %v1494 = vmul.f32 %v1489, %v1493
    %v1495 = vpack.c.bf16 %v1494, %v1494
    %1496 = vst.msk [vmem:[#allocation2 + $0x1c] sm:$0xf] %vm703, %v1495
    %1497 = vst.msk [vmem:[#allocation2] sm:$0xf] %vm705, %v1495
    %v1498 = vld [vmem:[#allocation2] sm:$0xf]
    %v1499 = vld [vmem:[#allocation2 + $0x4] sm:$0xf]
    %v1500 = vld [vmem:[#allocation2 + $0x8] sm:$0xf]
    %v1501 = vld [vmem:[#allocation2 + $0xc] sm:$0xf]
    %v1502 = vld [vmem:[#allocation2 + $0x10] sm:$0xf]
    %v1503 = vld [vmem:[#allocation2 + $0x14] sm:$0xf]
    %v1504 = vld [vmem:[#allocation2 + $0x18] sm:$0xf]
    %v1505 = vld [vmem:[#allocation2 + $0x1c] sm:$0xf]
    %v1506 = vld [vmem:[#allocation5] sm:$0xff]
    %v1507 = vld [vmem:[#allocation5 + $0x8] sm:$0xff]
    %v1508 = vld [vmem:[#allocation5 + $0x10] sm:$0xff]
    %v1509 = vld [vmem:[#allocation5 + $0x18] sm:$0xff]
    %v1510 = vld [vmem:[#allocation5 + $0x20] sm:$0xff]
    %v1511 = vld [vmem:[#allocation5 + $0x28] sm:$0xff]
    %v1512 = vld [vmem:[#allocation5 + $0x30] sm:$0xff]
    %v1513 = vld [vmem:[#allocation5 + $0x38] sm:$0xff]
    %v1514 = vld [vmem:[#allocation5 + $0x40] sm:$0xff]
    %v1515 = vld [vmem:[#allocation5 + $0x48] sm:$0xff]
    %v1516 = vld [vmem:[#allocation5 + $0x50] sm:$0xff]
    %v1517 = vld [vmem:[#allocation5 + $0x58] sm:$0xff]
    %v1518 = vld [vmem:[#allocation5 + $0x60] sm:$0xff]
    %v1519 = vld [vmem:[#allocation5 + $0x68] sm:$0xff]
    %v1520 = vld [vmem:[#allocation5 + $0x70] sm:$0xff]
    %v1521 = vld [vmem:[#allocation5 + $0x78] sm:$0xff]
    %v1522 = vld [vmem:[#allocation5 + $0x80] sm:$0xff]
    %v1523 = vld [vmem:[#allocation5 + $0x88] sm:$0xff]
    %v1524 = vld [vmem:[#allocation5 + $0x90] sm:$0xff]
    %v1525 = vld [vmem:[#allocation5 + $0x98] sm:$0xff]
    %v1526 = vld [vmem:[#allocation5 + $0xa0] sm:$0xff]
    %v1527 = vld [vmem:[#allocation5 + $0xa8] sm:$0xff]
    %v1528 = vld [vmem:[#allocation5 + $0xb0] sm:$0xff]
    %v1529 = vld [vmem:[#allocation5 + $0xb8] sm:$0xff]
    %v1530 = vld [vmem:[#allocation5 + $0xc0] sm:$0xff]
    %v1531 = vld [vmem:[#allocation5 + $0xc8] sm:$0xff]
    %v1532 = vld [vmem:[#allocation5 + $0xd0] sm:$0xff]
    %v1533 = vld [vmem:[#allocation5 + $0xd8] sm:$0xff]
    %v1534 = vld [vmem:[#allocation5 + $0xe0] sm:$0xff]
    %v1535 = vld [vmem:[#allocation5 + $0xe8] sm:$0xff]
    %v1536 = vld [vmem:[#allocation5 + $0xf0] sm:$0xff]
    %v1537 = vld [vmem:[#allocation5 + $0xf8] sm:$0xff]
    %v1538 = vld [vmem:[%s7] sm:$0xf]
    %v1540 = vlaneseq
    %v1541 = vshrl.u32 %v1540, 7
    %v1542 = vsub.s32 0, %v1541
    %v1543 = vrot.slane %v1538, %v1542
    %v1544 = vlaneseq
    %v1545 = vshrl.u32 %v1544, 7
    %v1546 = vsub.s32 1, %v1545
    %v1547 = vrot.slane %v1538, %v1546
    %v1548 = vlaneseq
    %v1549 = vshrl.u32 %v1548, 7
    %v1550 = vsub.s32 2, %v1549
    %v1551 = vrot.slane %v1538, %v1550
    %v1552 = vlaneseq
    %v1553 = vshrl.u32 %v1552, 7
    %v1554 = vsub.s32 3, %v1553
    %v1555 = vrot.slane %v1538, %v1554
    %v1568 = vunpack.c.l.b16 %v1498
    %v1569 = vunpack.c.l.b16 %v1499
    %v1570 = vunpack.c.l.b16 %v1500
    %v1571 = vunpack.c.l.b16 %v1501
    %v1572 = vunpack.c.l.b16 %v1502
    %v1573 = vunpack.c.l.b16 %v1503
    %v1574 = vunpack.c.l.b16 %v1504
    %v1575 = vunpack.c.l.b16 %v1505
    %v1576 = vpack.c.b16 %v1569, %v1568
    %v1577 = vpack.c.b16 %v1571, %v1570
    %v1578 = vpack.c.b16 %v1573, %v1572
    %v1579 = vpack.c.b16 %v1575, %v1574
    %v1616 = vunpack.c.l.b16 %v1506
    %v1617 = vunpack.c.h.b16 %v1506
    %v1618 = vunpack.c.l.b16 %v1507
    %v1619 = vunpack.c.h.b16 %v1507
    %v1620 = vunpack.c.l.b16 %v1508
    %v1621 = vunpack.c.h.b16 %v1508
    %v1622 = vunpack.c.l.b16 %v1509
    %v1623 = vunpack.c.h.b16 %v1509
    %v1624 = vunpack.c.l.b16 %v1510
    %v1625 = vunpack.c.h.b16 %v1510
    %v1626 = vunpack.c.l.b16 %v1511
    %v1627 = vunpack.c.h.b16 %v1511
    %v1628 = vunpack.c.l.b16 %v1512
    %v1629 = vunpack.c.h.b16 %v1512
    %v1630 = vunpack.c.l.b16 %v1513
    %v1631 = vunpack.c.h.b16 %v1513
    %v1632 = vunpack.c.l.b16 %v1514
    %v1633 = vunpack.c.h.b16 %v1514
    %v1634 = vunpack.c.l.b16 %v1515
    %v1635 = vunpack.c.h.b16 %v1515
    %v1636 = vunpack.c.l.b16 %v1516
    %v1637 = vunpack.c.h.b16 %v1516
    %v1638 = vunpack.c.l.b16 %v1517
    %v1639 = vunpack.c.h.b16 %v1517
    %v1640 = vunpack.c.l.b16 %v1518
    %v1641 = vunpack.c.h.b16 %v1518
    %v1642 = vunpack.c.l.b16 %v1519
    %v1643 = vunpack.c.h.b16 %v1519
    %v1644 = vunpack.c.l.b16 %v1520
    %v1645 = vunpack.c.h.b16 %v1520
    %v1646 = vunpack.c.l.b16 %v1521
    %v1647 = vunpack.c.h.b16 %v1521
    %v1648 = vunpack.c.l.b16 %v1522
    %v1649 = vunpack.c.h.b16 %v1522
    %v1650 = vunpack.c.l.b16 %v1523
    %v1651 = vunpack.c.h.b16 %v1523
    %v1652 = vunpack.c.l.b16 %v1524
    %v1653 = vunpack.c.h.b16 %v1524
    %v1654 = vunpack.c.l.b16 %v1525
    %v1655 = vunpack.c.h.b16 %v1525
    %v1656 = vunpack.c.l.b16 %v1526
    %v1657 = vunpack.c.h.b16 %v1526
    %v1658 = vunpack.c.l.b16 %v1527
    %v1659 = vunpack.c.h.b16 %v1527
    %v1660 = vunpack.c.l.b16 %v1528
    %v1661 = vunpack.c.h.b16 %v1528
    %v1662 = vunpack.c.l.b16 %v1529
    %v1663 = vunpack.c.h.b16 %v1529
    %v1664 = vunpack.c.l.b16 %v1530
    %v1665 = vunpack.c.h.b16 %v1530
    %v1666 = vunpack.c.l.b16 %v1531
    %v1667 = vunpack.c.h.b16 %v1531
    %v1668 = vunpack.c.l.b16 %v1532
    %v1669 = vunpack.c.h.b16 %v1532
    %v1670 = vunpack.c.l.b16 %v1533
    %v1671 = vunpack.c.h.b16 %v1533
    %v1672 = vunpack.c.l.b16 %v1534
    %v1673 = vunpack.c.h.b16 %v1534
    %v1674 = vunpack.c.l.b16 %v1535
    %v1675 = vunpack.c.h.b16 %v1535
    %v1676 = vunpack.c.l.b16 %v1536
    %v1677 = vunpack.c.h.b16 %v1536
    %v1678 = vunpack.c.l.b16 %v1537
    %v1679 = vunpack.c.h.b16 %v1537
    %v1680 = vpack.c.b16 %v1620, %v1616
    %v1681 = vpack.c.b16 %v1621, %v1617
    %v1682 = vpack.c.b16 %v1622, %v1618
    %v1683 = vpack.c.b16 %v1623, %v1619
    %v1684 = vpack.c.b16 %v1628, %v1624
    %v1685 = vpack.c.b16 %v1629, %v1625
    %v1686 = vpack.c.b16 %v1630, %v1626
    %v1687 = vpack.c.b16 %v1631, %v1627
    %v1688 = vpack.c.b16 %v1636, %v1632
    %v1689 = vpack.c.b16 %v1637, %v1633
    %v1690 = vpack.c.b16 %v1638, %v1634
    %v1691 = vpack.c.b16 %v1639, %v1635
    %v1692 = vpack.c.b16 %v1644, %v1640
    %v1693 = vpack.c.b16 %v1645, %v1641
    %v1694 = vpack.c.b16 %v1646, %v1642
    %v1695 = vpack.c.b16 %v1647, %v1643
    %v1696 = vpack.c.b16 %v1652, %v1648
    %v1697 = vpack.c.b16 %v1653, %v1649
    %v1698 = vpack.c.b16 %v1654, %v1650
    %v1699 = vpack.c.b16 %v1655, %v1651
    %v1700 = vpack.c.b16 %v1660, %v1656
    %v1701 = vpack.c.b16 %v1661, %v1657
    %v1702 = vpack.c.b16 %v1662, %v1658
    %v1703 = vpack.c.b16 %v1663, %v1659
    %v1704 = vpack.c.b16 %v1668, %v1664
    %v1705 = vpack.c.b16 %v1669, %v1665
    %v1706 = vpack.c.b16 %v1670, %v1666
    %v1707 = vpack.c.b16 %v1671, %v1667
    %v1708 = vpack.c.b16 %v1676, %v1672
    %v1709 = vpack.c.b16 %v1677, %v1673
    %v1710 = vpack.c.b16 %v1678, %v1674
    %v1711 = vpack.c.b16 %v1679, %v1675
    %1744 = vmatprep.subr.bf16.mxu0 %v1709
    %1745 = vmatpush1.bf16.msra.mxu0 %v1708
    %1746 = vmatprep.subr.bf16.mxu0 %v1705
    %1747 = vmatpush1.bf16.msra.mxu0 %v1704
    %1748 = vmatprep.subr.bf16.mxu0 %v1701
    %1749 = vmatpush1.bf16.msra.mxu0 %v1700
    %1750 = vmatprep.subr.bf16.mxu0 %v1697
    %1751 = vmatpush1.bf16.msra.mxu0 %v1696
    %1752 = vmatprep.subr.bf16.mxu0 %v1693
    %1753 = vmatpush1.bf16.msra.mxu0 %v1692
    %1754 = vmatprep.subr.bf16.mxu0 %v1689
    %1755 = vmatpush1.bf16.msra.mxu0 %v1688
    %1756 = vmatprep.subr.bf16.mxu0 %v1685
    %1757 = vmatpush1.bf16.msra.mxu0 %v1684
    %1758 = vmatprep.subr.bf16.mxu0 %v1681
    %1759 = vmatpush1.bf16.msra.mxu0 %v1680
    %1760 = vmatprep.subr.bf16.mxu0 0
    %1761 = vmatpush2.bf16.msra.mxu0 0
    %1762 = vmatprep.subr.bf16.mxu0 0
    %1763 = vmatpush2.bf16.msra.mxu0 0
    %1764 = vmatprep.subr.bf16.mxu0 0
    %1765 = vmatpush2.bf16.msra.mxu0 0
    %1766 = vmatprep.subr.bf16.mxu0 0
    %1767 = vmatpush2.bf16.msra.mxu0 0
    %1768 = vmatprep.subr.bf16.mxu0 0
    %1769 = vmatpush2.bf16.msra.mxu0 0
    %1770 = vmatprep.subr.bf16.mxu0 0
    %1771 = vmatpush2.bf16.msra.mxu0 0
    %1772 = vmatprep.subr.bf16.mxu0 0
    %1773 = vmatpush2.bf16.msra.mxu0 0
    %1774 = vmatprep.subr.bf16.mxu0 0
    %1775 = vmatpush2.bf16.msra.mxu0 0
    %1776 = vmatprep.mubr.bf16.mxu0 0
    %1777 = vmatmul.mubr.bf16.gmra.mxu0 %v1576
    %v1778 = vpop.f32.mrf.mxu0
    %v1779 = vadd.f32 %v1543, %v1778
    %v1780 = vpop.f32.mrf.mxu0
    %v1781 = vadd.f32 %v1547, %v1780
    %v1782 = vpop.f32.mrf.mxu0
    %v1783 = vadd.f32 %v1543, %v1782
    %v1784 = vpop.f32.mrf.mxu0
    %v1785 = vadd.f32 %v1547, %v1784
    %1786 = vmatprep.mubr.bf16.mxu0 0
    %1787 = vmatmul.mubr.bf16.gmra.mxu0 %v1577
    %v1788 = vpop.f32.mrf.mxu0
    %v1789 = vadd.f32 %v1543, %v1788
    %v1790 = vpop.f32.mrf.mxu0
    %v1791 = vadd.f32 %v1547, %v1790
    %v1792 = vpop.f32.mrf.mxu0
    %v1793 = vadd.f32 %v1543, %v1792
    %v1794 = vpop.f32.mrf.mxu0
    %v1795 = vadd.f32 %v1547, %v1794
    %1796 = vmatprep.mubr.bf16.mxu0 0
    %1797 = vmatmul.mubr.bf16.gmra.mxu0 %v1578
    %v1798 = vpop.f32.mrf.mxu0
    %v1799 = vadd.f32 %v1543, %v1798
    %v1800 = vpop.f32.mrf.mxu0
    %v1801 = vadd.f32 %v1547, %v1800
    %v1802 = vpop.f32.mrf.mxu0
    %v1803 = vadd.f32 %v1543, %v1802
    %v1804 = vpop.f32.mrf.mxu0
    %v1805 = vadd.f32 %v1547, %v1804
    %1806 = vmatprep.mubr.bf16.mxu0 0
    %1807 = vmatmul.mubr.bf16.gmra.mxu0 %v1579
    %v1808 = vpop.f32.mrf.mxu0
    %v1809 = vadd.f32 %v1543, %v1808
    %v1810 = vpop.f32.mrf.mxu0
    %v1811 = vadd.f32 %v1547, %v1810
    %v1812 = vpop.f32.mrf.mxu0
    %v1813 = vadd.f32 %v1543, %v1812
    %v1814 = vpop.f32.mrf.mxu0
    %v1815 = vadd.f32 %v1547, %v1814
    %1816 = vdwg.mxu0
    %1817 = vmatprep.subr.bf16.mxu0 %v1711
    %1818 = vmatpush1.bf16.msra.mxu0 %v1710
    %1819 = vmatprep.subr.bf16.mxu0 %v1707
    %1820 = vmatpush1.bf16.msra.mxu0 %v1706
    %1821 = vmatprep.subr.bf16.mxu0 %v1703
    %1822 = vmatpush1.bf16.msra.mxu0 %v1702
    %1823 = vmatprep.subr.bf16.mxu0 %v1699
    %1824 = vmatpush1.bf16.msra.mxu0 %v1698
    %1825 = vmatprep.subr.bf16.mxu0 %v1695
    %1826 = vmatpush1.bf16.msra.mxu0 %v1694
    %1827 = vmatprep.subr.bf16.mxu0 %v1691
    %1828 = vmatpush1.bf16.msra.mxu0 %v1690
    %1829 = vmatprep.subr.bf16.mxu0 %v1687
    %1830 = vmatpush1.bf16.msra.mxu0 %v1686
    %1831 = vmatprep.subr.bf16.mxu0 %v1683
    %1832 = vmatpush1.bf16.msra.mxu0 %v1682
    %1833 = vmatprep.subr.bf16.mxu0 0
    %1834 = vmatpush2.bf16.msra.mxu0 0
    %1835 = vmatprep.subr.bf16.mxu0 0
    %1836 = vmatpush2.bf16.msra.mxu0 0
    %1837 = vmatprep.subr.bf16.mxu0 0
    %1838 = vmatpush2.bf16.msra.mxu0 0
    %1839 = vmatprep.subr.bf16.mxu0 0
    %1840 = vmatpush2.bf16.msra.mxu0 0
    %1841 = vmatprep.subr.bf16.mxu0 0
    %1842 = vmatpush2.bf16.msra.mxu0 0
    %1843 = vmatprep.subr.bf16.mxu0 0
    %1844 = vmatpush2.bf16.msra.mxu0 0
    %1845 = vmatprep.subr.bf16.mxu0 0
    %1846 = vmatpush2.bf16.msra.mxu0 0
    %1847 = vmatprep.subr.bf16.mxu0 0
    %1848 = vmatpush2.bf16.msra.mxu0 0
    %1849 = vmatprep.mubr.bf16.mxu0 0
    %1850 = vmatmul.mubr.bf16.gmra.mxu0 %v1576
    %v1851 = vpop.f32.mrf.mxu0
    %v1852 = vadd.f32 %v1551, %v1851
    %v1853 = vpop.f32.mrf.mxu0
    %v1854 = vadd.f32 %v1555, %v1853
    %v1855 = vpop.f32.mrf.mxu0
    %v1856 = vadd.f32 %v1551, %v1855
    %v1857 = vpop.f32.mrf.mxu0
    %v1858 = vadd.f32 %v1555, %v1857
    %1859 = vmatprep.mubr.bf16.mxu0 0
    %1860 = vmatmul.mubr.bf16.gmra.mxu0 %v1577
    %v1861 = vpop.f32.mrf.mxu0
    %v1862 = vadd.f32 %v1551, %v1861
    %v1863 = vpop.f32.mrf.mxu0
    %v1864 = vadd.f32 %v1555, %v1863
    %v1865 = vpop.f32.mrf.mxu0
    %v1866 = vadd.f32 %v1551, %v1865
    %v1867 = vpop.f32.mrf.mxu0
    %v1868 = vadd.f32 %v1555, %v1867
    %1869 = vmatprep.mubr.bf16.mxu0 0
    %1870 = vmatmul.mubr.bf16.gmra.mxu0 %v1578
    %v1871 = vpop.f32.mrf.mxu0
    %v1872 = vadd.f32 %v1551, %v1871
    %v1873 = vpop.f32.mrf.mxu0
    %v1874 = vadd.f32 %v1555, %v1873
    %v1875 = vpop.f32.mrf.mxu0
    %v1876 = vadd.f32 %v1551, %v1875
    %v1877 = vpop.f32.mrf.mxu0
    %v1878 = vadd.f32 %v1555, %v1877
    %1879 = vmatprep.mubr.bf16.mxu0 0
    %1880 = vmatmul.mubr.bf16.gmra.mxu0 %v1579
    %v1881 = vpop.f32.mrf.mxu0
    %v1882 = vadd.f32 %v1551, %v1881
    %v1883 = vpop.f32.mrf.mxu0
    %v1884 = vadd.f32 %v1555, %v1883
    %v1885 = vpop.f32.mrf.mxu0
    %v1886 = vadd.f32 %v1551, %v1885
    %v1887 = vpop.f32.mrf.mxu0
    %v1888 = vadd.f32 %v1555, %v1887
    %1889 = vdwg.mxu0
    %v1890 = vsel %vm131, %v1779, %v1813
    %v1891 = vsel %vm132, %v1781, %v1815
    %v1892 = vsel %vm133, %v1852, %v1886
    %v1893 = vsel %vm134, %v1854, %v1888
    %v1894 = vsel %vm131, %v1783, %v1809
    %v1895 = vsel %vm132, %v1785, %v1811
    %v1896 = vsel %vm133, %v1856, %v1882
    %v1897 = vsel %vm134, %v1858, %v1884
    %v1898 = vsel %vm131, %v1789, %v1803
    %v1899 = vsel %vm132, %v1791, %v1805
    %v1900 = vsel %vm133, %v1862, %v1876
    %v1901 = vsel %vm134, %v1864, %v1878
    %v1902 = vsel %vm131, %v1793, %v1799
    %v1903 = vsel %vm132, %v1795, %v1801
    %v1904 = vsel %vm133, %v1866, %v1872
    %v1905 = vsel %vm134, %v1868, %v1874
    %v1906 = vsel %vm131, %v1799, %v1793
    %v1907 = vsel %vm132, %v1801, %v1795
    %v1908 = vsel %vm133, %v1872, %v1866
    %v1909 = vsel %vm134, %v1874, %v1868
    %v1910 = vsel %vm131, %v1803, %v1789
    %v1911 = vsel %vm132, %v1805, %v1791
    %v1912 = vsel %vm133, %v1876, %v1862
    %v1913 = vsel %vm134, %v1878, %v1864
    %v1914 = vsel %vm131, %v1809, %v1783
    %v1915 = vsel %vm132, %v1811, %v1785
    %v1916 = vsel %vm133, %v1882, %v1856
    %v1917 = vsel %vm134, %v1884, %v1858
    %v1918 = vsel %vm131, %v1813, %v1779
    %v1919 = vsel %vm132, %v1815, %v1781
    %v1920 = vsel %vm133, %v1886, %v1852
    %v1921 = vsel %vm134, %v1888, %v1854
    %v1922 = vld [vmem:[#allocation7] sm:$0xff]
    %v1923 = vld [vmem:[#allocation7 + $0x8] sm:$0xff]
    %v1924 = vld [vmem:[#allocation7 + $0x10] sm:$0xff]
    %v1925 = vld [vmem:[#allocation7 + $0x18] sm:$0xff]
    %v1926 = vld [vmem:[#allocation7 + $0x20] sm:$0xff]
    %v1927 = vld [vmem:[#allocation7 + $0x28] sm:$0xff]
    %v1928 = vld [vmem:[#allocation7 + $0x30] sm:$0xff]
    %v1929 = vld [vmem:[#allocation7 + $0x38] sm:$0xff]
    %v1930 = vld [vmem:[#allocation7 + $0x40] sm:$0xff]
    %v1931 = vld [vmem:[#allocation7 + $0x48] sm:$0xff]
    %v1932 = vld [vmem:[#allocation7 + $0x50] sm:$0xff]
    %v1933 = vld [vmem:[#allocation7 + $0x58] sm:$0xff]
    %v1934 = vld [vmem:[#allocation7 + $0x60] sm:$0xff]
    %v1935 = vld [vmem:[#allocation7 + $0x68] sm:$0xff]
    %v1936 = vld [vmem:[#allocation7 + $0x70] sm:$0xff]
    %v1937 = vld [vmem:[#allocation7 + $0x78] sm:$0xff]
    %v1938 = vld [vmem:[#allocation7 + $0x80] sm:$0xff]
    %v1939 = vld [vmem:[#allocation7 + $0x88] sm:$0xff]
    %v1940 = vld [vmem:[#allocation7 + $0x90] sm:$0xff]
    %v1941 = vld [vmem:[#allocation7 + $0x98] sm:$0xff]
    %v1942 = vld [vmem:[#allocation7 + $0xa0] sm:$0xff]
    %v1943 = vld [vmem:[#allocation7 + $0xa8] sm:$0xff]
    %v1944 = vld [vmem:[#allocation7 + $0xb0] sm:$0xff]
    %v1945 = vld [vmem:[#allocation7 + $0xb8] sm:$0xff]
    %v1946 = vld [vmem:[#allocation7 + $0xc0] sm:$0xff]
    %v1947 = vld [vmem:[#allocation7 + $0xc8] sm:$0xff]
    %v1948 = vld [vmem:[#allocation7 + $0xd0] sm:$0xff]
    %v1949 = vld [vmem:[#allocation7 + $0xd8] sm:$0xff]
    %v1950 = vld [vmem:[#allocation7 + $0xe0] sm:$0xff]
    %v1951 = vld [vmem:[#allocation7 + $0xe8] sm:$0xff]
    %v1952 = vld [vmem:[#allocation7 + $0xf0] sm:$0xff]
    %v1953 = vld [vmem:[#allocation7 + $0xf8] sm:$0xff]
    %v1986 = vunpack.c.l.b16 %v1922
    %v1987 = vunpack.c.h.b16 %v1922
    %v1988 = vunpack.c.l.b16 %v1923
    %v1989 = vunpack.c.h.b16 %v1923
    %v1990 = vunpack.c.l.b16 %v1924
    %v1991 = vunpack.c.h.b16 %v1924
    %v1992 = vunpack.c.l.b16 %v1925
    %v1993 = vunpack.c.h.b16 %v1925
    %v1994 = vunpack.c.l.b16 %v1926
    %v1995 = vunpack.c.h.b16 %v1926
    %v1996 = vunpack.c.l.b16 %v1927
    %v1997 = vunpack.c.h.b16 %v1927
    %v1998 = vunpack.c.l.b16 %v1928
    %v1999 = vunpack.c.h.b16 %v1928
    %v2000 = vunpack.c.l.b16 %v1929
    %v2001 = vunpack.c.h.b16 %v1929
    %v2002 = vunpack.c.l.b16 %v1930
    %v2003 = vunpack.c.h.b16 %v1930
    %v2004 = vunpack.c.l.b16 %v1931
    %v2005 = vunpack.c.h.b16 %v1931
    %v2006 = vunpack.c.l.b16 %v1932
    %v2007 = vunpack.c.h.b16 %v1932
    %v2008 = vunpack.c.l.b16 %v1933
    %v2009 = vunpack.c.h.b16 %v1933
    %v2010 = vunpack.c.l.b16 %v1934
    %v2011 = vunpack.c.h.b16 %v1934
    %v2012 = vunpack.c.l.b16 %v1935
    %v2013 = vunpack.c.h.b16 %v1935
    %v2014 = vunpack.c.l.b16 %v1936
    %v2015 = vunpack.c.h.b16 %v1936
    %v2016 = vunpack.c.l.b16 %v1937
    %v2017 = vunpack.c.h.b16 %v1937
    %v2018 = vunpack.c.l.b16 %v1938
    %v2019 = vunpack.c.h.b16 %v1938
    %v2020 = vunpack.c.l.b16 %v1939
    %v2021 = vunpack.c.h.b16 %v1939
    %v2022 = vunpack.c.l.b16 %v1940
    %v2023 = vunpack.c.h.b16 %v1940
    %v2024 = vunpack.c.l.b16 %v1941
    %v2025 = vunpack.c.h.b16 %v1941
    %v2026 = vunpack.c.l.b16 %v1942
    %v2027 = vunpack.c.h.b16 %v1942
    %v2028 = vunpack.c.l.b16 %v1943
    %v2029 = vunpack.c.h.b16 %v1943
    %v2030 = vunpack.c.l.b16 %v1944
    %v2031 = vunpack.c.h.b16 %v1944
    %v2032 = vunpack.c.l.b16 %v1945
    %v2033 = vunpack.c.h.b16 %v1945
    %v2034 = vunpack.c.l.b16 %v1946
    %v2035 = vunpack.c.h.b16 %v1946
    %v2036 = vunpack.c.l.b16 %v1947
    %v2037 = vunpack.c.h.b16 %v1947
    %v2038 = vunpack.c.l.b16 %v1948
    %v2039 = vunpack.c.h.b16 %v1948
    %v2040 = vunpack.c.l.b16 %v1949
    %v2041 = vunpack.c.h.b16 %v1949
    %v2042 = vunpack.c.l.b16 %v1950
    %v2043 = vunpack.c.h.b16 %v1950
    %v2044 = vunpack.c.l.b16 %v1951
    %v2045 = vunpack.c.h.b16 %v1951
    %v2046 = vunpack.c.l.b16 %v1952
    %v2047 = vunpack.c.h.b16 %v1952
    %v2048 = vunpack.c.l.b16 %v1953
    %v2049 = vunpack.c.h.b16 %v1953
    %v2050 = vpack.c.b16 %v1990, %v1986
    %v2051 = vpack.c.b16 %v1991, %v1987
    %v2052 = vpack.c.b16 %v1992, %v1988
    %v2053 = vpack.c.b16 %v1993, %v1989
    %v2054 = vpack.c.b16 %v1998, %v1994
    %v2055 = vpack.c.b16 %v1999, %v1995
    %v2056 = vpack.c.b16 %v2000, %v1996
    %v2057 = vpack.c.b16 %v2001, %v1997
    %v2058 = vpack.c.b16 %v2006, %v2002
    %v2059 = vpack.c.b16 %v2007, %v2003
    %v2060 = vpack.c.b16 %v2008, %v2004
    %v2061 = vpack.c.b16 %v2009, %v2005
    %v2062 = vpack.c.b16 %v2014, %v2010
    %v2063 = vpack.c.b16 %v2015, %v2011
    %v2064 = vpack.c.b16 %v2016, %v2012
    %v2065 = vpack.c.b16 %v2017, %v2013
    %v2066 = vpack.c.b16 %v2022, %v2018
    %v2067 = vpack.c.b16 %v2023, %v2019
    %v2068 = vpack.c.b16 %v2024, %v2020
    %v2069 = vpack.c.b16 %v2025, %v2021
    %v2070 = vpack.c.b16 %v2030, %v2026
    %v2071 = vpack.c.b16 %v2031, %v2027
    %v2072 = vpack.c.b16 %v2032, %v2028
    %v2073 = vpack.c.b16 %v2033, %v2029
    %v2074 = vpack.c.b16 %v2038, %v2034
    %v2075 = vpack.c.b16 %v2039, %v2035
    %v2076 = vpack.c.b16 %v2040, %v2036
    %v2077 = vpack.c.b16 %v2041, %v2037
    %v2078 = vpack.c.b16 %v2046, %v2042
    %v2079 = vpack.c.b16 %v2047, %v2043
    %v2080 = vpack.c.b16 %v2048, %v2044
    %v2081 = vpack.c.b16 %v2049, %v2045
    %2114 = vmatprep.subr.bf16.mxu0 %v2079
    %2115 = vmatpush1.bf16.msra.mxu0 %v2078
    %2116 = vmatprep.subr.bf16.mxu0 %v2075
    %2117 = vmatpush1.bf16.msra.mxu0 %v2074
    %2118 = vmatprep.subr.bf16.mxu0 %v2071
    %2119 = vmatpush1.bf16.msra.mxu0 %v2070
    %2120 = vmatprep.subr.bf16.mxu0 %v2067
    %2121 = vmatpush1.bf16.msra.mxu0 %v2066
    %2122 = vmatprep.subr.bf16.mxu0 %v2063
    %2123 = vmatpush1.bf16.msra.mxu0 %v2062
    %2124 = vmatprep.subr.bf16.mxu0 %v2059
    %2125 = vmatpush1.bf16.msra.mxu0 %v2058
    %2126 = vmatprep.subr.bf16.mxu0 %v2055
    %2127 = vmatpush1.bf16.msra.mxu0 %v2054
    %2128 = vmatprep.subr.bf16.mxu0 %v2051
    %2129 = vmatpush1.bf16.msra.mxu0 %v2050
    %2130 = vmatprep.subr.bf16.mxu0 0
    %2131 = vmatpush2.bf16.msra.mxu0 0
    %2132 = vmatprep.subr.bf16.mxu0 0
    %2133 = vmatpush2.bf16.msra.mxu0 0
    %2134 = vmatprep.subr.bf16.mxu0 0
    %2135 = vmatpush2.bf16.msra.mxu0 0
    %2136 = vmatprep.subr.bf16.mxu0 0
    %2137 = vmatpush2.bf16.msra.mxu0 0
    %2138 = vmatprep.subr.bf16.mxu0 0
    %2139 = vmatpush2.bf16.msra.mxu0 0
    %2140 = vmatprep.subr.bf16.mxu0 0
    %2141 = vmatpush2.bf16.msra.mxu0 0
    %2142 = vmatprep.subr.bf16.mxu0 0
    %2143 = vmatpush2.bf16.msra.mxu0 0
    %2144 = vmatprep.subr.bf16.mxu0 0
    %2145 = vmatpush2.bf16.msra.mxu0 0
    %2146 = vmatprep.mubr.bf16.mxu0 0
    %2147 = vmatmul.mubr.bf16.gmra.mxu0 0
    %v2148 = vpop.f32.mrf.mxu0
    %v2149 = vadd.f32 0.0, %v2148
    %v2150 = vpop.f32.mrf.mxu0
    %v2151 = vadd.f32 0.0, %v2150
    %v2152 = vpop.f32.mrf.mxu0
    %v2153 = vpop.f32.mrf.mxu0
    %2154 = vdwg.mxu0
    %2155 = vmatprep.subr.bf16.mxu0 %v2081
    %2156 = vmatpush1.bf16.msra.mxu0 %v2080
    %2157 = vmatprep.subr.bf16.mxu0 %v2077
    %2158 = vmatpush1.bf16.msra.mxu0 %v2076
    %2159 = vmatprep.subr.bf16.mxu0 %v2073
    %2160 = vmatpush1.bf16.msra.mxu0 %v2072
    %2161 = vmatprep.subr.bf16.mxu0 %v2069
    %2162 = vmatpush1.bf16.msra.mxu0 %v2068
    %2163 = vmatprep.subr.bf16.mxu0 %v2065
    %2164 = vmatpush1.bf16.msra.mxu0 %v2064
    %2165 = vmatprep.subr.bf16.mxu0 %v2061
    %2166 = vmatpush1.bf16.msra.mxu0 %v2060
    %2167 = vmatprep.subr.bf16.mxu0 %v2057
    %2168 = vmatpush1.bf16.msra.mxu0 %v2056
    %2169 = vmatprep.subr.bf16.mxu0 %v2053
    %2170 = vmatpush1.bf16.msra.mxu0 %v2052
    %2171 = vmatprep.subr.bf16.mxu0 0
    %2172 = vmatpush2.bf16.msra.mxu0 0
    %2173 = vmatprep.subr.bf16.mxu0 0
    %2174 = vmatpush2.bf16.msra.mxu0 0
    %2175 = vmatprep.subr.bf16.mxu0 0
    %2176 = vmatpush2.bf16.msra.mxu0 0
    %2177 = vmatprep.subr.bf16.mxu0 0
    %2178 = vmatpush2.bf16.msra.mxu0 0
    %2179 = vmatprep.subr.bf16.mxu0 0
    %2180 = vmatpush2.bf16.msra.mxu0 0
    %2181 = vmatprep.subr.bf16.mxu0 0
    %2182 = vmatpush2.bf16.msra.mxu0 0
    %2183 = vmatprep.subr.bf16.mxu0 0
    %2184 = vmatpush2.bf16.msra.mxu0 0
    %2185 = vmatprep.subr.bf16.mxu0 0
    %2186 = vmatpush2.bf16.msra.mxu0 0
    %2187 = vmatprep.mubr.bf16.mxu0 0
    %2188 = vmatmul.mubr.bf16.gmra.mxu0 0
    %v2189 = vpop.f32.mrf.mxu0
    %v2190 = vadd.f32 0.0, %v2189
    %v2191 = vpop.f32.mrf.mxu0
    %v2192 = vadd.f32 0.0, %v2191
    %v2193 = vpop.f32.mrf.mxu0
    %v2194 = vpop.f32.mrf.mxu0
    %2195 = vdwg.mxu0
    %v2196 = vadd.f32 %v1890, %v2149
    %v2197 = vadd.f32 %v1891, %v2151
    %v2198 = vadd.f32 %v1892, %v2190
    %v2199 = vadd.f32 %v1893, %v2192
    %v2200 = vxor.u32 %v2196, 2147483648
    %v2201 = vmul.f32 %v2200, 1.442695
    %v2202 = vpow.pop %v2201
    %v2203 = vadd.f32 %v2202, 1.0
    %v2204 = vrcp.pop %v2203
    %v2205 = vmul.f32 1.0, %v2204
    %v2206 = vxor.u32 %v2197, 2147483648
    %v2207 = vmul.f32 %v2206, 1.442695
    %v2208 = vpow.pop %v2207
    %v2209 = vadd.f32 %v2208, 1.0
    %v2210 = vrcp.pop %v2209
    %v2211 = vmul.f32 1.0, %v2210
    %v2212 = vtanh.pop %v2198
    %v2213 = vxor.u32 %v2199, 2147483648
    %v2214 = vmul.f32 %v2213, 1.442695
    %v2215 = vpow.pop %v2214
    %v2216 = vadd.f32 %v2215, 1.0
    %v2217 = vrcp.pop %v2216
    %v2218 = vmul.f32 1.0, %v2217
    %v2219 = vmul.f32 %v2211, 0.0
    %v2220 = vmul.f32 %v2205, %v2212
    %v2221 = vadd.f32 %v2219, %v2220
    %v2222 = vtanh.pop %v2221
    %v2223 = vmul.f32 %v2218, %v2222
    %vm2224 = vcmp.eq.s32.totalorder %v77, 1
    %v2225 = vsel %vm2224, 1, 0
    %2226 = vset.pattern.permute.xlu0 0
    %2227 = vperm.xlu0 %2226, %v2225
    %v2228 = vpop.permute.xlu0 %2227
    %vm2229 = vcmp.eq.s32.totalorder %v2228, 1
    %v2230 = vsel %vm2229, %v2223, 0.0
    %v2231 = vpack.c.bf16 %v2223, %v2223
    %2232 = vmatprep.subr.bf16.mxu0 %v2079
    %2233 = vmatpush1.bf16.msra.mxu0 %v2078
    %2234 = vmatprep.subr.bf16.mxu0 %v2075
    %2235 = vmatpush1.bf16.msra.mxu0 %v2074
    %2236 = vmatprep.subr.bf16.mxu0 %v2071
    %2237 = vmatpush1.bf16.msra.mxu0 %v2070
    %2238 = vmatprep.subr.bf16.mxu0 %v2067
    %2239 = vmatpush1.bf16.msra.mxu0 %v2066
    %2240 = vmatprep.subr.bf16.mxu0 %v2063
    %2241 = vmatpush1.bf16.msra.mxu0 %v2062
    %2242 = vmatprep.subr.bf16.mxu0 %v2059
    %2243 = vmatpush1.bf16.msra.mxu0 %v2058
    %2244 = vmatprep.subr.bf16.mxu0 %v2055
    %2245 = vmatpush1.bf16.msra.mxu0 %v2054
    %2246 = vmatprep.subr.bf16.mxu0 %v2051
    %2247 = vmatpush1.bf16.msra.mxu0 %v2050
    %2248 = vmatprep.subr.bf16.mxu0 0
    %2249 = vmatpush2.bf16.msra.mxu0 0
    %2250 = vmatprep.subr.bf16.mxu0 0
    %2251 = vmatpush2.bf16.msra.mxu0 0
    %2252 = vmatprep.subr.bf16.mxu0 0
    %2253 = vmatpush2.bf16.msra.mxu0 0
    %2254 = vmatprep.subr.bf16.mxu0 0
    %2255 = vmatpush2.bf16.msra.mxu0 0
    %2256 = vmatprep.subr.bf16.mxu0 0
    %2257 = vmatpush2.bf16.msra.mxu0 0
    %2258 = vmatprep.subr.bf16.mxu0 0
    %2259 = vmatpush2.bf16.msra.mxu0 0
    %2260 = vmatprep.subr.bf16.mxu0 0
    %2261 = vmatpush2.bf16.msra.mxu0 0
    %2262 = vmatprep.subr.bf16.mxu0 0
    %2263 = vmatpush2.bf16.msra.mxu0 0
    %2264 = vmatprep.mubr.bf16.mxu0 0
    %2265 = vmatmul.mubr.bf16.gmra.mxu0 %v2231
    %v2266 = vpop.f32.mrf.mxu0
    %v2267 = vadd.f32 0.0, %v2266
    %v2268 = vpop.f32.mrf.mxu0
    %v2269 = vadd.f32 0.0, %v2268
    %v2270 = vpop.f32.mrf.mxu0
    %v2271 = vpop.f32.mrf.mxu0
    %2272 = vdwg.mxu0
    %2273 = vmatprep.subr.bf16.mxu0 %v2081
    %2274 = vmatpush1.bf16.msra.mxu0 %v2080
    %2275 = vmatprep.subr.bf16.mxu0 %v2077
    %2276 = vmatpush1.bf16.msra.mxu0 %v2076
    %2277 = vmatprep.subr.bf16.mxu0 %v2073
    %2278 = vmatpush1.bf16.msra.mxu0 %v2072
    %2279 = vmatprep.subr.bf16.mxu0 %v2069
    %2280 = vmatpush1.bf16.msra.mxu0 %v2068
    %2281 = vmatprep.subr.bf16.mxu0 %v2065
    %2282 = vmatpush1.bf16.msra.mxu0 %v2064
    %2283 = vmatprep.subr.bf16.mxu0 %v2061
    %2284 = vmatpush1.bf16.msra.mxu0 %v2060
    %2285 = vmatprep.subr.bf16.mxu0 %v2057
    %2286 = vmatpush1.bf16.msra.mxu0 %v2056
    %2287 = vmatprep.subr.bf16.mxu0 %v2053
    %2288 = vmatpush1.bf16.msra.mxu0 %v2052
    %2289 = vmatprep.subr.bf16.mxu0 0
    %2290 = vmatpush2.bf16.msra.mxu0 0
    %2291 = vmatprep.subr.bf16.mxu0 0
    %2292 = vmatpush2.bf16.msra.mxu0 0
    %2293 = vmatprep.subr.bf16.mxu0 0
    %2294 = vmatpush2.bf16.msra.mxu0 0
    %2295 = vmatprep.subr.bf16.mxu0 0
    %2296 = vmatpush2.bf16.msra.mxu0 0
    %2297 = vmatprep.subr.bf16.mxu0 0
    %2298 = vmatpush2.bf16.msra.mxu0 0
    %2299 = vmatprep.subr.bf16.mxu0 0
    %2300 = vmatpush2.bf16.msra.mxu0 0
    %2301 = vmatprep.subr.bf16.mxu0 0
    %2302 = vmatpush2.bf16.msra.mxu0 0
    %2303 = vmatprep.subr.bf16.mxu0 0
    %2304 = vmatpush2.bf16.msra.mxu0 0
    %2305 = vmatprep.mubr.bf16.mxu0 0
    %2306 = vmatmul.mubr.bf16.gmra.mxu0 %v2231
    %v2307 = vpop.f32.mrf.mxu0
    %v2308 = vadd.f32 0.0, %v2307
    %v2309 = vpop.f32.mrf.mxu0
    %v2310 = vadd.f32 0.0, %v2309
    %v2311 = vpop.f32.mrf.mxu0
    %v2312 = vpop.f32.mrf.mxu0
    %2313 = vdwg.mxu0
    %v2314 = vadd.f32 %v1894, %v2267
    %v2315 = vadd.f32 %v1895, %v2269
    %v2316 = vadd.f32 %v1896, %v2308
    %v2317 = vadd.f32 %v1897, %v2310
    %v2318 = vxor.u32 %v2314, 2147483648
    %v2319 = vmul.f32 %v2318, 1.442695
    %v2320 = vpow.pop %v2319
    %v2321 = vadd.f32 %v2320, 1.0
    %v2322 = vrcp.pop %v2321
    %v2323 = vmul.f32 1.0, %v2322
    %v2324 = vxor.u32 %v2315, 2147483648
    %v2325 = vmul.f32 %v2324, 1.442695
    %v2326 = vpow.pop %v2325
    %v2327 = vadd.f32 %v2326, 1.0
    %v2328 = vrcp.pop %v2327
    %v2329 = vmul.f32 1.0, %v2328
    %v2330 = vtanh.pop %v2316
    %v2331 = vxor.u32 %v2317, 2147483648
    %v2332 = vmul.f32 %v2331, 1.442695
    %v2333 = vpow.pop %v2332
    %v2334 = vadd.f32 %v2333, 1.0
    %v2335 = vrcp.pop %v2334
    %v2336 = vmul.f32 1.0, %v2335
    %v2337 = vmul.f32 %v2329, %v2221
    %v2338 = vmul.f32 %v2323, %v2330
    %v2339 = vadd.f32 %v2337, %v2338
    %v2340 = vtanh.pop %v2339
    %v2341 = vmul.f32 %v2336, %v2340
    %vm2342 = vcmp.eq.s32.totalorder %v77, 2
    %v2343 = vsel %vm2342, 1, 0
    %2344 = vset.pattern.permute.xlu0 0
    %2345 = vperm.xlu0 %2344, %v2343
    %v2346 = vpop.permute.xlu0 %2345
    %vm2347 = vcmp.eq.s32.totalorder %v2346, 1
    %v2348 = vsel %vm2347, %v2341, %v2230
    %v2349 = vpack.c.bf16 %v2341, %v2341
    %2350 = vmatprep.subr.bf16.mxu0 %v2079
    %2351 = vmatpush1.bf16.msra.mxu0 %v2078
    %2352 = vmatprep.subr.bf16.mxu0 %v2075
    %2353 = vmatpush1.bf16.msra.mxu0 %v2074
    %2354 = vmatprep.subr.bf16.mxu0 %v2071
    %2355 = vmatpush1.bf16.msra.mxu0 %v2070
    %2356 = vmatprep.subr.bf16.mxu0 %v2067
    %2357 = vmatpush1.bf16.msra.mxu0 %v2066
    %2358 = vmatprep.subr.bf16.mxu0 %v2063
    %2359 = vmatpush1.bf16.msra.mxu0 %v2062
    %2360 = vmatprep.subr.bf16.mxu0 %v2059
    %2361 = vmatpush1.bf16.msra.mxu0 %v2058
    %2362 = vmatprep.subr.bf16.mxu0 %v2055
    %2363 = vmatpush1.bf16.msra.mxu0 %v2054
    %2364 = vmatprep.subr.bf16.mxu0 %v2051
    %2365 = vmatpush1.bf16.msra.mxu0 %v2050
    %2366 = vmatprep.subr.bf16.mxu0 0
    %2367 = vmatpush2.bf16.msra.mxu0 0
    %2368 = vmatprep.subr.bf16.mxu0 0
    %2369 = vmatpush2.bf16.msra.mxu0 0
    %2370 = vmatprep.subr.bf16.mxu0 0
    %2371 = vmatpush2.bf16.msra.mxu0 0
    %2372 = vmatprep.subr.bf16.mxu0 0
    %2373 = vmatpush2.bf16.msra.mxu0 0
    %2374 = vmatprep.subr.bf16.mxu0 0
    %2375 = vmatpush2.bf16.msra.mxu0 0
    %2376 = vmatprep.subr.bf16.mxu0 0
    %2377 = vmatpush2.bf16.msra.mxu0 0
    %2378 = vmatprep.subr.bf16.mxu0 0
    %2379 = vmatpush2.bf16.msra.mxu0 0
    %2380 = vmatprep.subr.bf16.mxu0 0
    %2381 = vmatpush2.bf16.msra.mxu0 0
    %2382 = vmatprep.mubr.bf16.mxu0 0
    %2383 = vmatmul.mubr.bf16.gmra.mxu0 %v2349
    %v2384 = vpop.f32.mrf.mxu0
    %v2385 = vadd.f32 0.0, %v2384
    %v2386 = vpop.f32.mrf.mxu0
    %v2387 = vadd.f32 0.0, %v2386
    %v2388 = vpop.f32.mrf.mxu0
    %v2389 = vpop.f32.mrf.mxu0
    %2390 = vdwg.mxu0
    %2391 = vmatprep.subr.bf16.mxu0 %v2081
    %2392 = vmatpush1.bf16.msra.mxu0 %v2080
    %2393 = vmatprep.subr.bf16.mxu0 %v2077
    %2394 = vmatpush1.bf16.msra.mxu0 %v2076
    %2395 = vmatprep.subr.bf16.mxu0 %v2073
    %2396 = vmatpush1.bf16.msra.mxu0 %v2072
    %2397 = vmatprep.subr.bf16.mxu0 %v2069
    %2398 = vmatpush1.bf16.msra.mxu0 %v2068
    %2399 = vmatprep.subr.bf16.mxu0 %v2065
    %2400 = vmatpush1.bf16.msra.mxu0 %v2064
    %2401 = vmatprep.subr.bf16.mxu0 %v2061
    %2402 = vmatpush1.bf16.msra.mxu0 %v2060
    %2403 = vmatprep.subr.bf16.mxu0 %v2057
    %2404 = vmatpush1.bf16.msra.mxu0 %v2056
    %2405 = vmatprep.subr.bf16.mxu0 %v2053
    %2406 = vmatpush1.bf16.msra.mxu0 %v2052
    %2407 = vmatprep.subr.bf16.mxu0 0
    %2408 = vmatpush2.bf16.msra.mxu0 0
    %2409 = vmatprep.subr.bf16.mxu0 0
    %2410 = vmatpush2.bf16.msra.mxu0 0
    %2411 = vmatprep.subr.bf16.mxu0 0
    %2412 = vmatpush2.bf16.msra.mxu0 0
    %2413 = vmatprep.subr.bf16.mxu0 0
    %2414 = vmatpush2.bf16.msra.mxu0 0
    %2415 = vmatprep.subr.bf16.mxu0 0
    %2416 = vmatpush2.bf16.msra.mxu0 0
    %2417 = vmatprep.subr.bf16.mxu0 0
    %2418 = vmatpush2.bf16.msra.mxu0 0
    %2419 = vmatprep.subr.bf16.mxu0 0
    %2420 = vmatpush2.bf16.msra.mxu0 0
    %2421 = vmatprep.subr.bf16.mxu0 0
    %2422 = vmatpush2.bf16.msra.mxu0 0
    %2423 = vmatprep.mubr.bf16.mxu0 0
    %2424 = vmatmul.mubr.bf16.gmra.mxu0 %v2349
    %v2425 = vpop.f32.mrf.mxu0
    %v2426 = vadd.f32 0.0, %v2425
    %v2427 = vpop.f32.mrf.mxu0
    %v2428 = vadd.f32 0.0, %v2427
    %v2429 = vpop.f32.mrf.mxu0
    %v2430 = vpop.f32.mrf.mxu0
    %2431 = vdwg.mxu0
    %v2432 = vadd.f32 %v1898, %v2385
    %v2433 = vadd.f32 %v1899, %v2387
    %v2434 = vadd.f32 %v1900, %v2426
    %v2435 = vadd.f32 %v1901, %v2428
    %v2436 = vxor.u32 %v2432, 2147483648
    %v2437 = vmul.f32 %v2436, 1.442695
    %v2438 = vpow.pop %v2437
    %v2439 = vadd.f32 %v2438, 1.0
    %v2440 = vrcp.pop %v2439
    %v2441 = vmul.f32 1.0, %v2440
    %v2442 = vxor.u32 %v2433, 2147483648
    %v2443 = vmul.f32 %v2442, 1.442695
    %v2444 = vpow.pop %v2443
    %v2445 = vadd.f32 %v2444, 1.0
    %v2446 = vrcp.pop %v2445
    %v2447 = vmul.f32 1.0, %v2446
    %v2448 = vtanh.pop %v2434
    %v2449 = vxor.u32 %v2435, 2147483648
    %v2450 = vmul.f32 %v2449, 1.442695
    %v2451 = vpow.pop %v2450
    %v2452 = vadd.f32 %v2451, 1.0
    %v2453 = vrcp.pop %v2452
    %v2454 = vmul.f32 1.0, %v2453
    %v2455 = vmul.f32 %v2447, %v2339
    %v2456 = vmul.f32 %v2441, %v2448
    %v2457 = vadd.f32 %v2455, %v2456
    %v2458 = vtanh.pop %v2457
    %v2459 = vmul.f32 %v2454, %v2458
    %vm2460 = vcmp.eq.s32.totalorder %v77, 3
    %v2461 = vsel %vm2460, 1, 0
    %2462 = vset.pattern.permute.xlu0 0
    %2463 = vperm.xlu0 %2462, %v2461
    %v2464 = vpop.permute.xlu0 %2463
    %vm2465 = vcmp.eq.s32.totalorder %v2464, 1
    %v2466 = vsel %vm2465, %v2459, %v2348
    %v2467 = vpack.c.bf16 %v2459, %v2459
    %2468 = vmatprep.subr.bf16.mxu0 %v2079
    %2469 = vmatpush1.bf16.msra.mxu0 %v2078
    %2470 = vmatprep.subr.bf16.mxu0 %v2075
    %2471 = vmatpush1.bf16.msra.mxu0 %v2074
    %2472 = vmatprep.subr.bf16.mxu0 %v2071
    %2473 = vmatpush1.bf16.msra.mxu0 %v2070
    %2474 = vmatprep.subr.bf16.mxu0 %v2067
    %2475 = vmatpush1.bf16.msra.mxu0 %v2066
    %2476 = vmatprep.subr.bf16.mxu0 %v2063
    %2477 = vmatpush1.bf16.msra.mxu0 %v2062
    %2478 = vmatprep.subr.bf16.mxu0 %v2059
    %2479 = vmatpush1.bf16.msra.mxu0 %v2058
    %2480 = vmatprep.subr.bf16.mxu0 %v2055
    %2481 = vmatpush1.bf16.msra.mxu0 %v2054
    %2482 = vmatprep.subr.bf16.mxu0 %v2051
    %2483 = vmatpush1.bf16.msra.mxu0 %v2050
    %2484 = vmatprep.subr.bf16.mxu0 0
    %2485 = vmatpush2.bf16.msra.mxu0 0
    %2486 = vmatprep.subr.bf16.mxu0 0
    %2487 = vmatpush2.bf16.msra.mxu0 0
    %2488 = vmatprep.subr.bf16.mxu0 0
    %2489 = vmatpush2.bf16.msra.mxu0 0
    %2490 = vmatprep.subr.bf16.mxu0 0
    %2491 = vmatpush2.bf16.msra.mxu0 0
    %2492 = vmatprep.subr.bf16.mxu0 0
    %2493 = vmatpush2.bf16.msra.mxu0 0
    %2494 = vmatprep.subr.bf16.mxu0 0
    %2495 = vmatpush2.bf16.msra.mxu0 0
    %2496 = vmatprep.subr.bf16.mxu0 0
    %2497 = vmatpush2.bf16.msra.mxu0 0
    %2498 = vmatprep.subr.bf16.mxu0 0
    %2499 = vmatpush2.bf16.msra.mxu0 0
    %2500 = vmatprep.mubr.bf16.mxu0 0
    %2501 = vmatmul.mubr.bf16.gmra.mxu0 %v2467
    %v2502 = vpop.f32.mrf.mxu0
    %v2503 = vadd.f32 0.0, %v2502
    %v2504 = vpop.f32.mrf.mxu0
    %v2505 = vadd.f32 0.0, %v2504
    %v2506 = vpop.f32.mrf.mxu0
    %v2507 = vpop.f32.mrf.mxu0
    %2508 = vdwg.mxu0
    %2509 = vmatprep.subr.bf16.mxu0 %v2081
    %2510 = vmatpush1.bf16.msra.mxu0 %v2080
    %2511 = vmatprep.subr.bf16.mxu0 %v2077
    %2512 = vmatpush1.bf16.msra.mxu0 %v2076
    %2513 = vmatprep.subr.bf16.mxu0 %v2073
    %2514 = vmatpush1.bf16.msra.mxu0 %v2072
    %2515 = vmatprep.subr.bf16.mxu0 %v2069
    %2516 = vmatpush1.bf16.msra.mxu0 %v2068
    %2517 = vmatprep.subr.bf16.mxu0 %v2065
    %2518 = vmatpush1.bf16.msra.mxu0 %v2064
    %2519 = vmatprep.subr.bf16.mxu0 %v2061
    %2520 = vmatpush1.bf16.msra.mxu0 %v2060
    %2521 = vmatprep.subr.bf16.mxu0 %v2057
    %2522 = vmatpush1.bf16.msra.mxu0 %v2056
    %2523 = vmatprep.subr.bf16.mxu0 %v2053
    %2524 = vmatpush1.bf16.msra.mxu0 %v2052
    %2525 = vmatprep.subr.bf16.mxu0 0
    %2526 = vmatpush2.bf16.msra.mxu0 0
    %2527 = vmatprep.subr.bf16.mxu0 0
    %2528 = vmatpush2.bf16.msra.mxu0 0
    %2529 = vmatprep.subr.bf16.mxu0 0
    %2530 = vmatpush2.bf16.msra.mxu0 0
    %2531 = vmatprep.subr.bf16.mxu0 0
    %2532 = vmatpush2.bf16.msra.mxu0 0
    %2533 = vmatprep.subr.bf16.mxu0 0
    %2534 = vmatpush2.bf16.msra.mxu0 0
    %2535 = vmatprep.subr.bf16.mxu0 0
    %2536 = vmatpush2.bf16.msra.mxu0 0
    %2537 = vmatprep.subr.bf16.mxu0 0
    %2538 = vmatpush2.bf16.msra.mxu0 0
    %2539 = vmatprep.subr.bf16.mxu0 0
    %2540 = vmatpush2.bf16.msra.mxu0 0
    %2541 = vmatprep.mubr.bf16.mxu0 0
    %2542 = vmatmul.mubr.bf16.gmra.mxu0 %v2467
    %v2543 = vpop.f32.mrf.mxu0
    %v2544 = vadd.f32 0.0, %v2543
    %v2545 = vpop.f32.mrf.mxu0
    %v2546 = vadd.f32 0.0, %v2545
    %v2547 = vpop.f32.mrf.mxu0
    %v2548 = vpop.f32.mrf.mxu0
    %2549 = vdwg.mxu0
    %v2550 = vadd.f32 %v1902, %v2503
    %v2551 = vadd.f32 %v1903, %v2505
    %v2552 = vadd.f32 %v1904, %v2544
    %v2553 = vadd.f32 %v1905, %v2546
    %v2554 = vxor.u32 %v2550, 2147483648
    %v2555 = vmul.f32 %v2554, 1.442695
    %v2556 = vpow.pop %v2555
    %v2557 = vadd.f32 %v2556, 1.0
    %v2558 = vrcp.pop %v2557
    %v2559 = vmul.f32 1.0, %v2558
    %v2560 = vxor.u32 %v2551, 2147483648
    %v2561 = vmul.f32 %v2560, 1.442695
    %v2562 = vpow.pop %v2561
    %v2563 = vadd.f32 %v2562, 1.0
    %v2564 = vrcp.pop %v2563
    %v2565 = vmul.f32 1.0, %v2564
    %v2566 = vtanh.pop %v2552
    %v2567 = vxor.u32 %v2553, 2147483648
    %v2568 = vmul.f32 %v2567, 1.442695
    %v2569 = vpow.pop %v2568
    %v2570 = vadd.f32 %v2569, 1.0
    %v2571 = vrcp.pop %v2570
    %v2572 = vmul.f32 1.0, %v2571
    %v2573 = vmul.f32 %v2565, %v2457
    %v2574 = vmul.f32 %v2559, %v2566
    %v2575 = vadd.f32 %v2573, %v2574
    %v2576 = vtanh.pop %v2575
    %v2577 = vmul.f32 %v2572, %v2576
    %vm2578 = vcmp.eq.s32.totalorder %v77, 4
    %v2579 = vsel %vm2578, 1, 0
    %2580 = vset.pattern.permute.xlu0 0
    %2581 = vperm.xlu0 %2580, %v2579
    %v2582 = vpop.permute.xlu0 %2581
    %vm2583 = vcmp.eq.s32.totalorder %v2582, 1
    %v2584 = vsel %vm2583, %v2577, %v2466
    %v2585 = vpack.c.bf16 %v2577, %v2577
    %2586 = vmatprep.subr.bf16.mxu0 %v2079
    %2587 = vmatpush1.bf16.msra.mxu0 %v2078
    %2588 = vmatprep.subr.bf16.mxu0 %v2075
    %2589 = vmatpush1.bf16.msra.mxu0 %v2074
    %2590 = vmatprep.subr.bf16.mxu0 %v2071
    %2591 = vmatpush1.bf16.msra.mxu0 %v2070
    %2592 = vmatprep.subr.bf16.mxu0 %v2067
    %2593 = vmatpush1.bf16.msra.mxu0 %v2066
    %2594 = vmatprep.subr.bf16.mxu0 %v2063
    %2595 = vmatpush1.bf16.msra.mxu0 %v2062
    %2596 = vmatprep.subr.bf16.mxu0 %v2059
    %2597 = vmatpush1.bf16.msra.mxu0 %v2058
    %2598 = vmatprep.subr.bf16.mxu0 %v2055
    %2599 = vmatpush1.bf16.msra.mxu0 %v2054
    %2600 = vmatprep.subr.bf16.mxu0 %v2051
    %2601 = vmatpush1.bf16.msra.mxu0 %v2050
    %2602 = vmatprep.subr.bf16.mxu0 0
    %2603 = vmatpush2.bf16.msra.mxu0 0
    %2604 = vmatprep.subr.bf16.mxu0 0
    %2605 = vmatpush2.bf16.msra.mxu0 0
    %2606 = vmatprep.subr.bf16.mxu0 0
    %2607 = vmatpush2.bf16.msra.mxu0 0
    %2608 = vmatprep.subr.bf16.mxu0 0
    %2609 = vmatpush2.bf16.msra.mxu0 0
    %2610 = vmatprep.subr.bf16.mxu0 0
    %2611 = vmatpush2.bf16.msra.mxu0 0
    %2612 = vmatprep.subr.bf16.mxu0 0
    %2613 = vmatpush2.bf16.msra.mxu0 0
    %2614 = vmatprep.subr.bf16.mxu0 0
    %2615 = vmatpush2.bf16.msra.mxu0 0
    %2616 = vmatprep.subr.bf16.mxu0 0
    %2617 = vmatpush2.bf16.msra.mxu0 0
    %2618 = vmatprep.mubr.bf16.mxu0 0
    %2619 = vmatmul.mubr.bf16.gmra.mxu0 %v2585
    %v2620 = vpop.f32.mrf.mxu0
    %v2621 = vadd.f32 0.0, %v2620
    %v2622 = vpop.f32.mrf.mxu0
    %v2623 = vadd.f32 0.0, %v2622
    %v2624 = vpop.f32.mrf.mxu0
    %v2625 = vpop.f32.mrf.mxu0
    %2626 = vdwg.mxu0
    %2627 = vmatprep.subr.bf16.mxu0 %v2081
    %2628 = vmatpush1.bf16.msra.mxu0 %v2080
    %2629 = vmatprep.subr.bf16.mxu0 %v2077
    %2630 = vmatpush1.bf16.msra.mxu0 %v2076
    %2631 = vmatprep.subr.bf16.mxu0 %v2073
    %2632 = vmatpush1.bf16.msra.mxu0 %v2072
    %2633 = vmatprep.subr.bf16.mxu0 %v2069
    %2634 = vmatpush1.bf16.msra.mxu0 %v2068
    %2635 = vmatprep.subr.bf16.mxu0 %v2065
    %2636 = vmatpush1.bf16.msra.mxu0 %v2064
    %2637 = vmatprep.subr.bf16.mxu0 %v2061
    %2638 = vmatpush1.bf16.msra.mxu0 %v2060
    %2639 = vmatprep.subr.bf16.mxu0 %v2057
    %2640 = vmatpush1.bf16.msra.mxu0 %v2056
    %2641 = vmatprep.subr.bf16.mxu0 %v2053
    %2642 = vmatpush1.bf16.msra.mxu0 %v2052
    %2643 = vmatprep.subr.bf16.mxu0 0
    %2644 = vmatpush2.bf16.msra.mxu0 0
    %2645 = vmatprep.subr.bf16.mxu0 0
    %2646 = vmatpush2.bf16.msra.mxu0 0
    %2647 = vmatprep.subr.bf16.mxu0 0
    %2648 = vmatpush2.bf16.msra.mxu0 0
    %2649 = vmatprep.subr.bf16.mxu0 0
    %2650 = vmatpush2.bf16.msra.mxu0 0
    %2651 = vmatprep.subr.bf16.mxu0 0
    %2652 = vmatpush2.bf16.msra.mxu0 0
    %2653 = vmatprep.subr.bf16.mxu0 0
    %2654 = vmatpush2.bf16.msra.mxu0 0
    %2655 = vmatprep.subr.bf16.mxu0 0
    %2656 = vmatpush2.bf16.msra.mxu0 0
    %2657 = vmatprep.subr.bf16.mxu0 0
    %2658 = vmatpush2.bf16.msra.mxu0 0
    %2659 = vmatprep.mubr.bf16.mxu0 0
    %2660 = vmatmul.mubr.bf16.gmra.mxu0 %v2585
    %v2661 = vpop.f32.mrf.mxu0
    %v2662 = vadd.f32 0.0, %v2661
    %v2663 = vpop.f32.mrf.mxu0
    %v2664 = vadd.f32 0.0, %v2663
    %v2665 = vpop.f32.mrf.mxu0
    %v2666 = vpop.f32.mrf.mxu0
    %2667 = vdwg.mxu0
    %v2668 = vadd.f32 %v1906, %v2621
    %v2669 = vadd.f32 %v1907, %v2623
    %v2670 = vadd.f32 %v1908, %v2662
    %v2671 = vadd.f32 %v1909, %v2664
    %v2672 = vxor.u32 %v2668, 2147483648
    %v2673 = vmul.f32 %v2672, 1.442695
    %v2674 = vpow.pop %v2673
    %v2675 = vadd.f32 %v2674, 1.0
    %v2676 = vrcp.pop %v2675
    %v2677 = vmul.f32 1.0, %v2676
    %v2678 = vxor.u32 %v2669, 2147483648
    %v2679 = vmul.f32 %v2678, 1.442695
    %v2680 = vpow.pop %v2679
    %v2681 = vadd.f32 %v2680, 1.0
    %v2682 = vrcp.pop %v2681
    %v2683 = vmul.f32 1.0, %v2682
    %v2684 = vtanh.pop %v2670
    %v2685 = vxor.u32 %v2671, 2147483648
    %v2686 = vmul.f32 %v2685, 1.442695
    %v2687 = vpow.pop %v2686
    %v2688 = vadd.f32 %v2687, 1.0
    %v2689 = vrcp.pop %v2688
    %v2690 = vmul.f32 1.0, %v2689
    %v2691 = vmul.f32 %v2683, %v2575
    %v2692 = vmul.f32 %v2677, %v2684
    %v2693 = vadd.f32 %v2691, %v2692
    %v2694 = vtanh.pop %v2693
    %v2695 = vmul.f32 %v2690, %v2694
    %vm2696 = vcmp.eq.s32.totalorder %v77, 5
    %v2697 = vsel %vm2696, 1, 0
    %2698 = vset.pattern.permute.xlu0 0
    %2699 = vperm.xlu0 %2698, %v2697
    %v2700 = vpop.permute.xlu0 %2699
    %vm2701 = vcmp.eq.s32.totalorder %v2700, 1
    %v2702 = vsel %vm2701, %v2695, %v2584
    %v2703 = vpack.c.bf16 %v2695, %v2695
    %2704 = vmatprep.subr.bf16.mxu0 %v2079
    %2705 = vmatpush1.bf16.msra.mxu0 %v2078
    %2706 = vmatprep.subr.bf16.mxu0 %v2075
    %2707 = vmatpush1.bf16.msra.mxu0 %v2074
    %2708 = vmatprep.subr.bf16.mxu0 %v2071
    %2709 = vmatpush1.bf16.msra.mxu0 %v2070
    %2710 = vmatprep.subr.bf16.mxu0 %v2067
    %2711 = vmatpush1.bf16.msra.mxu0 %v2066
    %2712 = vmatprep.subr.bf16.mxu0 %v2063
    %2713 = vmatpush1.bf16.msra.mxu0 %v2062
    %2714 = vmatprep.subr.bf16.mxu0 %v2059
    %2715 = vmatpush1.bf16.msra.mxu0 %v2058
    %2716 = vmatprep.subr.bf16.mxu0 %v2055
    %2717 = vmatpush1.bf16.msra.mxu0 %v2054
    %2718 = vmatprep.subr.bf16.mxu0 %v2051
    %2719 = vmatpush1.bf16.msra.mxu0 %v2050
    %2720 = vmatprep.subr.bf16.mxu0 0
    %2721 = vmatpush2.bf16.msra.mxu0 0
    %2722 = vmatprep.subr.bf16.mxu0 0
    %2723 = vmatpush2.bf16.msra.mxu0 0
    %2724 = vmatprep.subr.bf16.mxu0 0
    %2725 = vmatpush2.bf16.msra.mxu0 0
    %2726 = vmatprep.subr.bf16.mxu0 0
    %2727 = vmatpush2.bf16.msra.mxu0 0
    %2728 = vmatprep.subr.bf16.mxu0 0
    %2729 = vmatpush2.bf16.msra.mxu0 0
    %2730 = vmatprep.subr.bf16.mxu0 0
    %2731 = vmatpush2.bf16.msra.mxu0 0
    %2732 = vmatprep.subr.bf16.mxu0 0
    %2733 = vmatpush2.bf16.msra.mxu0 0
    %2734 = vmatprep.subr.bf16.mxu0 0
    %2735 = vmatpush2.bf16.msra.mxu0 0
    %2736 = vmatprep.mubr.bf16.mxu0 0
    %2737 = vmatmul.mubr.bf16.gmra.mxu0 %v2703
    %v2738 = vpop.f32.mrf.mxu0
    %v2739 = vadd.f32 0.0, %v2738
    %v2740 = vpop.f32.mrf.mxu0
    %v2741 = vadd.f32 0.0, %v2740
    %v2742 = vpop.f32.mrf.mxu0
    %v2743 = vpop.f32.mrf.mxu0
    %2744 = vdwg.mxu0
    %2745 = vmatprep.subr.bf16.mxu0 %v2081
    %2746 = vmatpush1.bf16.msra.mxu0 %v2080
    %2747 = vmatprep.subr.bf16.mxu0 %v2077
    %2748 = vmatpush1.bf16.msra.mxu0 %v2076
    %2749 = vmatprep.subr.bf16.mxu0 %v2073
    %2750 = vmatpush1.bf16.msra.mxu0 %v2072
    %2751 = vmatprep.subr.bf16.mxu0 %v2069
    %2752 = vmatpush1.bf16.msra.mxu0 %v2068
    %2753 = vmatprep.subr.bf16.mxu0 %v2065
    %2754 = vmatpush1.bf16.msra.mxu0 %v2064
    %2755 = vmatprep.subr.bf16.mxu0 %v2061
    %2756 = vmatpush1.bf16.msra.mxu0 %v2060
    %2757 = vmatprep.subr.bf16.mxu0 %v2057
    %2758 = vmatpush1.bf16.msra.mxu0 %v2056
    %2759 = vmatprep.subr.bf16.mxu0 %v2053
    %2760 = vmatpush1.bf16.msra.mxu0 %v2052
    %2761 = vmatprep.subr.bf16.mxu0 0
    %2762 = vmatpush2.bf16.msra.mxu0 0
    %2763 = vmatprep.subr.bf16.mxu0 0
    %2764 = vmatpush2.bf16.msra.mxu0 0
    %2765 = vmatprep.subr.bf16.mxu0 0
    %2766 = vmatpush2.bf16.msra.mxu0 0
    %2767 = vmatprep.subr.bf16.mxu0 0
    %2768 = vmatpush2.bf16.msra.mxu0 0
    %2769 = vmatprep.subr.bf16.mxu0 0
    %2770 = vmatpush2.bf16.msra.mxu0 0
    %2771 = vmatprep.subr.bf16.mxu0 0
    %2772 = vmatpush2.bf16.msra.mxu0 0
    %2773 = vmatprep.subr.bf16.mxu0 0
    %2774 = vmatpush2.bf16.msra.mxu0 0
    %2775 = vmatprep.subr.bf16.mxu0 0
    %2776 = vmatpush2.bf16.msra.mxu0 0
    %2777 = vmatprep.mubr.bf16.mxu0 0
    %2778 = vmatmul.mubr.bf16.gmra.mxu0 %v2703
    %v2779 = vpop.f32.mrf.mxu0
    %v2780 = vadd.f32 0.0, %v2779
    %v2781 = vpop.f32.mrf.mxu0
    %v2782 = vadd.f32 0.0, %v2781
    %v2783 = vpop.f32.mrf.mxu0
    %v2784 = vpop.f32.mrf.mxu0
    %2785 = vdwg.mxu0
    %v2786 = vadd.f32 %v1910, %v2739
    %v2787 = vadd.f32 %v1911, %v2741
    %v2788 = vadd.f32 %v1912, %v2780
    %v2789 = vadd.f32 %v1913, %v2782
    %v2790 = vxor.u32 %v2786, 2147483648
    %v2791 = vmul.f32 %v2790, 1.442695
    %v2792 = vpow.pop %v2791
    %v2793 = vadd.f32 %v2792, 1.0
    %v2794 = vrcp.pop %v2793
    %v2795 = vmul.f32 1.0, %v2794
    %v2796 = vxor.u32 %v2787, 2147483648
    %v2797 = vmul.f32 %v2796, 1.442695
    %v2798 = vpow.pop %v2797
    %v2799 = vadd.f32 %v2798, 1.0
    %v2800 = vrcp.pop %v2799
    %v2801 = vmul.f32 1.0, %v2800
    %v2802 = vtanh.pop %v2788
    %v2803 = vxor.u32 %v2789, 2147483648
    %v2804 = vmul.f32 %v2803, 1.442695
    %v2805 = vpow.pop %v2804
    %v2806 = vadd.f32 %v2805, 1.0
    %v2807 = vrcp.pop %v2806
    %v2808 = vmul.f32 1.0, %v2807
    %v2809 = vmul.f32 %v2801, %v2693
    %v2810 = vmul.f32 %v2795, %v2802
    %v2811 = vadd.f32 %v2809, %v2810
    %v2812 = vtanh.pop %v2811
    %v2813 = vmul.f32 %v2808, %v2812
    %vm2814 = vcmp.eq.s32.totalorder %v77, 6
    %v2815 = vsel %vm2814, 1, 0
    %2816 = vset.pattern.permute.xlu0 0
    %2817 = vperm.xlu0 %2816, %v2815
    %v2818 = vpop.permute.xlu0 %2817
    %vm2819 = vcmp.eq.s32.totalorder %v2818, 1
    %v2820 = vsel %vm2819, %v2813, %v2702
    %v2821 = vpack.c.bf16 %v2813, %v2813
    %2822 = vmatprep.subr.bf16.mxu0 %v2079
    %2823 = vmatpush1.bf16.msra.mxu0 %v2078
    %2824 = vmatprep.subr.bf16.mxu0 %v2075
    %2825 = vmatpush1.bf16.msra.mxu0 %v2074
    %2826 = vmatprep.subr.bf16.mxu0 %v2071
    %2827 = vmatpush1.bf16.msra.mxu0 %v2070
    %2828 = vmatprep.subr.bf16.mxu0 %v2067
    %2829 = vmatpush1.bf16.msra.mxu0 %v2066
    %2830 = vmatprep.subr.bf16.mxu0 %v2063
    %2831 = vmatpush1.bf16.msra.mxu0 %v2062
    %2832 = vmatprep.subr.bf16.mxu0 %v2059
    %2833 = vmatpush1.bf16.msra.mxu0 %v2058
    %2834 = vmatprep.subr.bf16.mxu0 %v2055
    %2835 = vmatpush1.bf16.msra.mxu0 %v2054
    %2836 = vmatprep.subr.bf16.mxu0 %v2051
    %2837 = vmatpush1.bf16.msra.mxu0 %v2050
    %2838 = vmatprep.subr.bf16.mxu0 0
    %2839 = vmatpush2.bf16.msra.mxu0 0
    %2840 = vmatprep.subr.bf16.mxu0 0
    %2841 = vmatpush2.bf16.msra.mxu0 0
    %2842 = vmatprep.subr.bf16.mxu0 0
    %2843 = vmatpush2.bf16.msra.mxu0 0
    %2844 = vmatprep.subr.bf16.mxu0 0
    %2845 = vmatpush2.bf16.msra.mxu0 0
    %2846 = vmatprep.subr.bf16.mxu0 0
    %2847 = vmatpush2.bf16.msra.mxu0 0
    %2848 = vmatprep.subr.bf16.mxu0 0
    %2849 = vmatpush2.bf16.msra.mxu0 0
    %2850 = vmatprep.subr.bf16.mxu0 0
    %2851 = vmatpush2.bf16.msra.mxu0 0
    %2852 = vmatprep.subr.bf16.mxu0 0
    %2853 = vmatpush2.bf16.msra.mxu0 0
    %2854 = vmatprep.mubr.bf16.mxu0 0
    %2855 = vmatmul.mubr.bf16.gmra.mxu0 %v2821
    %v2856 = vpop.f32.mrf.mxu0
    %v2857 = vadd.f32 0.0, %v2856
    %v2858 = vpop.f32.mrf.mxu0
    %v2859 = vadd.f32 0.0, %v2858
    %v2860 = vpop.f32.mrf.mxu0
    %v2861 = vpop.f32.mrf.mxu0
    %2862 = vdwg.mxu0
    %2863 = vmatprep.subr.bf16.mxu0 %v2081
    %2864 = vmatpush1.bf16.msra.mxu0 %v2080
    %2865 = vmatprep.subr.bf16.mxu0 %v2077
    %2866 = vmatpush1.bf16.msra.mxu0 %v2076
    %2867 = vmatprep.subr.bf16.mxu0 %v2073
    %2868 = vmatpush1.bf16.msra.mxu0 %v2072
    %2869 = vmatprep.subr.bf16.mxu0 %v2069
    %2870 = vmatpush1.bf16.msra.mxu0 %v2068
    %2871 = vmatprep.subr.bf16.mxu0 %v2065
    %2872 = vmatpush1.bf16.msra.mxu0 %v2064
    %2873 = vmatprep.subr.bf16.mxu0 %v2061
    %2874 = vmatpush1.bf16.msra.mxu0 %v2060
    %2875 = vmatprep.subr.bf16.mxu0 %v2057
    %2876 = vmatpush1.bf16.msra.mxu0 %v2056
    %2877 = vmatprep.subr.bf16.mxu0 %v2053
    %2878 = vmatpush1.bf16.msra.mxu0 %v2052
    %2879 = vmatprep.subr.bf16.mxu0 0
    %2880 = vmatpush2.bf16.msra.mxu0 0
    %2881 = vmatprep.subr.bf16.mxu0 0
    %2882 = vmatpush2.bf16.msra.mxu0 0
    %2883 = vmatprep.subr.bf16.mxu0 0
    %2884 = vmatpush2.bf16.msra.mxu0 0
    %2885 = vmatprep.subr.bf16.mxu0 0
    %2886 = vmatpush2.bf16.msra.mxu0 0
    %2887 = vmatprep.subr.bf16.mxu0 0
    %2888 = vmatpush2.bf16.msra.mxu0 0
    %2889 = vmatprep.subr.bf16.mxu0 0
    %2890 = vmatpush2.bf16.msra.mxu0 0
    %2891 = vmatprep.subr.bf16.mxu0 0
    %2892 = vmatpush2.bf16.msra.mxu0 0
    %2893 = vmatprep.subr.bf16.mxu0 0
    %2894 = vmatpush2.bf16.msra.mxu0 0
    %2895 = vmatprep.mubr.bf16.mxu0 0
    %2896 = vmatmul.mubr.bf16.gmra.mxu0 %v2821
    %v2897 = vpop.f32.mrf.mxu0
    %v2898 = vadd.f32 0.0, %v2897
    %v2899 = vpop.f32.mrf.mxu0
    %v2900 = vadd.f32 0.0, %v2899
    %v2901 = vpop.f32.mrf.mxu0
    %v2902 = vpop.f32.mrf.mxu0
    %2903 = vdwg.mxu0
    %v2904 = vadd.f32 %v1914, %v2857
    %v2905 = vadd.f32 %v1915, %v2859
    %v2906 = vadd.f32 %v1916, %v2898
    %v2907 = vadd.f32 %v1917, %v2900
    %v2908 = vxor.u32 %v2904, 2147483648
    %v2909 = vmul.f32 %v2908, 1.442695
    %v2910 = vpow.pop %v2909
    %v2911 = vadd.f32 %v2910, 1.0
    %v2912 = vrcp.pop %v2911
    %v2913 = vmul.f32 1.0, %v2912
    %v2914 = vxor.u32 %v2905, 2147483648
    %v2915 = vmul.f32 %v2914, 1.442695
    %v2916 = vpow.pop %v2915
    %v2917 = vadd.f32 %v2916, 1.0
    %v2918 = vrcp.pop %v2917
    %v2919 = vmul.f32 1.0, %v2918
    %v2920 = vtanh.pop %v2906
    %v2921 = vxor.u32 %v2907, 2147483648
    %v2922 = vmul.f32 %v2921, 1.442695
    %v2923 = vpow.pop %v2922
    %v2924 = vadd.f32 %v2923, 1.0
    %v2925 = vrcp.pop %v2924
    %v2926 = vmul.f32 1.0, %v2925
    %v2927 = vmul.f32 %v2919, %v2811
    %v2928 = vmul.f32 %v2913, %v2920
    %v2929 = vadd.f32 %v2927, %v2928
    %v2930 = vtanh.pop %v2929
    %v2931 = vmul.f32 %v2926, %v2930
    %vm2932 = vcmp.eq.s32.totalorder %v77, 7
    %v2933 = vsel %vm2932, 1, 0
    %2934 = vset.pattern.permute.xlu0 0
    %2935 = vperm.xlu0 %2934, %v2933
    %v2936 = vpop.permute.xlu0 %2935
    %vm2937 = vcmp.eq.s32.totalorder %v2936, 1
    %v2938 = vsel %vm2937, %v2931, %v2820
    %v2939 = vpack.c.bf16 %v2931, %v2931
    %2940 = vmatprep.subr.bf16.mxu0 %v2079
    %2941 = vmatpush1.bf16.msra.mxu0 %v2078
    %2942 = vmatprep.subr.bf16.mxu0 %v2075
    %2943 = vmatpush1.bf16.msra.mxu0 %v2074
    %2944 = vmatprep.subr.bf16.mxu0 %v2071
    %2945 = vmatpush1.bf16.msra.mxu0 %v2070
    %2946 = vmatprep.subr.bf16.mxu0 %v2067
    %2947 = vmatpush1.bf16.msra.mxu0 %v2066
    %2948 = vmatprep.subr.bf16.mxu0 %v2063
    %2949 = vmatpush1.bf16.msra.mxu0 %v2062
    %2950 = vmatprep.subr.bf16.mxu0 %v2059
    %2951 = vmatpush1.bf16.msra.mxu0 %v2058
    %2952 = vmatprep.subr.bf16.mxu0 %v2055
    %2953 = vmatpush1.bf16.msra.mxu0 %v2054
    %2954 = vmatprep.subr.bf16.mxu0 %v2051
    %2955 = vmatpush1.bf16.msra.mxu0 %v2050
    %2956 = vmatprep.subr.bf16.mxu0 0
    %2957 = vmatpush2.bf16.msra.mxu0 0
    %2958 = vmatprep.subr.bf16.mxu0 0
    %2959 = vmatpush2.bf16.msra.mxu0 0
    %2960 = vmatprep.subr.bf16.mxu0 0
    %2961 = vmatpush2.bf16.msra.mxu0 0
    %2962 = vmatprep.subr.bf16.mxu0 0
    %2963 = vmatpush2.bf16.msra.mxu0 0
    %2964 = vmatprep.subr.bf16.mxu0 0
    %2965 = vmatpush2.bf16.msra.mxu0 0
    %2966 = vmatprep.subr.bf16.mxu0 0
    %2967 = vmatpush2.bf16.msra.mxu0 0
    %2968 = vmatprep.subr.bf16.mxu0 0
    %2969 = vmatpush2.bf16.msra.mxu0 0
    %2970 = vmatprep.subr.bf16.mxu0 0
    %2971 = vmatpush2.bf16.msra.mxu0 0
    %2972 = vmatprep.mubr.bf16.mxu0 0
    %2973 = vmatmul.mubr.bf16.gmra.mxu0 %v2939
    %v2974 = vpop.f32.mrf.mxu0
    %v2975 = vadd.f32 0.0, %v2974
    %v2976 = vpop.f32.mrf.mxu0
    %v2977 = vadd.f32 0.0, %v2976
    %v2978 = vpop.f32.mrf.mxu0
    %v2979 = vpop.f32.mrf.mxu0
    %2980 = vdwg.mxu0
    %2981 = vmatprep.subr.bf16.mxu0 %v2081
    %2982 = vmatpush1.bf16.msra.mxu0 %v2080
    %2983 = vmatprep.subr.bf16.mxu0 %v2077
    %2984 = vmatpush1.bf16.msra.mxu0 %v2076
    %2985 = vmatprep.subr.bf16.mxu0 %v2073
    %2986 = vmatpush1.bf16.msra.mxu0 %v2072
    %2987 = vmatprep.subr.bf16.mxu0 %v2069
    %2988 = vmatpush1.bf16.msra.mxu0 %v2068
    %2989 = vmatprep.subr.bf16.mxu0 %v2065
    %2990 = vmatpush1.bf16.msra.mxu0 %v2064
    %2991 = vmatprep.subr.bf16.mxu0 %v2061
    %2992 = vmatpush1.bf16.msra.mxu0 %v2060
    %2993 = vmatprep.subr.bf16.mxu0 %v2057
    %2994 = vmatpush1.bf16.msra.mxu0 %v2056
    %2995 = vmatprep.subr.bf16.mxu0 %v2053
    %2996 = vmatpush1.bf16.msra.mxu0 %v2052
    %2997 = vmatprep.subr.bf16.mxu0 0
    %2998 = vmatpush2.bf16.msra.mxu0 0
    %2999 = vmatprep.subr.bf16.mxu0 0
    %3000 = vmatpush2.bf16.msra.mxu0 0
    %3001 = vmatprep.subr.bf16.mxu0 0
    %3002 = vmatpush2.bf16.msra.mxu0 0
    %3003 = vmatprep.subr.bf16.mxu0 0
    %3004 = vmatpush2.bf16.msra.mxu0 0
    %3005 = vmatprep.subr.bf16.mxu0 0
    %3006 = vmatpush2.bf16.msra.mxu0 0
    %3007 = vmatprep.subr.bf16.mxu0 0
    %3008 = vmatpush2.bf16.msra.mxu0 0
    %3009 = vmatprep.subr.bf16.mxu0 0
    %3010 = vmatpush2.bf16.msra.mxu0 0
    %3011 = vmatprep.subr.bf16.mxu0 0
    %3012 = vmatpush2.bf16.msra.mxu0 0
    %3013 = vmatprep.mubr.bf16.mxu0 0
    %3014 = vmatmul.mubr.bf16.gmra.mxu0 %v2939
    %v3015 = vpop.f32.mrf.mxu0
    %v3016 = vadd.f32 0.0, %v3015
    %v3017 = vpop.f32.mrf.mxu0
    %v3018 = vadd.f32 0.0, %v3017
    %v3019 = vpop.f32.mrf.mxu0
    %v3020 = vpop.f32.mrf.mxu0
    %3021 = vdwg.mxu0
    %v3022 = vadd.f32 %v1918, %v2975
    %v3023 = vadd.f32 %v1919, %v2977
    %v3024 = vadd.f32 %v1920, %v3016
    %v3025 = vadd.f32 %v1921, %v3018
    %v3026 = vxor.u32 %v3022, 2147483648
    %v3027 = vmul.f32 %v3026, 1.442695
    %v3028 = vpow.pop %v3027
    %v3029 = vadd.f32 %v3028, 1.0
    %v3030 = vrcp.pop %v3029
    %v3031 = vmul.f32 1.0, %v3030
    %v3032 = vxor.u32 %v3023, 2147483648
    %v3033 = vmul.f32 %v3032, 1.442695
    %v3034 = vpow.pop %v3033
    %v3035 = vadd.f32 %v3034, 1.0
    %v3036 = vrcp.pop %v3035
    %v3037 = vmul.f32 1.0, %v3036
    %v3038 = vtanh.pop %v3024
    %v3039 = vxor.u32 %v3025, 2147483648
    %v3040 = vmul.f32 %v3039, 1.442695
    %v3041 = vpow.pop %v3040
    %v3042 = vadd.f32 %v3041, 1.0
    %v3043 = vrcp.pop %v3042
    %v3044 = vmul.f32 1.0, %v3043
    %v3045 = vmul.f32 %v3037, %v2929
    %v3046 = vmul.f32 %v3031, %v3038
    %v3047 = vadd.f32 %v3045, %v3046
    %v3048 = vtanh.pop %v3047
    %v3049 = vmul.f32 %v3044, %v3048
    %vm3050 = vcmp.eq.s32.totalorder %v77, 8
    %v3051 = vsel %vm3050, 1, 0
    %3052 = vset.pattern.permute.xlu0 0
    %3053 = vperm.xlu0 %3052, %v3051
    %v3054 = vpop.permute.xlu0 %3053
    %vm3055 = vcmp.eq.s32.totalorder %v3054, 1
    %v3056 = vsel %vm3055, %v3049, %v2938
    %vm3057 = vcmask 523264
    %v3058 = vsel %vm3057, %v3056, %v3049
    %v3059 = vpack.c.bf16 %v3058, %v3058
    %v3060 = vld [vmem:[%s8] sm:$0xf]
    %v3061 = vld [vmem:[%s8 + $0x4] sm:$0xf]
    %v3062 = vld [vmem:[%s8 + $0x8] sm:$0xf]
    %v3063 = vld [vmem:[%s8 + $0xc] sm:$0xf]
    %v3064 = vld [vmem:[%s8 + $0x10] sm:$0xf]
    %v3065 = vld [vmem:[%s8 + $0x14] sm:$0xf]
    %v3066 = vld [vmem:[%s8 + $0x18] sm:$0xf]
    %v3067 = vld [vmem:[%s8 + $0x1c] sm:$0xf]
    %v3068 = vld [vmem:[%s8 + $0x20] sm:$0xf]
    %v3069 = vld [vmem:[%s8 + $0x24] sm:$0xf]
    %v3070 = vld [vmem:[%s8 + $0x28] sm:$0xf]
    %v3071 = vld [vmem:[%s8 + $0x2c] sm:$0xf]
    %v3072 = vld [vmem:[%s8 + $0x30] sm:$0xf]
    %v3073 = vld [vmem:[%s8 + $0x34] sm:$0xf]
    %v3074 = vld [vmem:[%s8 + $0x38] sm:$0xf]
    %v3075 = vld [vmem:[%s8 + $0x3c] sm:$0xf]
    %v3076 = vld [vmem:[%s9] sm:$0x1]
    %v3078 = vlaneseq
    %v3079 = vshrl.u32 %v3078, 7
    %v3080 = vsub.s32 0, %v3079
    %v3081 = vrot.slane %v3076, %v3080
    %v3099 = vunpack.c.l.b16 %v3060
    %v3100 = vunpack.c.l.b16 %v3061
    %v3101 = vunpack.c.l.b16 %v3062
    %v3102 = vunpack.c.l.b16 %v3063
    %v3103 = vunpack.c.l.b16 %v3064
    %v3104 = vunpack.c.l.b16 %v3065
    %v3105 = vunpack.c.l.b16 %v3066
    %v3106 = vunpack.c.l.b16 %v3067
    %v3107 = vunpack.c.l.b16 %v3068
    %v3108 = vunpack.c.l.b16 %v3069
    %v3109 = vunpack.c.l.b16 %v3070
    %v3110 = vunpack.c.l.b16 %v3071
    %v3111 = vunpack.c.l.b16 %v3072
    %v3112 = vunpack.c.l.b16 %v3073
    %v3113 = vunpack.c.l.b16 %v3074
    %v3114 = vunpack.c.l.b16 %v3075
    %v3115 = vpack.c.b16 %v3100, %v3099
    %v3116 = vpack.c.b16 %v3102, %v3101
    %v3117 = vpack.c.b16 %v3104, %v3103
    %v3118 = vpack.c.b16 %v3106, %v3105
    %v3119 = vpack.c.b16 %v3108, %v3107
    %v3120 = vpack.c.b16 %v3110, %v3109
    %v3121 = vpack.c.b16 %v3112, %v3111
    %v3122 = vpack.c.b16 %v3114, %v3113
    %3131 = vmatprep.subr.bf16.mxu0 0
    %3132 = vmatpush1.bf16.msra.mxu0 %v3122
    %3133 = vmatprep.subr.bf16.mxu0 0
    %3134 = vmatpush1.bf16.msra.mxu0 %v3121
    %3135 = vmatprep.subr.bf16.mxu0 0
    %3136 = vmatpush1.bf16.msra.mxu0 %v3120
    %3137 = vmatprep.subr.bf16.mxu0 0
    %3138 = vmatpush1.bf16.msra.mxu0 %v3119
    %3139 = vmatprep.subr.bf16.mxu0 0
    %3140 = vmatpush1.bf16.msra.mxu0 %v3118
    %3141 = vmatprep.subr.bf16.mxu0 0
    %3142 = vmatpush1.bf16.msra.mxu0 %v3117
    %3143 = vmatprep.subr.bf16.mxu0 0
    %3144 = vmatpush1.bf16.msra.mxu0 %v3116
    %3145 = vmatprep.subr.bf16.mxu0 0
    %3146 = vmatpush1.bf16.msra.mxu0 %v3115
    %3147 = vmatprep.subr.bf16.mxu0 0
    %3148 = vmatpush2.bf16.msra.mxu0 0
    %3149 = vmatprep.subr.bf16.mxu0 0
    %3150 = vmatpush2.bf16.msra.mxu0 0
    %3151 = vmatprep.subr.bf16.mxu0 0
    %3152 = vmatpush2.bf16.msra.mxu0 0
    %3153 = vmatprep.subr.bf16.mxu0 0
    %3154 = vmatpush2.bf16.msra.mxu0 0
    %3155 = vmatprep.subr.bf16.mxu0 0
    %3156 = vmatpush2.bf16.msra.mxu0 0
    %3157 = vmatprep.subr.bf16.mxu0 0
    %3158 = vmatpush2.bf16.msra.mxu0 0
    %3159 = vmatprep.subr.bf16.mxu0 0
    %3160 = vmatpush2.bf16.msra.mxu0 0
    %3161 = vmatprep.subr.bf16.mxu0 0
    %3162 = vmatpush2.bf16.msra.mxu0 0
    %3163 = vmatprep.mubr.bf16.mxu0 0
    %3164 = vmatmul.mubr.bf16.gmra.mxu0 %v3059
    %v3165 = vpop.f32.mrf.mxu0
    %v3166 = vadd.f32 %v3081, %v3165
    %v3167 = vpop.f32.mrf.mxu0
    %v3168 = vpop.f32.mrf.mxu0
    %v3169 = vpop.f32.mrf.mxu0
    %3170 = vdwg.mxu0
    %vm3171 = vcmask 80896
    %3172 = vst.msk [vmem:[%s10] sm:$0xff] %vm3171, %v3166
    // Predicated region
    $region54: #{basic_lstm_forward.1} parent=1 // pred_check
      _
    $region55: #{basic_lstm_forward.1} parent=1 // pred_check_branch
      %3174 = sbr.rel (0) target = $region57
    $region56: #{basic_lstm_forward.1} parent=1 // pred_region
      _
    $region57: #{basic_lstm_forward.1} parent=1 // pred_fallthru
      _
    // Predicated region
    $region58: #{basic_lstm_forward.1} parent=1 // pred_check
      _
    $region59: #{basic_lstm_forward.1} parent=1 // pred_check_branch
      %3176 = sbr.rel (0) target = $region61
    $region60: #{basic_lstm_forward.1} parent=1 // pred_region
      _
    $region61: #{basic_lstm_forward.1} parent=1 // pred_fallthru
      _
    %3177 = vsyncpa [#allocation4], 1
    %3178 = vsyncpa [#allocation6], 1

</llo_original>
